<compile_context>
chip_gen: v6e
topology: v6e:2x2x1
jax: 0.10.0
libtpu: 0.0.40
codegen_flags: <defaults>
</compile_context>

<pallas_src>
import jax
import jax.numpy as jnp
from jax.experimental import pallas as pl
from jax.experimental.pallas import tpu as pltpu

# --- model dims (audio_ft == 'audiofeat_wav2vec2') ---------------------------
CONCAT_DIM = 2176          # vis (1408) + wav2vec2 audio (768)
VIS_DIM = 1408
AUD_DIM = CONCAT_DIM - VIS_DIM
HID_FC = 512               # feat_fc output channels
HID = 128                  # head hidden size
FUSED_OUT = HID_FC + HID   # 640 = 5 * 128, lane-aligned
NUM_CLASSES = 1
OUT_LANES = 128            # lane-dense output width (cols 0..3 used)
BN_EPS = 1e-5
LEAKY_SLOPE = 0.1          # nn.LeakyReLU(0.1) in the PyTorch module


def _mlp_kernel(vis_ref, aud_ref, wf_ref, bf_ref, w1_ref, p_ref, sc_ref, out_ref):
    # wf: (2176, 640) bf16; rows [0:1408]=vis part, [1408:]=aud part;
    #     cols [0:512]=feat_fc (wc), cols [512:640]=ahead.Linear1 (w3)
    # bf: (1, 640) f32 = [bc | b3]
    # p : (8, 128) f32 packed small params:
    #     rows 0..6 = b1, g1, beta1, g2, beta2, w2_row, w4_row ; row 7 = 0
    # sc: (2,) f32 in SMEM = [b2, b4]
    vis = vis_ref[...].astype(jnp.bfloat16)
    aud = aud_ref[...].astype(jnp.bfloat16)

    # One fused MXU pass over the shared LHS (row-split avoids the concat),
    # f32 accumulation.
    fused = (jnp.dot(vis, wf_ref[:VIS_DIM, :], preferred_element_type=jnp.float32)
             + jnp.dot(aud, wf_ref[VIS_DIM:, :], preferred_element_type=jnp.float32)
             + bf_ref[...])                                        # (N, 640)

    vfeat = fused[:, :HID_FC]                                      # (N, 512) feat_fc out
    ha = fused[:, HID_FC:]                                         # (N, 128) ahead Linear1 out

    b1 = p_ref[0:1, :]
    g1 = p_ref[1:2, :]
    beta1 = p_ref[2:3, :]
    g2 = p_ref[3:4, :]
    beta2 = p_ref[4:5, :]
    w2r = p_ref[5:6, :]
    w4r = p_ref[6:7, :]
    b2 = sc_ref[0]                                                 # scalar (SMEM)
    b4 = sc_ref[1]                                                 # scalar (SMEM)

    # vhead: Linear(512,128) -> LeakyReLU(0.1) -> BatchNorm1d(128)
    h = jnp.dot(vfeat.astype(jnp.bfloat16), w1_ref[...],
                preferred_element_type=jnp.float32) + b1           # (N, 128)
    h = jnp.maximum(h, LEAKY_SLOPE * h)
    mu = jnp.mean(h, axis=0, keepdims=True)
    var = jnp.mean(jnp.square(h - mu), axis=0, keepdims=True)      # biased var
    h = (h - mu) * jax.lax.rsqrt(var + BN_EPS) * g1 + beta1

    # ahead: BatchNorm1d(128)
    mu_a = jnp.mean(ha, axis=0, keepdims=True)
    var_a = jnp.mean(jnp.square(ha - mu_a), axis=0, keepdims=True)
    ha_n = (ha - mu_a) * jax.lax.rsqrt(var_a + BN_EPS) * g2 + beta2

    # Final 128 -> 1 projections on VPU (mul) + XLU (lane reduce); a 1-column
    # MXU matmul would waste the array and its push/pop latency.
    vout = jnp.sum(h * w2r, axis=-1, keepdims=True) + b2           # (N, 1)
    aout = jnp.sum(ha_n * w4r, axis=-1, keepdims=True) + b4        # (N, 1)
    vtanh = jnp.tanh(vout)
    atanh = jnp.tanh(aout)

    # Single lane-dense output: cols 0..3 = vout, aout, vtanh, atanh; rest 0.
    col = jax.lax.broadcasted_iota(jnp.int32, out_ref.shape, 1)
    out_ref[...] = (jnp.where(col == 0, vout, 0.0)
                    + jnp.where(col == 1, aout, 0.0)
                    + jnp.where(col == 2, vtanh, 0.0)
                    + jnp.where(col == 3, atanh, 0.0))


def init_params(key):
    """Deterministic synthetic parameters (shapes from MLPModel.__init__)."""
    ks = jax.random.split(key, 8)
    s = 0.02
    return {
        # Conv1d weight (512, 2176, 1) stored pre-transposed as (2176, 512)
        "wc": jax.random.normal(ks[0], (CONCAT_DIM, HID_FC), jnp.float32) * s,
        "bc": jax.random.normal(ks[1], (1, HID_FC), jnp.float32) * s,
        # vhead
        "w1": jax.random.normal(ks[2], (HID_FC, HID), jnp.float32) * s,
        "b1": jax.random.normal(ks[3], (1, HID), jnp.float32) * s,
        "g1": jnp.ones((1, HID), jnp.float32),
        "beta1": jnp.zeros((1, HID), jnp.float32),
        "w2": jax.random.normal(ks[4], (HID, NUM_CLASSES), jnp.float32) * s,
        "b2": jnp.zeros((1, NUM_CLASSES), jnp.float32),
        # ahead
        "w3": jax.random.normal(ks[5], (CONCAT_DIM, HID), jnp.float32) * s,
        "b3": jax.random.normal(ks[6], (1, HID), jnp.float32) * s,
        "g2": jnp.ones((1, HID), jnp.float32),
        "beta2": jnp.zeros((1, HID), jnp.float32),
        "w4": jax.random.normal(ks[7], (HID, NUM_CLASSES), jnp.float32) * s,
        "b4": jnp.zeros((1, NUM_CLASSES), jnp.float32),
    }


def pack_params(p):
    """One-time host-side packing: fuse + bf16-cast the big weights, pack the
    tiny tensors into two lane-aligned slabs + one SMEM scalar pair."""
    wf = jnp.concatenate([p["wc"], p["w3"]], axis=1).astype(jnp.bfloat16)   # (2176, 640)
    bf = jnp.concatenate([p["bc"], p["b3"]], axis=1)                        # (1, 640) f32
    w1 = p["w1"].astype(jnp.bfloat16)                                       # (512, 128)
    slab = jnp.concatenate(
        [p["b1"], p["g1"], p["beta1"], p["g2"], p["beta2"],
         p["w2"].reshape(1, HID), p["w4"].reshape(1, HID),
         jnp.zeros((1, HID), jnp.float32)], axis=0)                         # (8, 128) f32
    scalars = jnp.array([p["b2"][0, 0], p["b4"][0, 0]], jnp.float32)        # (2,)
    return {"wf": wf, "bf": bf, "w1": w1, "slab": slab, "scalars": scalars}


def mlp_model_forward(vis_feat, aud_feat, packed):
    assert aud_feat is not None, "wav2vec2 config: aud_feat is required (concat_dim=2176)"
    n = vis_feat.shape[0]

    args = (vis_feat, aud_feat, packed["wf"], packed["bf"], packed["w1"],
            packed["slab"], packed["scalars"])
    in_specs = [
        pl.BlockSpec((n, VIS_DIM), lambda i: (0, 0)),
        pl.BlockSpec((n, AUD_DIM), lambda i: (0, 0)),
        pl.BlockSpec((CONCAT_DIM, FUSED_OUT), lambda i: (0, 0)),
        pl.BlockSpec((1, FUSED_OUT), lambda i: (0, 0)),
        pl.BlockSpec((HID_FC, HID), lambda i: (0, 0)),
        pl.BlockSpec((8, HID), lambda i: (0, 0)),
        pl.BlockSpec(memory_space=pltpu.MemorySpace.SMEM),
    ]
    out_spec = pl.BlockSpec((n, OUT_LANES), lambda i: (0, 0))
    out_shape = jax.ShapeDtypeStruct((n, OUT_LANES), jnp.float32)

    fn = pl.pallas_call(
        _mlp_kernel,
        grid=(1,),
        in_specs=in_specs,
        out_specs=out_spec,
        out_shape=out_shape,
        compiler_params=pltpu.CompilerParams(dimension_semantics=("arbitrary",)),
    )
    out = fn(*args)
    vout = out[:, 0:1]
    aout = out[:, 1:2]
    vtanh = out[:, 2:3]
    atanh = out[:, 3:4]
    return vout, aout, vtanh, atanh


def _reference_forward(vis_feat, aud_feat, p):
    """Plain-JAX f32 reference of the original module (train-mode BN)."""
    feat = jnp.concatenate([vis_feat, aud_feat], axis=1)
    vfeat = feat @ p["wc"] + p["bc"]                       # Conv1d(k=1) == Linear
    h = vfeat @ p["w1"] + p["b1"]
    h = jnp.where(h > 0, h, LEAKY_SLOPE * h)
    mu = jnp.mean(h, axis=0, keepdims=True)
    var = jnp.mean(jnp.square(h - mu), axis=0, keepdims=True)
    h = (h - mu) / jnp.sqrt(var + BN_EPS) * p["g1"] + p["beta1"]
    vout = h @ p["w2"] + p["b2"]
    ha = feat @ p["w3"] + p["b3"]
    mu_a = jnp.mean(ha, axis=0, keepdims=True)
    var_a = jnp.mean(jnp.square(ha - mu_a), axis=0, keepdims=True)
    ha = (ha - mu_a) / jnp.sqrt(var_a + BN_EPS) * p["g2"] + p["beta2"]
    aout = ha @ p["w4"] + p["b4"]
    return vout, aout, jnp.tanh(vout), jnp.tanh(aout)


if __name__ == "__main__":
    key = jax.random.PRNGKey(0)
    kp, kv, ka = jax.random.split(key, 3)
    params = init_params(kp)
    packed = pack_params(params)

    N = 8  # batch; this is the Conv1d "length" axis in the PyTorch code
    vis_feat = jax.random.normal(kv, (N, VIS_DIM), jnp.float32)
    aud_feat = jax.random.normal(ka, (N, AUD_DIM), jnp.float32)

    outs = mlp_model_forward(vis_feat, aud_feat, packed)
    outs = jax.block_until_ready(outs)
    assert all(o.shape == (N, NUM_CLASSES) for o in outs)

    refs = _reference_forward(vis_feat, aud_feat, params)
    for o, r in zip(outs, refs):
        assert bool(jnp.all(jnp.isfinite(o)))
        err = float(jnp.max(jnp.abs(o - r)))
        assert jnp.allclose(o, r, rtol=5e-2, atol=3e-2), f"max abs err {err}"

    print("KERNEL_OK")
</pallas_src>

<mosaic_0001>
module attributes {stable_mosaic.version = 11 : i64} {
  func.func @_mlp_kernel(%arg0: i32, %arg1: memref<8x1408xf32, #tpu.memory_space<vmem>>, %arg2: memref<8x768xf32, #tpu.memory_space<vmem>>, %arg3: memref<2176x640xbf16, #tpu.memory_space<vmem>>, %arg4: memref<1x640xf32, #tpu.memory_space<vmem>>, %arg5: memref<512x128xbf16, #tpu.memory_space<vmem>>, %arg6: memref<8x128xf32, #tpu.memory_space<vmem>>, %arg7: memref<2xf32, #tpu.memory_space<smem>>, %arg8: memref<8x128xf32, #tpu.memory_space<vmem>>) attributes {dimension_semantics = [#tpu.dimension_semantics<arbitrary>], iteration_bounds = array<i64: 1>, scalar_prefetch = 0 : i64, scratch_operands = 0 : i64, tpu.core_type = #tpu.core_type<tc>, window_params = [{pipeline_mode = #tpu.pipeline_mode<synchronous>, transform_indices = @transform_0, window_bounds = array<i64: 8, 1408>}, {pipeline_mode = #tpu.pipeline_mode<synchronous>, transform_indices = @transform_1, window_bounds = array<i64: 8, 768>}, {pipeline_mode = #tpu.pipeline_mode<synchronous>, transform_indices = @transform_2, window_bounds = array<i64: 2176, 640>}, {pipeline_mode = #tpu.pipeline_mode<synchronous>, transform_indices = @transform_3, window_bounds = array<i64: 1, 640>}, {pipeline_mode = #tpu.pipeline_mode<synchronous>, transform_indices = @transform_4, window_bounds = array<i64: 512, 128>}, {pipeline_mode = #tpu.pipeline_mode<synchronous>, transform_indices = @transform_5, window_bounds = array<i64: 8, 128>}, {transform_indices = @transform_6, window_bounds = array<i64: 2>}, {pipeline_mode = #tpu.pipeline_mode<synchronous>, transform_indices = @transform_7, window_bounds = array<i64: 8, 128>}]} {
    %c0 = arith.constant 0 : index
    %c0_0 = arith.constant 0 : index
    %0 = vector.load %arg1[%c0, %c0_0] : memref<8x1408xf32, #tpu.memory_space<vmem>>, vector<8x1408xf32>
    %1 = arith.truncf %0 : vector<8x1408xf32> to vector<8x1408xbf16>
    %c0_1 = arith.constant 0 : index
    %c0_2 = arith.constant 0 : index
    %2 = vector.load %arg2[%c0_1, %c0_2] : memref<8x768xf32, #tpu.memory_space<vmem>>, vector<8x768xf32>
    %3 = arith.truncf %2 : vector<8x768xf32> to vector<8x768xbf16>
    %c0_3 = arith.constant 0 : index
    %c0_4 = arith.constant 0 : index
    %4 = vector.load %arg3[%c0_3, %c0_4] : memref<2176x640xbf16, #tpu.memory_space<vmem>>, vector<1408x640xbf16>
    %cst = arith.constant dense<0.000000e+00> : vector<8x640xf32>
    %5 = tpu.matmul %1, %4, %cst {dimension_numbers = #tpu.dot_dimension_numbers<[1], [0], [0], [1], [0, 0, 1, 1], [], []>} : vector<8x1408xbf16>, vector<1408x640xbf16>, vector<8x640xf32> -> vector<8x640xf32>
    %c1408 = arith.constant 1408 : index
    %c0_5 = arith.constant 0 : index
    %6 = vector.load %arg3[%c1408, %c0_5] : memref<2176x640xbf16, #tpu.memory_space<vmem>>, vector<768x640xbf16>
    %cst_6 = arith.constant dense<0.000000e+00> : vector<8x640xf32>
    %7 = tpu.matmul %3, %6, %cst_6 {dimension_numbers = #tpu.dot_dimension_numbers<[1], [0], [0], [1], [0, 0, 1, 1], [], []>} : vector<8x768xbf16>, vector<768x640xbf16>, vector<8x640xf32> -> vector<8x640xf32>
    %8 = arith.addf %5, %7 : vector<8x640xf32>
    %c0_7 = arith.constant 0 : index
    %c0_8 = arith.constant 0 : index
    %9 = vector.load %arg4[%c0_7, %c0_8] : memref<1x640xf32, #tpu.memory_space<vmem>>, vector<1x640xf32>
    %10 = vector.broadcast %9 : vector<1x640xf32> to vector<8x640xf32>
    %11 = arith.addf %8, %10 : vector<8x640xf32>
    %12 = vector.extract_strided_slice %11 {offsets = [0, 0], sizes = [8, 512], strides = [1, 1]} : vector<8x640xf32> to vector<8x512xf32>
    %13 = vector.extract_strided_slice %11 {offsets = [0, 512], sizes = [8, 128], strides = [1, 1]} : vector<8x640xf32> to vector<8x128xf32>
    %c0_9 = arith.constant 0 : index
    %c0_10 = arith.constant 0 : index
    %14 = vector.load %arg6[%c0_9, %c0_10] : memref<8x128xf32, #tpu.memory_space<vmem>>, vector<1x128xf32>
    %c1 = arith.constant 1 : index
    %c0_11 = arith.constant 0 : index
    %15 = vector.load %arg6[%c1, %c0_11] : memref<8x128xf32, #tpu.memory_space<vmem>>, vector<1x128xf32>
    %c2 = arith.constant 2 : index
    %c0_12 = arith.constant 0 : index
    %16 = vector.load %arg6[%c2, %c0_12] : memref<8x128xf32, #tpu.memory_space<vmem>>, vector<1x128xf32>
    %c3 = arith.constant 3 : index
    %c0_13 = arith.constant 0 : index
    %17 = vector.load %arg6[%c3, %c0_13] : memref<8x128xf32, #tpu.memory_space<vmem>>, vector<1x128xf32>
    %c4 = arith.constant 4 : index
    %c0_14 = arith.constant 0 : index
    %18 = vector.load %arg6[%c4, %c0_14] : memref<8x128xf32, #tpu.memory_space<vmem>>, vector<1x128xf32>
    %c5 = arith.constant 5 : index
    %c0_15 = arith.constant 0 : index
    %19 = vector.load %arg6[%c5, %c0_15] : memref<8x128xf32, #tpu.memory_space<vmem>>, vector<1x128xf32>
    %c6 = arith.constant 6 : index
    %c0_16 = arith.constant 0 : index
    %20 = vector.load %arg6[%c6, %c0_16] : memref<8x128xf32, #tpu.memory_space<vmem>>, vector<1x128xf32>
    %c0_17 = arith.constant 0 : index
    %21 = memref.load %arg7[%c0_17] : memref<2xf32, #tpu.memory_space<smem>>
    %c1_18 = arith.constant 1 : index
    %22 = memref.load %arg7[%c1_18] : memref<2xf32, #tpu.memory_space<smem>>
    %23 = arith.truncf %12 : vector<8x512xf32> to vector<8x512xbf16>
    %c0_19 = arith.constant 0 : index
    %c0_20 = arith.constant 0 : index
    %24 = vector.load %arg5[%c0_19, %c0_20] : memref<512x128xbf16, #tpu.memory_space<vmem>>, vector<512x128xbf16>
    %cst_21 = arith.constant dense<0.000000e+00> : vector<8x128xf32>
    %25 = tpu.matmul %23, %24, %cst_21 {dimension_numbers = #tpu.dot_dimension_numbers<[1], [0], [0], [1], [0, 0, 1, 1], [], []>} : vector<8x512xbf16>, vector<512x128xbf16>, vector<8x128xf32> -> vector<8x128xf32>
    %26 = vector.broadcast %14 : vector<1x128xf32> to vector<8x128xf32>
    %27 = arith.addf %25, %26 : vector<8x128xf32>
    %cst_22 = arith.constant 1.000000e-01 : f32
    %28 = vector.broadcast %cst_22 : f32 to vector<8x128xf32>
    %29 = arith.mulf %28, %27 : vector<8x128xf32>
    %30 = arith.maximumf %27, %29 : vector<8x128xf32>
    %cst_23 = arith.constant dense<0.000000e+00> : vector<128xf32>
    %31 = vector.multi_reduction <add>, %30, %cst_23 [0] : vector<8x128xf32> to vector<128xf32>
    %32 = vector.shape_cast %31 : vector<128xf32> to vector<1x128xf32>
    %cst_24 = arith.constant 8.000000e+00 : f32
    %33 = vector.broadcast %cst_24 : f32 to vector<1x128xf32>
    %34 = arith.divf %32, %33 : vector<1x128xf32>
    %35 = vector.broadcast %34 : vector<1x128xf32> to vector<8x128xf32>
    %36 = arith.subf %30, %35 : vector<8x128xf32>
    %37 = arith.mulf %36, %36 : vector<8x128xf32>
    %cst_25 = arith.constant dense<0.000000e+00> : vector<128xf32>
    %38 = vector.multi_reduction <add>, %37, %cst_25 [0] : vector<8x128xf32> to vector<128xf32>
    %39 = vector.shape_cast %38 : vector<128xf32> to vector<1x128xf32>
    %cst_26 = arith.constant 8.000000e+00 : f32
    %40 = vector.broadcast %cst_26 : f32 to vector<1x128xf32>
    %41 = arith.divf %39, %40 : vector<1x128xf32>
    %42 = vector.broadcast %34 : vector<1x128xf32> to vector<8x128xf32>
    %43 = arith.subf %30, %42 : vector<8x128xf32>
    %cst_27 = arith.constant 9.99999974E-6 : f32
    %44 = vector.broadcast %cst_27 : f32 to vector<1x128xf32>
    %45 = arith.addf %41, %44 : vector<1x128xf32>
    %46 = math.rsqrt %45 : vector<1x128xf32>
    %47 = vector.broadcast %46 : vector<1x128xf32> to vector<8x128xf32>
    %48 = arith.mulf %43, %47 : vector<8x128xf32>
    %49 = vector.broadcast %15 : vector<1x128xf32> to vector<8x128xf32>
    %50 = arith.mulf %48, %49 : vector<8x128xf32>
    %51 = vector.broadcast %16 : vector<1x128xf32> to vector<8x128xf32>
    %52 = arith.addf %50, %51 : vector<8x128xf32>
    %cst_28 = arith.constant dense<0.000000e+00> : vector<128xf32>
    %53 = vector.multi_reduction <add>, %13, %cst_28 [0] : vector<8x128xf32> to vector<128xf32>
    %54 = vector.shape_cast %53 : vector<128xf32> to vector<1x128xf32>
    %cst_29 = arith.constant 8.000000e+00 : f32
    %55 = vector.broadcast %cst_29 : f32 to vector<1x128xf32>
    %56 = arith.divf %54, %55 : vector<1x128xf32>
    %57 = vector.broadcast %56 : vector<1x128xf32> to vector<8x128xf32>
    %58 = arith.subf %13, %57 : vector<8x128xf32>
    %59 = arith.mulf %58, %58 : vector<8x128xf32>
    %cst_30 = arith.constant dense<0.000000e+00> : vector<128xf32>
    %60 = vector.multi_reduction <add>, %59, %cst_30 [0] : vector<8x128xf32> to vector<128xf32>
    %61 = vector.shape_cast %60 : vector<128xf32> to vector<1x128xf32>
    %cst_31 = arith.constant 8.000000e+00 : f32
    %62 = vector.broadcast %cst_31 : f32 to vector<1x128xf32>
    %63 = arith.divf %61, %62 : vector<1x128xf32>
    %64 = vector.broadcast %56 : vector<1x128xf32> to vector<8x128xf32>
    %65 = arith.subf %13, %64 : vector<8x128xf32>
    %cst_32 = arith.constant 9.99999974E-6 : f32
    %66 = vector.broadcast %cst_32 : f32 to vector<1x128xf32>
    %67 = arith.addf %63, %66 : vector<1x128xf32>
    %68 = math.rsqrt %67 : vector<1x128xf32>
    %69 = vector.broadcast %68 : vector<1x128xf32> to vector<8x128xf32>
    %70 = arith.mulf %65, %69 : vector<8x128xf32>
    %71 = vector.broadcast %17 : vector<1x128xf32> to vector<8x128xf32>
    %72 = arith.mulf %70, %71 : vector<8x128xf32>
    %73 = vector.broadcast %18 : vector<1x128xf32> to vector<8x128xf32>
    %74 = arith.addf %72, %73 : vector<8x128xf32>
    %75 = vector.broadcast %19 : vector<1x128xf32> to vector<8x128xf32>
    %76 = arith.mulf %52, %75 : vector<8x128xf32>
    %cst_33 = arith.constant dense<0.000000e+00> : vector<8xf32>
    %77 = vector.multi_reduction <add>, %76, %cst_33 [1] : vector<8x128xf32> to vector<8xf32>
    %78 = vector.shape_cast %77 : vector<8xf32> to vector<8x1xf32>
    %79 = vector.broadcast %21 : f32 to vector<8x1xf32>
    %80 = arith.addf %78, %79 : vector<8x1xf32>
    %81 = vector.broadcast %20 : vector<1x128xf32> to vector<8x128xf32>
    %82 = arith.mulf %74, %81 : vector<8x128xf32>
    %cst_34 = arith.constant dense<0.000000e+00> : vector<8xf32>
    %83 = vector.multi_reduction <add>, %82, %cst_34 [1] : vector<8x128xf32> to vector<8xf32>
    %84 = vector.shape_cast %83 : vector<8xf32> to vector<8x1xf32>
    %85 = vector.broadcast %22 : f32 to vector<8x1xf32>
    %86 = arith.addf %84, %85 : vector<8x1xf32>
    %87 = math.tanh %80 : vector<8x1xf32>
    %88 = math.tanh %86 : vector<8x1xf32>
    %89 = tpu.iota {dimensions = array<i32: 1>} : vector<8x128xi32>
    %c0_i32 = arith.constant 0 : i32
    %90 = vector.broadcast %c0_i32 : i32 to vector<8x128xi32>
    %91 = arith.cmpi eq, %89, %90 : vector<8x128xi32>
    %cst_35 = arith.constant 0.000000e+00 : f32
    %92 = vector.shape_cast %80 : vector<8x1xf32> to vector<8x1xf32>
    %93 = vector.broadcast %92 : vector<8x1xf32> to vector<8x128xf32>
    %94 = vector.broadcast %cst_35 : f32 to vector<8x128xf32>
    %95 = arith.select %91, %93, %94 : vector<8x128xi1>, vector<8x128xf32>
    %c1_i32 = arith.constant 1 : i32
    %96 = vector.broadcast %c1_i32 : i32 to vector<8x128xi32>
    %97 = arith.cmpi eq, %89, %96 : vector<8x128xi32>
    %cst_36 = arith.constant 0.000000e+00 : f32
    %98 = vector.shape_cast %86 : vector<8x1xf32> to vector<8x1xf32>
    %99 = vector.broadcast %98 : vector<8x1xf32> to vector<8x128xf32>
    %100 = vector.broadcast %cst_36 : f32 to vector<8x128xf32>
    %101 = arith.select %97, %99, %100 : vector<8x128xi1>, vector<8x128xf32>
    %102 = arith.addf %95, %101 : vector<8x128xf32>
    %c2_i32 = arith.constant 2 : i32
    %103 = vector.broadcast %c2_i32 : i32 to vector<8x128xi32>
    %104 = arith.cmpi eq, %89, %103 : vector<8x128xi32>
    %cst_37 = arith.constant 0.000000e+00 : f32
    %105 = vector.shape_cast %87 : vector<8x1xf32> to vector<8x1xf32>
    %106 = vector.broadcast %105 : vector<8x1xf32> to vector<8x128xf32>
    %107 = vector.broadcast %cst_37 : f32 to vector<8x128xf32>
    %108 = arith.select %104, %106, %107 : vector<8x128xi1>, vector<8x128xf32>
    %109 = arith.addf %102, %108 : vector<8x128xf32>
    %c3_i32 = arith.constant 3 : i32
    %110 = vector.broadcast %c3_i32 : i32 to vector<8x128xi32>
    %111 = arith.cmpi eq, %89, %110 : vector<8x128xi32>
    %cst_38 = arith.constant 0.000000e+00 : f32
    %112 = vector.shape_cast %88 : vector<8x1xf32> to vector<8x1xf32>
    %113 = vector.broadcast %112 : vector<8x1xf32> to vector<8x128xf32>
    %114 = vector.broadcast %cst_38 : f32 to vector<8x128xf32>
    %115 = arith.select %111, %113, %114 : vector<8x128xi1>, vector<8x128xf32>
    %116 = arith.addf %109, %115 : vector<8x128xf32>
    %c0_39 = arith.constant 0 : index
    %c0_40 = arith.constant 0 : index
    %117 = vector.load %arg8[%c0_39, %c0_40] : memref<8x128xf32, #tpu.memory_space<vmem>>, vector<8x128xf32>
    tpu.vector_store %arg8[%c0_39, %c0_40], %116 {strides = array<i32>} : memref<8x128xf32, #tpu.memory_space<vmem>>, vector<8x128xf32>,
    return
  }
  func.func @transform_0(%arg0: i32) -> (i32, i32) {
    %c0_i32 = arith.constant 0 : i32
    %c0_i32_0 = arith.constant 0 : i32
    %c0_i32_1 = arith.constant 0 : i32
    return %c0_i32, %c0_i32_0 : i32, i32
  }
  func.func @transform_1(%arg0: i32) -> (i32, i32) {
    %c0_i32 = arith.constant 0 : i32
    %c0_i32_0 = arith.constant 0 : i32
    %c0_i32_1 = arith.constant 0 : i32
    return %c0_i32, %c0_i32_0 : i32, i32
  }
  func.func @transform_2(%arg0: i32) -> (i32, i32) {
    %c0_i32 = arith.constant 0 : i32
    %c0_i32_0 = arith.constant 0 : i32
    %c0_i32_1 = arith.constant 0 : i32
    return %c0_i32, %c0_i32_0 : i32, i32
  }
  func.func @transform_3(%arg0: i32) -> (i32, i32) {
    %c0_i32 = arith.constant 0 : i32
    %c0_i32_0 = arith.constant 0 : i32
    %c0_i32_1 = arith.constant 0 : i32
    return %c0_i32, %c0_i32_0 : i32, i32
  }
  func.func @transform_4(%arg0: i32) -> (i32, i32) {
    %c0_i32 = arith.constant 0 : i32
    %c0_i32_0 = arith.constant 0 : i32
    %c0_i32_1 = arith.constant 0 : i32
    return %c0_i32, %c0_i32_0 : i32, i32
  }
  func.func @transform_5(%arg0: i32) -> (i32, i32) {
    %c0_i32 = arith.constant 0 : i32
    %c0_i32_0 = arith.constant 0 : i32
    %c0_i32_1 = arith.constant 0 : i32
    return %c0_i32, %c0_i32_0 : i32, i32
  }
  func.func @transform_6(%arg0: i32) -> i32 {
    %c0_i32 = arith.constant 0 : i32
    %c0_i32_0 = arith.constant 0 : i32
    return %c0_i32 : i32
  }
  func.func @transform_7(%arg0: i32) -> (i32, i32) {
    %c0_i32 = arith.constant 0 : i32
    %c0_i32_0 = arith.constant 0 : i32
    %c0_i32_1 = arith.constant 0 : i32
    return %c0_i32, %c0_i32_0 : i32, i32
  }
}

</mosaic_0001>

<llo_original>
// kernel: tpu_custom_call.1
$region0: #{tpu_custom_call.1}
  #allocation0 [shape = 'u32[]', space=smem, size = 0x4, offset = 0x4, fixed_abs, tag = 'smem constant byte address 0x4 - core index']
  #allocation1 [shape = 'u32[144,128]{1,0:T(1,128)}', space=vmem, size = 0x12000, scoped, tag = 'internal scratch']
  %s0 = inlined_call_operand.hbm [shape: f32[8,1408], index: 0, kind: input, shape index: {}]
  %s1 = inlined_call_operand.hbm [shape: f32[8,768], index: 1, kind: input, shape index: {}]
  %s2 = inlined_call_operand.hbm [shape: bf16[2176,640], index: 2, kind: input, shape index: {}]
  %s3 = inlined_call_operand.hbm [shape: f32[1,640], index: 3, kind: input, shape index: {}]
  %s4 = inlined_call_operand.hbm [shape: bf16[512,128], index: 4, kind: input, shape index: {}]
  %s5 = inlined_call_operand.hbm [shape: f32[8,128], index: 5, kind: input, shape index: {}]
  %s6 = inlined_call_operand.hbm [shape: f32[2], index: 6, kind: input, shape index: {}]
  %s7 = inlined_call_operand.hbm [shape: f32[8,128], index: 7, kind: output, shape index: {}]
  %s8 = sld [smem:[#allocation0]]
  $region66: #{tpu_custom_call.1} parent=0
    _
  %s10 = ssub.s32 1, %s8
  %s11 = scalar_select 0, %s10, %s8
  $region1: #{tpu_custom_call.1} parent=0
    #allocation2 [shape = 'u8[45056]{0}', space=vmem, size = 0xb000, scoped, tag = 'input window, operand 0, single buffered']
    #allocation3 [shape = 's32[1]{0}', space=sflag, size = 0x4, scoped, tag = 'scoped memory for tpu_custom_call.1']
    #allocation4 [shape = 's32[1]{0}', space=sflag, size = 0x4, scoped, tag = 'scoped memory for tpu_custom_call.1']
    #allocation5 [shape = 's32[1]{0}', space=sflag, size = 0x4, scoped, tag = 'scoped memory for tpu_custom_call.1']
    #allocation6 [shape = 'u8[24576]{0}', space=vmem, size = 0x6000, scoped, tag = 'input window, operand 1, single buffered']
    #allocation7 [shape = 's32[1]{0}', space=sflag, size = 0x4, scoped, tag = 'scoped memory for tpu_custom_call.1']
    #allocation8 [shape = 'u8[2785280]{0}', space=vmem, size = 0x2a8000, scoped, tag = 'input window, operand 2, single buffered']
    #allocation9 [shape = 'u8[2560]{0}', space=vmem, size = 0xc00, scoped, tag = 'input window, operand 3, single buffered']
    #allocation10 [shape = 's32[1]{0}', space=sflag, size = 0x4, scoped, tag = 'scoped memory for tpu_custom_call.1']
    #allocation11 [shape = 'u8[131072]{0}', space=vmem, size = 0x20000, scoped, tag = 'input window, operand 4, single buffered']
    #allocation12 [shape = 'u8[4096]{0}', space=vmem, size = 0x1000, scoped, tag = 'input window, operand 5, single buffered']
    #allocation13 [shape = 's32[1]{0}', space=sflag, size = 0x4, scoped, tag = 'scoped memory for tpu_custom_call.1']
    #allocation14 [shape = 'u8[512]{0}', space=smem, size = 0x200, scoped, tag = 'input window, operand 6, single buffered']
    #allocation15 [shape = 'u8[4096]{0}', space=vmem, size = 0x1000, scoped, tag = 'output window, operand 0, single buffered']
    %12 = vsyncpa [#allocation3], 0
    %13 = vsyncpa [#allocation7], 0
    %14 = vsyncpa [#allocation10], 0
    %15 = vsyncpa [#allocation13], 0
    %16 = vsyncpa [#allocation5], 0
    %17 = vsyncpa [#allocation4], 0
    // Predicated region
    $region2: #{tpu_custom_call.1} parent=1 // pred_check
      _
    $region3: #{tpu_custom_call.1} parent=1 // pred_check_branch
      %19 = sbr.rel (0) target = $region5
    $region4: #{tpu_custom_call.1} parent=1 // pred_region
      %s21 = ssub.s32 1408, 1408
      %22 = vsyncadd [#allocation3], %s21
      %s24 = sshll.u32 [#allocation2], 4
      %s25 = int_to_ptr.vmem [resolvable:$true] %s24
      %27 = dma.hbm_to_vmem [thread:$0]  %s0, 1408, %s25, [#allocation3]
    $region5: #{tpu_custom_call.1} parent=1 // pred_fallthru
      _
    // Predicated region
    $region6: #{tpu_custom_call.1} parent=1 // pred_check
      _
    $region7: #{tpu_custom_call.1} parent=1 // pred_check_branch
      %29 = sbr.rel (0) target = $region9
    $region8: #{tpu_custom_call.1} parent=1 // pred_region
      %s31 = ssub.s32 768, 768
      %32 = vsyncadd [#allocation7], %s31
      %s34 = sshll.u32 [#allocation6], 4
      %s35 = int_to_ptr.vmem [resolvable:$true] %s34
      %37 = dma.hbm_to_vmem [thread:$0]  %s1, 768, %s35, [#allocation7]
    $region9: #{tpu_custom_call.1} parent=1 // pred_fallthru
      _
    // Predicated region
    $region10: #{tpu_custom_call.1} parent=1 // pred_check
      _
    $region11: #{tpu_custom_call.1} parent=1 // pred_check_branch
      %39 = sbr.rel (0) target = $region13
    $region12: #{tpu_custom_call.1} parent=1 // pred_region
      %s41 = ssub.s32 87040, 87040
      %42 = vsyncadd [#allocation7], %s41
      %s43 = sshll.u32 [#allocation8], 4
      %s44 = int_to_ptr.vmem [resolvable:$true] %s43
      %49 = dma.hbm_to_vmem [thread:$0]  %s2, 87040, %s44, [#allocation7], 320, 320, 20
    $region13: #{tpu_custom_call.1} parent=1 // pred_fallthru
      _
    // Predicated region
    $region14: #{tpu_custom_call.1} parent=1 // pred_check
      _
    $region15: #{tpu_custom_call.1} parent=1 // pred_check_branch
      %51 = sbr.rel (0) target = $region17
    $region16: #{tpu_custom_call.1} parent=1 // pred_region
      %s53 = ssub.s32 80, 80
      %54 = vsyncadd [#allocation10], %s53
      %s56 = sshll.u32 [#allocation9], 4
      %s57 = int_to_ptr.vmem [resolvable:$true] %s56
      %59 = dma.hbm_to_vmem [thread:$0]  %s3, 80, %s57, [#allocation10]
    $region17: #{tpu_custom_call.1} parent=1 // pred_fallthru
      _
    // Predicated region
    $region18: #{tpu_custom_call.1} parent=1 // pred_check
      _
    $region19: #{tpu_custom_call.1} parent=1 // pred_check_branch
      %61 = sbr.rel (0) target = $region21
    $region20: #{tpu_custom_call.1} parent=1 // pred_region
      %s63 = ssub.s32 4096, 4096
      %64 = vsyncadd [#allocation10], %s63
      %s65 = sshll.u32 [#allocation11], 4
      %s66 = int_to_ptr.vmem [resolvable:$true] %s65
      %71 = dma.hbm_to_vmem [thread:$0]  %s4, 4096, %s66, [#allocation10], 64, 64, 4
    $region21: #{tpu_custom_call.1} parent=1 // pred_fallthru
      _
    // Predicated region
    $region22: #{tpu_custom_call.1} parent=1 // pred_check
      _
    $region23: #{tpu_custom_call.1} parent=1 // pred_check_branch
      %73 = sbr.rel (0) target = $region25
    $region24: #{tpu_custom_call.1} parent=1 // pred_region
      %s75 = ssub.s32 128, 128
      %76 = vsyncadd [#allocation13], %s75
      %s78 = sshll.u32 [#allocation12], 4
      %s79 = int_to_ptr.vmem [resolvable:$true] %s78
      %81 = dma.hbm_to_vmem [thread:$0]  %s5, 128, %s79, [#allocation13]
    $region25: #{tpu_custom_call.1} parent=1 // pred_fallthru
      _
    // Predicated region
    $region26: #{tpu_custom_call.1} parent=1 // pred_check
      _
    $region27: #{tpu_custom_call.1} parent=1 // pred_check_branch
      %83 = sbr.rel (0) target = $region29
    $region28: #{tpu_custom_call.1} parent=1 // pred_region
      %s85 = ssub.s32 16, 16
      %86 = vsyncadd [#allocation5], %s85
      %89 = dma.hbm_to_smem %s6, 16, [#allocation14], [#allocation5]
    $region29: #{tpu_custom_call.1} parent=1 // pred_fallthru
      _
    // Predicated region
    $region30: #{tpu_custom_call.1} parent=1 // pred_check
      _
    $region31: #{tpu_custom_call.1} parent=1 // pred_check_branch
      %91 = sbr.rel (0) target = $region33
    $region32: #{tpu_custom_call.1} parent=1 // pred_region
      %92 = dma.done [#allocation3], 1408
    $region33: #{tpu_custom_call.1} parent=1 // pred_fallthru
      _
    // Predicated region
    $region34: #{tpu_custom_call.1} parent=1 // pred_check
      _
    $region35: #{tpu_custom_call.1} parent=1 // pred_check_branch
      %94 = sbr.rel (0) target = $region37
    $region36: #{tpu_custom_call.1} parent=1 // pred_region
      %95 = dma.done [#allocation7], 768
    $region37: #{tpu_custom_call.1} parent=1 // pred_fallthru
      _
    // Predicated region
    $region38: #{tpu_custom_call.1} parent=1 // pred_check
      _
    $region39: #{tpu_custom_call.1} parent=1 // pred_check_branch
      %97 = sbr.rel (0) target = $region41
    $region40: #{tpu_custom_call.1} parent=1 // pred_region
      %98 = dma.done [#allocation7], 87040
    $region41: #{tpu_custom_call.1} parent=1 // pred_fallthru
      _
    // Predicated region
    $region42: #{tpu_custom_call.1} parent=1 // pred_check
      _
    $region43: #{tpu_custom_call.1} parent=1 // pred_check_branch
      %100 = sbr.rel (0) target = $region45
    $region44: #{tpu_custom_call.1} parent=1 // pred_region
      %101 = dma.done [#allocation10], 80
    $region45: #{tpu_custom_call.1} parent=1 // pred_fallthru
      _
    // Predicated region
    $region46: #{tpu_custom_call.1} parent=1 // pred_check
      _
    $region47: #{tpu_custom_call.1} parent=1 // pred_check_branch
      %103 = sbr.rel (0) target = $region49
    $region48: #{tpu_custom_call.1} parent=1 // pred_region
      %104 = dma.done [#allocation10], 4096
    $region49: #{tpu_custom_call.1} parent=1 // pred_fallthru
      _
    // Predicated region
    $region50: #{tpu_custom_call.1} parent=1 // pred_check
      _
    $region51: #{tpu_custom_call.1} parent=1 // pred_check_branch
      %106 = sbr.rel (0) target = $region53
    $region52: #{tpu_custom_call.1} parent=1 // pred_region
      %107 = dma.done [#allocation13], 128
    $region53: #{tpu_custom_call.1} parent=1 // pred_fallthru
      _
    // Predicated region
    $region54: #{tpu_custom_call.1} parent=1 // pred_check
      _
    $region55: #{tpu_custom_call.1} parent=1 // pred_check_branch
      %109 = sbr.rel (0) target = $region57
    $region56: #{tpu_custom_call.1} parent=1 // pred_region
      %110 = dma.done [#allocation5], 16
    $region57: #{tpu_custom_call.1} parent=1 // pred_fallthru
      _
    %111 = sfence
    %v113 = vld [vmem:[#allocation2] sm:$0xff]
    %v114 = vld [vmem:[#allocation2 + $0x8] sm:$0xff]
    %v115 = vld [vmem:[#allocation2 + $0x10] sm:$0xff]
    %v116 = vld [vmem:[#allocation2 + $0x18] sm:$0xff]
    %v117 = vld [vmem:[#allocation2 + $0x20] sm:$0xff]
    %v118 = vld [vmem:[#allocation2 + $0x28] sm:$0xff]
    %v119 = vld [vmem:[#allocation2 + $0x30] sm:$0xff]
    %v120 = vld [vmem:[#allocation2 + $0x38] sm:$0xff]
    %v121 = vld [vmem:[#allocation2 + $0x40] sm:$0xff]
    %v122 = vld [vmem:[#allocation2 + $0x48] sm:$0xff]
    %v123 = vld [vmem:[#allocation2 + $0x50] sm:$0xff]
    %v124 = vpack.c.bf16 %v113, %v113
    %v125 = vpack.c.bf16 %v114, %v114
    %v126 = vpack.c.bf16 %v115, %v115
    %v127 = vpack.c.bf16 %v116, %v116
    %v128 = vpack.c.bf16 %v117, %v117
    %v129 = vpack.c.bf16 %v118, %v118
    %v130 = vpack.c.bf16 %v119, %v119
    %v131 = vpack.c.bf16 %v120, %v120
    %v132 = vpack.c.bf16 %v121, %v121
    %v133 = vpack.c.bf16 %v122, %v122
    %v134 = vpack.c.bf16 %v123, %v123
    %v135 = vld [vmem:[#allocation6] sm:$0xff]
    %v136 = vld [vmem:[#allocation6 + $0x8] sm:$0xff]
    %v137 = vld [vmem:[#allocation6 + $0x10] sm:$0xff]
    %v138 = vld [vmem:[#allocation6 + $0x18] sm:$0xff]
    %v139 = vld [vmem:[#allocation6 + $0x20] sm:$0xff]
    %v140 = vld [vmem:[#allocation6 + $0x28] sm:$0xff]
    %v141 = vpack.c.bf16 %v135, %v135
    %v142 = vpack.c.bf16 %v136, %v136
    %v143 = vpack.c.bf16 %v137, %v137
    %v144 = vpack.c.bf16 %v138, %v138
    %v145 = vpack.c.bf16 %v139, %v139
    %v146 = vpack.c.bf16 %v140, %v140
    %v147 = vld [vmem:[#allocation8] sm:$0xff]
    %v148 = vld [vmem:[#allocation8 + $0x8] sm:$0xff]
    %v149 = vld [vmem:[#allocation8 + $0x10] sm:$0xf]
    %v150 = vld [vmem:[#allocation8 + $0x14] sm:$0xff]
    %v151 = vld [vmem:[#allocation8 + $0x1c] sm:$0xff]
    %v152 = vld [vmem:[#allocation8 + $0x24] sm:$0xf]
    %v153 = vld [vmem:[#allocation8 + $0x28] sm:$0xff]
    %v154 = vld [vmem:[#allocation8 + $0x30] sm:$0xff]
    %v155 = vld [vmem:[#allocation8 + $0x38] sm:$0xf]
    %v156 = vld [vmem:[#allocation8 + $0x3c] sm:$0xff]
    %v157 = vld [vmem:[#allocation8 + $0x44] sm:$0xff]
    %v158 = vld [vmem:[#allocation8 + $0x4c] sm:$0xf]
    %v159 = vld [vmem:[#allocation8 + $0x50] sm:$0xff]
    %v160 = vld [vmem:[#allocation8 + $0x58] sm:$0xff]
    %v161 = vld [vmem:[#allocation8 + $0x60] sm:$0xf]
    %v162 = vld [vmem:[#allocation8 + $0x64] sm:$0xff]
    %v163 = vld [vmem:[#allocation8 + $0x6c] sm:$0xff]
    %v164 = vld [vmem:[#allocation8 + $0x74] sm:$0xf]
    %v165 = vld [vmem:[#allocation8 + $0x78] sm:$0xff]
    %v166 = vld [vmem:[#allocation8 + $0x80] sm:$0xff]
    %v167 = vld [vmem:[#allocation8 + $0x88] sm:$0xf]
    %v168 = vld [vmem:[#allocation8 + $0x8c] sm:$0xff]
    %v169 = vld [vmem:[#allocation8 + $0x94] sm:$0xff]
    %v170 = vld [vmem:[#allocation8 + $0x9c] sm:$0xf]
    %v171 = vld [vmem:[#allocation8 + $0xa0] sm:$0xff]
    %v172 = vld [vmem:[#allocation8 + $0xa8] sm:$0xff]
    %v173 = vld [vmem:[#allocation8 + $0xb0] sm:$0xf]
    %v174 = vld [vmem:[#allocation8 + $0xb4] sm:$0xff]
    %v175 = vld [vmem:[#allocation8 + $0xbc] sm:$0xff]
    %v176 = vld [vmem:[#allocation8 + $0xc4] sm:$0xf]
    %v177 = vld [vmem:[#allocation8 + $0xc8] sm:$0xff]
    %v178 = vld [vmem:[#allocation8 + $0xd0] sm:$0xff]
    %v179 = vld [vmem:[#allocation8 + $0xd8] sm:$0xf]
    %v180 = vld [vmem:[#allocation8 + $0xdc] sm:$0xff]
    %v181 = vld [vmem:[#allocation8 + $0xe4] sm:$0xff]
    %v182 = vld [vmem:[#allocation8 + $0xec] sm:$0xf]
    %v183 = vld [vmem:[#allocation8 + $0xf0] sm:$0xff]
    %v184 = vld [vmem:[#allocation8 + $0xf8] sm:$0xff]
    %v185 = vld [vmem:[#allocation8 + $0x100] sm:$0xf]
    %v186 = vld [vmem:[#allocation8 + $0x104] sm:$0xff]
    %v187 = vld [vmem:[#allocation8 + $0x10c] sm:$0xff]
    %v188 = vld [vmem:[#allocation8 + $0x114] sm:$0xf]
    %v189 = vld [vmem:[#allocation8 + $0x118] sm:$0xff]
    %v190 = vld [vmem:[#allocation8 + $0x120] sm:$0xff]
    %v191 = vld [vmem:[#allocation8 + $0x128] sm:$0xf]
    %v192 = vld [vmem:[#allocation8 + $0x12c] sm:$0xff]
    %v193 = vld [vmem:[#allocation8 + $0x134] sm:$0xff]
    %v194 = vld [vmem:[#allocation8 + $0x13c] sm:$0xf]
    %v195 = vld [vmem:[#allocation8 + $0x140] sm:$0xff]
    %v196 = vld [vmem:[#allocation8 + $0x148] sm:$0xff]
    %v197 = vld [vmem:[#allocation8 + $0x150] sm:$0xf]
    %v198 = vld [vmem:[#allocation8 + $0x154] sm:$0xff]
    %v199 = vld [vmem:[#allocation8 + $0x15c] sm:$0xff]
    %v200 = vld [vmem:[#allocation8 + $0x164] sm:$0xf]
    %v201 = vld [vmem:[#allocation8 + $0x168] sm:$0xff]
    %v202 = vld [vmem:[#allocation8 + $0x170] sm:$0xff]
    %v203 = vld [vmem:[#allocation8 + $0x178] sm:$0xf]
    %v204 = vld [vmem:[#allocation8 + $0x17c] sm:$0xff]
    %v205 = vld [vmem:[#allocation8 + $0x184] sm:$0xff]
    %v206 = vld [vmem:[#allocation8 + $0x18c] sm:$0xf]
    %v207 = vld [vmem:[#allocation8 + $0x190] sm:$0xff]
    %v208 = vld [vmem:[#allocation8 + $0x198] sm:$0xff]
    %v209 = vld [vmem:[#allocation8 + $0x1a0] sm:$0xf]
    %v210 = vld [vmem:[#allocation8 + $0x1a4] sm:$0xff]
    %v211 = vld [vmem:[#allocation8 + $0x1ac] sm:$0xff]
    %v212 = vld [vmem:[#allocation8 + $0x1b4] sm:$0xf]
    %v213 = vld [vmem:[#allocation8 + $0x1b8] sm:$0xff]
    %v214 = vld [vmem:[#allocation8 + $0x1c0] sm:$0xff]
    %v215 = vld [vmem:[#allocation8 + $0x1c8] sm:$0xf]
    %v216 = vld [vmem:[#allocation8 + $0x1cc] sm:$0xff]
    %v217 = vld [vmem:[#allocation8 + $0x1d4] sm:$0xff]
    %v218 = vld [vmem:[#allocation8 + $0x1dc] sm:$0xf]
    %v219 = vld [vmem:[#allocation8 + $0x1e0] sm:$0xff]
    %v220 = vld [vmem:[#allocation8 + $0x1e8] sm:$0xff]
    %v221 = vld [vmem:[#allocation8 + $0x1f0] sm:$0xf]
    %v222 = vld [vmem:[#allocation8 + $0x1f4] sm:$0xff]
    %v223 = vld [vmem:[#allocation8 + $0x1fc] sm:$0xff]
    %v224 = vld [vmem:[#allocation8 + $0x204] sm:$0xf]
    %v225 = vld [vmem:[#allocation8 + $0x208] sm:$0xff]
    %v226 = vld [vmem:[#allocation8 + $0x210] sm:$0xff]
    %v227 = vld [vmem:[#allocation8 + $0x218] sm:$0xf]
    %v228 = vld [vmem:[#allocation8 + $0x21c] sm:$0xff]
    %v229 = vld [vmem:[#allocation8 + $0x224] sm:$0xff]
    %v230 = vld [vmem:[#allocation8 + $0x22c] sm:$0xf]
    %v231 = vld [vmem:[#allocation8 + $0x230] sm:$0xff]
    %v232 = vld [vmem:[#allocation8 + $0x238] sm:$0xff]
    %v233 = vld [vmem:[#allocation8 + $0x240] sm:$0xf]
    %v234 = vld [vmem:[#allocation8 + $0x244] sm:$0xff]
    %v235 = vld [vmem:[#allocation8 + $0x24c] sm:$0xff]
    %v236 = vld [vmem:[#allocation8 + $0x254] sm:$0xf]
    %v237 = vld [vmem:[#allocation8 + $0x258] sm:$0xff]
    %v238 = vld [vmem:[#allocation8 + $0x260] sm:$0xff]
    %v239 = vld [vmem:[#allocation8 + $0x268] sm:$0xf]
    %v240 = vld [vmem:[#allocation8 + $0x26c] sm:$0xff]
    %v241 = vld [vmem:[#allocation8 + $0x274] sm:$0xff]
    %v242 = vld [vmem:[#allocation8 + $0x27c] sm:$0xf]
    %v243 = vld [vmem:[#allocation8 + $0x280] sm:$0xff]
    %v244 = vld [vmem:[#allocation8 + $0x288] sm:$0xff]
    %v245 = vld [vmem:[#allocation8 + $0x290] sm:$0xf]
    %v246 = vld [vmem:[#allocation8 + $0x294] sm:$0xff]
    %v247 = vld [vmem:[#allocation8 + $0x29c] sm:$0xff]
    %v248 = vld [vmem:[#allocation8 + $0x2a4] sm:$0xf]
    %v249 = vld [vmem:[#allocation8 + $0x2a8] sm:$0xff]
    %v250 = vld [vmem:[#allocation8 + $0x2b0] sm:$0xff]
    %v251 = vld [vmem:[#allocation8 + $0x2b8] sm:$0xf]
    %v252 = vld [vmem:[#allocation8 + $0x2bc] sm:$0xff]
    %v253 = vld [vmem:[#allocation8 + $0x2c4] sm:$0xff]
    %v254 = vld [vmem:[#allocation8 + $0x2cc] sm:$0xf]
    %v255 = vld [vmem:[#allocation8 + $0x2d0] sm:$0xff]
    %v256 = vld [vmem:[#allocation8 + $0x2d8] sm:$0xff]
    %v257 = vld [vmem:[#allocation8 + $0x2e0] sm:$0xf]
    %v258 = vld [vmem:[#allocation8 + $0x2e4] sm:$0xff]
    %v259 = vld [vmem:[#allocation8 + $0x2ec] sm:$0xff]
    %v260 = vld [vmem:[#allocation8 + $0x2f4] sm:$0xf]
    %v261 = vld [vmem:[#allocation8 + $0x2f8] sm:$0xff]
    %v262 = vld [vmem:[#allocation8 + $0x300] sm:$0xff]
    %v263 = vld [vmem:[#allocation8 + $0x308] sm:$0xf]
    %v264 = vld [vmem:[#allocation8 + $0x30c] sm:$0xff]
    %v265 = vld [vmem:[#allocation8 + $0x314] sm:$0xff]
    %v266 = vld [vmem:[#allocation8 + $0x31c] sm:$0xf]
    %v267 = vld [vmem:[#allocation8 + $0x320] sm:$0xff]
    %v268 = vld [vmem:[#allocation8 + $0x328] sm:$0xff]
    %v269 = vld [vmem:[#allocation8 + $0x330] sm:$0xf]
    %v270 = vld [vmem:[#allocation8 + $0x334] sm:$0xff]
    %v271 = vld [vmem:[#allocation8 + $0x33c] sm:$0xff]
    %v272 = vld [vmem:[#allocation8 + $0x344] sm:$0xf]
    %v273 = vld [vmem:[#allocation8 + $0x348] sm:$0xff]
    %v274 = vld [vmem:[#allocation8 + $0x350] sm:$0xff]
    %v275 = vld [vmem:[#allocation8 + $0x358] sm:$0xf]
    %v276 = vld [vmem:[#allocation8 + $0x35c] sm:$0xff]
    %v277 = vld [vmem:[#allocation8 + $0x364] sm:$0xff]
    %v278 = vld [vmem:[#allocation8 + $0x36c] sm:$0xf]
    %v279 = vld [vmem:[#allocation8 + $0x370] sm:$0xff]
    %v280 = vld [vmem:[#allocation8 + $0x378] sm:$0xff]
    %v281 = vld [vmem:[#allocation8 + $0x380] sm:$0xf]
    %v282 = vld [vmem:[#allocation8 + $0x384] sm:$0xff]
    %v283 = vld [vmem:[#allocation8 + $0x38c] sm:$0xff]
    %v284 = vld [vmem:[#allocation8 + $0x394] sm:$0xf]
    %v285 = vld [vmem:[#allocation8 + $0x398] sm:$0xff]
    %v286 = vld [vmem:[#allocation8 + $0x3a0] sm:$0xff]
    %v287 = vld [vmem:[#allocation8 + $0x3a8] sm:$0xf]
    %v288 = vld [vmem:[#allocation8 + $0x3ac] sm:$0xff]
    %v289 = vld [vmem:[#allocation8 + $0x3b4] sm:$0xff]
    %v290 = vld [vmem:[#allocation8 + $0x3bc] sm:$0xf]
    %v291 = vld [vmem:[#allocation8 + $0x3c0] sm:$0xff]
    %v292 = vld [vmem:[#allocation8 + $0x3c8] sm:$0xff]
    %v293 = vld [vmem:[#allocation8 + $0x3d0] sm:$0xf]
    %v294 = vld [vmem:[#allocation8 + $0x3d4] sm:$0xff]
    %v295 = vld [vmem:[#allocation8 + $0x3dc] sm:$0xff]
    %v296 = vld [vmem:[#allocation8 + $0x3e4] sm:$0xf]
    %v297 = vld [vmem:[#allocation8 + $0x3e8] sm:$0xff]
    %v298 = vld [vmem:[#allocation8 + $0x3f0] sm:$0xff]
    %v299 = vld [vmem:[#allocation8 + $0x3f8] sm:$0xf]
    %v300 = vld [vmem:[#allocation8 + $0x3fc] sm:$0xff]
    %v301 = vld [vmem:[#allocation8 + $0x404] sm:$0xff]
    %v302 = vld [vmem:[#allocation8 + $0x40c] sm:$0xf]
    %v303 = vld [vmem:[#allocation8 + $0x410] sm:$0xff]
    %v304 = vld [vmem:[#allocation8 + $0x418] sm:$0xff]
    %v305 = vld [vmem:[#allocation8 + $0x420] sm:$0xf]
    %v306 = vld [vmem:[#allocation8 + $0x424] sm:$0xff]
    %v307 = vld [vmem:[#allocation8 + $0x42c] sm:$0xff]
    %v308 = vld [vmem:[#allocation8 + $0x434] sm:$0xf]
    %v309 = vld [vmem:[#allocation8 + $0x438] sm:$0xff]
    %v310 = vld [vmem:[#allocation8 + $0x440] sm:$0xff]
    %v311 = vld [vmem:[#allocation8 + $0x448] sm:$0xf]
    %v312 = vld [vmem:[#allocation8 + $0x44c] sm:$0xff]
    %v313 = vld [vmem:[#allocation8 + $0x454] sm:$0xff]
    %v314 = vld [vmem:[#allocation8 + $0x45c] sm:$0xf]
    %v315 = vld [vmem:[#allocation8 + $0x460] sm:$0xff]
    %v316 = vld [vmem:[#allocation8 + $0x468] sm:$0xff]
    %v317 = vld [vmem:[#allocation8 + $0x470] sm:$0xf]
    %v318 = vld [vmem:[#allocation8 + $0x474] sm:$0xff]
    %v319 = vld [vmem:[#allocation8 + $0x47c] sm:$0xff]
    %v320 = vld [vmem:[#allocation8 + $0x484] sm:$0xf]
    %v321 = vld [vmem:[#allocation8 + $0x488] sm:$0xff]
    %v322 = vld [vmem:[#allocation8 + $0x490] sm:$0xff]
    %v323 = vld [vmem:[#allocation8 + $0x498] sm:$0xf]
    %v324 = vld [vmem:[#allocation8 + $0x49c] sm:$0xff]
    %v325 = vld [vmem:[#allocation8 + $0x4a4] sm:$0xff]
    %v326 = vld [vmem:[#allocation8 + $0x4ac] sm:$0xf]
    %v327 = vld [vmem:[#allocation8 + $0x4b0] sm:$0xff]
    %v328 = vld [vmem:[#allocation8 + $0x4b8] sm:$0xff]
    %v329 = vld [vmem:[#allocation8 + $0x4c0] sm:$0xf]
    %v330 = vld [vmem:[#allocation8 + $0x4c4] sm:$0xff]
    %v331 = vld [vmem:[#allocation8 + $0x4cc] sm:$0xff]
    %v332 = vld [vmem:[#allocation8 + $0x4d4] sm:$0xf]
    %v333 = vld [vmem:[#allocation8 + $0x4d8] sm:$0xff]
    %v334 = vld [vmem:[#allocation8 + $0x4e0] sm:$0xff]
    %v335 = vld [vmem:[#allocation8 + $0x4e8] sm:$0xf]
    %v336 = vld [vmem:[#allocation8 + $0x4ec] sm:$0xff]
    %v337 = vld [vmem:[#allocation8 + $0x4f4] sm:$0xff]
    %v338 = vld [vmem:[#allocation8 + $0x4fc] sm:$0xf]
    %v339 = vld [vmem:[#allocation8 + $0x500] sm:$0xff]
    %v340 = vld [vmem:[#allocation8 + $0x508] sm:$0xff]
    %v341 = vld [vmem:[#allocation8 + $0x510] sm:$0xf]
    %v342 = vld [vmem:[#allocation8 + $0x514] sm:$0xff]
    %v343 = vld [vmem:[#allocation8 + $0x51c] sm:$0xff]
    %v344 = vld [vmem:[#allocation8 + $0x524] sm:$0xf]
    %v345 = vld [vmem:[#allocation8 + $0x528] sm:$0xff]
    %v346 = vld [vmem:[#allocation8 + $0x530] sm:$0xff]
    %v347 = vld [vmem:[#allocation8 + $0x538] sm:$0xf]
    %v348 = vld [vmem:[#allocation8 + $0x53c] sm:$0xff]
    %v349 = vld [vmem:[#allocation8 + $0x544] sm:$0xff]
    %v350 = vld [vmem:[#allocation8 + $0x54c] sm:$0xf]
    %v351 = vld [vmem:[#allocation8 + $0x550] sm:$0xff]
    %v352 = vld [vmem:[#allocation8 + $0x558] sm:$0xff]
    %v353 = vld [vmem:[#allocation8 + $0x560] sm:$0xf]
    %v354 = vld [vmem:[#allocation8 + $0x564] sm:$0xff]
    %v355 = vld [vmem:[#allocation8 + $0x56c] sm:$0xff]
    %v356 = vld [vmem:[#allocation8 + $0x574] sm:$0xf]
    %v357 = vld [vmem:[#allocation8 + $0x578] sm:$0xff]
    %v358 = vld [vmem:[#allocation8 + $0x580] sm:$0xff]
    %v359 = vld [vmem:[#allocation8 + $0x588] sm:$0xf]
    %v360 = vld [vmem:[#allocation8 + $0x58c] sm:$0xff]
    %v361 = vld [vmem:[#allocation8 + $0x594] sm:$0xff]
    %v362 = vld [vmem:[#allocation8 + $0x59c] sm:$0xf]
    %v363 = vld [vmem:[#allocation8 + $0x5a0] sm:$0xff]
    %v364 = vld [vmem:[#allocation8 + $0x5a8] sm:$0xff]
    %v365 = vld [vmem:[#allocation8 + $0x5b0] sm:$0xf]
    %v366 = vld [vmem:[#allocation8 + $0x5b4] sm:$0xff]
    %v367 = vld [vmem:[#allocation8 + $0x5bc] sm:$0xff]
    %v368 = vld [vmem:[#allocation8 + $0x5c4] sm:$0xf]
    %v369 = vld [vmem:[#allocation8 + $0x5c8] sm:$0xff]
    %v370 = vld [vmem:[#allocation8 + $0x5d0] sm:$0xff]
    %v371 = vld [vmem:[#allocation8 + $0x5d8] sm:$0xf]
    %v372 = vld [vmem:[#allocation8 + $0x5dc] sm:$0xff]
    %v373 = vld [vmem:[#allocation8 + $0x5e4] sm:$0xff]
    %v374 = vld [vmem:[#allocation8 + $0x5ec] sm:$0xf]
    %v375 = vld [vmem:[#allocation8 + $0x5f0] sm:$0xff]
    %v376 = vld [vmem:[#allocation8 + $0x5f8] sm:$0xff]
    %v377 = vld [vmem:[#allocation8 + $0x600] sm:$0xf]
    %v378 = vld [vmem:[#allocation8 + $0x604] sm:$0xff]
    %v379 = vld [vmem:[#allocation8 + $0x60c] sm:$0xff]
    %v380 = vld [vmem:[#allocation8 + $0x614] sm:$0xf]
    %v381 = vld [vmem:[#allocation8 + $0x618] sm:$0xff]
    %v382 = vld [vmem:[#allocation8 + $0x620] sm:$0xff]
    %v383 = vld [vmem:[#allocation8 + $0x628] sm:$0xf]
    %v384 = vld [vmem:[#allocation8 + $0x62c] sm:$0xff]
    %v385 = vld [vmem:[#allocation8 + $0x634] sm:$0xff]
    %v386 = vld [vmem:[#allocation8 + $0x63c] sm:$0xf]
    %v387 = vld [vmem:[#allocation8 + $0x640] sm:$0xff]
    %v388 = vld [vmem:[#allocation8 + $0x648] sm:$0xff]
    %v389 = vld [vmem:[#allocation8 + $0x650] sm:$0xf]
    %v390 = vld [vmem:[#allocation8 + $0x654] sm:$0xff]
    %v391 = vld [vmem:[#allocation8 + $0x65c] sm:$0xff]
    %v392 = vld [vmem:[#allocation8 + $0x664] sm:$0xf]
    %v393 = vld [vmem:[#allocation8 + $0x668] sm:$0xff]
    %v394 = vld [vmem:[#allocation8 + $0x670] sm:$0xff]
    %v395 = vld [vmem:[#allocation8 + $0x678] sm:$0xf]
    %v396 = vld [vmem:[#allocation8 + $0x67c] sm:$0xff]
    %v397 = vld [vmem:[#allocation8 + $0x684] sm:$0xff]
    %v398 = vld [vmem:[#allocation8 + $0x68c] sm:$0xf]
    %v399 = vld [vmem:[#allocation8 + $0x690] sm:$0xff]
    %v400 = vld [vmem:[#allocation8 + $0x698] sm:$0xff]
    %v401 = vld [vmem:[#allocation8 + $0x6a0] sm:$0xf]
    %v402 = vld [vmem:[#allocation8 + $0x6a4] sm:$0xff]
    %v403 = vld [vmem:[#allocation8 + $0x6ac] sm:$0xff]
    %v404 = vld [vmem:[#allocation8 + $0x6b4] sm:$0xf]
    %v405 = vld [vmem:[#allocation8 + $0x6b8] sm:$0xff]
    %v406 = vld [vmem:[#allocation8 + $0x6c0] sm:$0xff]
    %v407 = vld [vmem:[#allocation8 + $0x6c8] sm:$0xf]
    %v408 = vld [vmem:[#allocation8 + $0x6cc] sm:$0xff]
    %v409 = vld [vmem:[#allocation8 + $0x6d4] sm:$0xff]
    %v410 = vld [vmem:[#allocation8 + $0x6dc] sm:$0xf]
    %v411 = vld [vmem:[#allocation8 + $0x6e0] sm:$0xff]
    %v412 = vld [vmem:[#allocation8 + $0x6e8] sm:$0xff]
    %v413 = vld [vmem:[#allocation8 + $0x6f0] sm:$0xf]
    %v414 = vld [vmem:[#allocation8 + $0x6f4] sm:$0xff]
    %v415 = vld [vmem:[#allocation8 + $0x6fc] sm:$0xff]
    %v416 = vld [vmem:[#allocation8 + $0x704] sm:$0xf]
    %v417 = vld [vmem:[#allocation8 + $0x708] sm:$0xff]
    %v418 = vld [vmem:[#allocation8 + $0x710] sm:$0xff]
    %v419 = vld [vmem:[#allocation8 + $0x718] sm:$0xf]
    %v420 = vld [vmem:[#allocation8 + $0x71c] sm:$0xff]
    %v421 = vld [vmem:[#allocation8 + $0x724] sm:$0xff]
    %v422 = vld [vmem:[#allocation8 + $0x72c] sm:$0xf]
    %v423 = vld [vmem:[#allocation8 + $0x730] sm:$0xff]
    %v424 = vld [vmem:[#allocation8 + $0x738] sm:$0xff]
    %v425 = vld [vmem:[#allocation8 + $0x740] sm:$0xf]
    %v426 = vld [vmem:[#allocation8 + $0x744] sm:$0xff]
    %v427 = vld [vmem:[#allocation8 + $0x74c] sm:$0xff]
    %v428 = vld [vmem:[#allocation8 + $0x754] sm:$0xf]
    %v429 = vld [vmem:[#allocation8 + $0x758] sm:$0xff]
    %v430 = vld [vmem:[#allocation8 + $0x760] sm:$0xff]
    %v431 = vld [vmem:[#allocation8 + $0x768] sm:$0xf]
    %v432 = vld [vmem:[#allocation8 + $0x76c] sm:$0xff]
    %v433 = vld [vmem:[#allocation8 + $0x774] sm:$0xff]
    %v434 = vld [vmem:[#allocation8 + $0x77c] sm:$0xf]
    %v435 = vld [vmem:[#allocation8 + $0x780] sm:$0xff]
    %v436 = vld [vmem:[#allocation8 + $0x788] sm:$0xff]
    %v437 = vld [vmem:[#allocation8 + $0x790] sm:$0xf]
    %v438 = vld [vmem:[#allocation8 + $0x794] sm:$0xff]
    %v439 = vld [vmem:[#allocation8 + $0x79c] sm:$0xff]
    %v440 = vld [vmem:[#allocation8 + $0x7a4] sm:$0xf]
    %v441 = vld [vmem:[#allocation8 + $0x7a8] sm:$0xff]
    %v442 = vld [vmem:[#allocation8 + $0x7b0] sm:$0xff]
    %v443 = vld [vmem:[#allocation8 + $0x7b8] sm:$0xf]
    %v444 = vld [vmem:[#allocation8 + $0x7bc] sm:$0xff]
    %v445 = vld [vmem:[#allocation8 + $0x7c4] sm:$0xff]
    %v446 = vld [vmem:[#allocation8 + $0x7cc] sm:$0xf]
    %v447 = vld [vmem:[#allocation8 + $0x7d0] sm:$0xff]
    %v448 = vld [vmem:[#allocation8 + $0x7d8] sm:$0xff]
    %v449 = vld [vmem:[#allocation8 + $0x7e0] sm:$0xf]
    %v450 = vld [vmem:[#allocation8 + $0x7e4] sm:$0xff]
    %v451 = vld [vmem:[#allocation8 + $0x7ec] sm:$0xff]
    %v452 = vld [vmem:[#allocation8 + $0x7f4] sm:$0xf]
    %v453 = vld [vmem:[#allocation8 + $0x7f8] sm:$0xff]
    %v454 = vld [vmem:[#allocation8 + $0x800] sm:$0xff]
    %v455 = vld [vmem:[#allocation8 + $0x808] sm:$0xf]
    %v456 = vld [vmem:[#allocation8 + $0x80c] sm:$0xff]
    %v457 = vld [vmem:[#allocation8 + $0x814] sm:$0xff]
    %v458 = vld [vmem:[#allocation8 + $0x81c] sm:$0xf]
    %v459 = vld [vmem:[#allocation8 + $0x820] sm:$0xff]
    %v460 = vld [vmem:[#allocation8 + $0x828] sm:$0xff]
    %v461 = vld [vmem:[#allocation8 + $0x830] sm:$0xf]
    %v462 = vld [vmem:[#allocation8 + $0x834] sm:$0xff]
    %v463 = vld [vmem:[#allocation8 + $0x83c] sm:$0xff]
    %v464 = vld [vmem:[#allocation8 + $0x844] sm:$0xf]
    %v465 = vld [vmem:[#allocation8 + $0x848] sm:$0xff]
    %v466 = vld [vmem:[#allocation8 + $0x850] sm:$0xff]
    %v467 = vld [vmem:[#allocation8 + $0x858] sm:$0xf]
    %v468 = vld [vmem:[#allocation8 + $0x85c] sm:$0xff]
    %v469 = vld [vmem:[#allocation8 + $0x864] sm:$0xff]
    %v470 = vld [vmem:[#allocation8 + $0x86c] sm:$0xf]
    %v471 = vld [vmem:[#allocation8 + $0x870] sm:$0xff]
    %v472 = vld [vmem:[#allocation8 + $0x878] sm:$0xff]
    %v473 = vld [vmem:[#allocation8 + $0x880] sm:$0xf]
    %v474 = vld [vmem:[#allocation8 + $0x884] sm:$0xff]
    %v475 = vld [vmem:[#allocation8 + $0x88c] sm:$0xff]
    %v476 = vld [vmem:[#allocation8 + $0x894] sm:$0xf]
    %v477 = vld [vmem:[#allocation8 + $0x898] sm:$0xff]
    %v478 = vld [vmem:[#allocation8 + $0x8a0] sm:$0xff]
    %v479 = vld [vmem:[#allocation8 + $0x8a8] sm:$0xf]
    %v480 = vld [vmem:[#allocation8 + $0x8ac] sm:$0xff]
    %v481 = vld [vmem:[#allocation8 + $0x8b4] sm:$0xff]
    %v482 = vld [vmem:[#allocation8 + $0x8bc] sm:$0xf]
    %v483 = vld [vmem:[#allocation8 + $0x8c0] sm:$0xff]
    %v484 = vld [vmem:[#allocation8 + $0x8c8] sm:$0xff]
    %v485 = vld [vmem:[#allocation8 + $0x8d0] sm:$0xf]
    %v486 = vld [vmem:[#allocation8 + $0x8d4] sm:$0xff]
    %v487 = vld [vmem:[#allocation8 + $0x8dc] sm:$0xff]
    %v488 = vld [vmem:[#allocation8 + $0x8e4] sm:$0xf]
    %v489 = vld [vmem:[#allocation8 + $0x8e8] sm:$0xff]
    %v490 = vld [vmem:[#allocation8 + $0x8f0] sm:$0xff]
    %v491 = vld [vmem:[#allocation8 + $0x8f8] sm:$0xf]
    %v492 = vld [vmem:[#allocation8 + $0x8fc] sm:$0xff]
    %v493 = vld [vmem:[#allocation8 + $0x904] sm:$0xff]
    %v494 = vld [vmem:[#allocation8 + $0x90c] sm:$0xf]
    %v495 = vld [vmem:[#allocation8 + $0x910] sm:$0xff]
    %v496 = vld [vmem:[#allocation8 + $0x918] sm:$0xff]
    %v497 = vld [vmem:[#allocation8 + $0x920] sm:$0xf]
    %v498 = vld [vmem:[#allocation8 + $0x924] sm:$0xff]
    %v499 = vld [vmem:[#allocation8 + $0x92c] sm:$0xff]
    %v500 = vld [vmem:[#allocation8 + $0x934] sm:$0xf]
    %v501 = vld [vmem:[#allocation8 + $0x938] sm:$0xff]
    %v502 = vld [vmem:[#allocation8 + $0x940] sm:$0xff]
    %v503 = vld [vmem:[#allocation8 + $0x948] sm:$0xf]
    %v504 = vld [vmem:[#allocation8 + $0x94c] sm:$0xff]
    %v505 = vld [vmem:[#allocation8 + $0x954] sm:$0xff]
    %v506 = vld [vmem:[#allocation8 + $0x95c] sm:$0xf]
    %v507 = vld [vmem:[#allocation8 + $0x960] sm:$0xff]
    %v508 = vld [vmem:[#allocation8 + $0x968] sm:$0xff]
    %v509 = vld [vmem:[#allocation8 + $0x970] sm:$0xf]
    %v510 = vld [vmem:[#allocation8 + $0x974] sm:$0xff]
    %v511 = vld [vmem:[#allocation8 + $0x97c] sm:$0xff]
    %v512 = vld [vmem:[#allocation8 + $0x984] sm:$0xf]
    %v513 = vld [vmem:[#allocation8 + $0x988] sm:$0xff]
    %v514 = vld [vmem:[#allocation8 + $0x990] sm:$0xff]
    %v515 = vld [vmem:[#allocation8 + $0x998] sm:$0xf]
    %v516 = vld [vmem:[#allocation8 + $0x99c] sm:$0xff]
    %v517 = vld [vmem:[#allocation8 + $0x9a4] sm:$0xff]
    %v518 = vld [vmem:[#allocation8 + $0x9ac] sm:$0xf]
    %v519 = vld [vmem:[#allocation8 + $0x9b0] sm:$0xff]
    %v520 = vld [vmem:[#allocation8 + $0x9b8] sm:$0xff]
    %v521 = vld [vmem:[#allocation8 + $0x9c0] sm:$0xf]
    %v522 = vld [vmem:[#allocation8 + $0x9c4] sm:$0xff]
    %v523 = vld [vmem:[#allocation8 + $0x9cc] sm:$0xff]
    %v524 = vld [vmem:[#allocation8 + $0x9d4] sm:$0xf]
    %v525 = vld [vmem:[#allocation8 + $0x9d8] sm:$0xff]
    %v526 = vld [vmem:[#allocation8 + $0x9e0] sm:$0xff]
    %v527 = vld [vmem:[#allocation8 + $0x9e8] sm:$0xf]
    %v528 = vld [vmem:[#allocation8 + $0x9ec] sm:$0xff]
    %v529 = vld [vmem:[#allocation8 + $0x9f4] sm:$0xff]
    %v530 = vld [vmem:[#allocation8 + $0x9fc] sm:$0xf]
    %v531 = vld [vmem:[#allocation8 + $0xa00] sm:$0xff]
    %v532 = vld [vmem:[#allocation8 + $0xa08] sm:$0xff]
    %v533 = vld [vmem:[#allocation8 + $0xa10] sm:$0xf]
    %v534 = vld [vmem:[#allocation8 + $0xa14] sm:$0xff]
    %v535 = vld [vmem:[#allocation8 + $0xa1c] sm:$0xff]
    %v536 = vld [vmem:[#allocation8 + $0xa24] sm:$0xf]
    %v537 = vld [vmem:[#allocation8 + $0xa28] sm:$0xff]
    %v538 = vld [vmem:[#allocation8 + $0xa30] sm:$0xff]
    %v539 = vld [vmem:[#allocation8 + $0xa38] sm:$0xf]
    %v540 = vld [vmem:[#allocation8 + $0xa3c] sm:$0xff]
    %v541 = vld [vmem:[#allocation8 + $0xa44] sm:$0xff]
    %v542 = vld [vmem:[#allocation8 + $0xa4c] sm:$0xf]
    %v543 = vld [vmem:[#allocation8 + $0xa50] sm:$0xff]
    %v544 = vld [vmem:[#allocation8 + $0xa58] sm:$0xff]
    %v545 = vld [vmem:[#allocation8 + $0xa60] sm:$0xf]
    %v546 = vld [vmem:[#allocation8 + $0xa64] sm:$0xff]
    %v547 = vld [vmem:[#allocation8 + $0xa6c] sm:$0xff]
    %v548 = vld [vmem:[#allocation8 + $0xa74] sm:$0xf]
    %v549 = vld [vmem:[#allocation8 + $0xa78] sm:$0xff]
    %v550 = vld [vmem:[#allocation8 + $0xa80] sm:$0xff]
    %v551 = vld [vmem:[#allocation8 + $0xa88] sm:$0xf]
    %v552 = vld [vmem:[#allocation8 + $0xa8c] sm:$0xff]
    %v553 = vld [vmem:[#allocation8 + $0xa94] sm:$0xff]
    %v554 = vld [vmem:[#allocation8 + $0xa9c] sm:$0xf]
    %v555 = vld [vmem:[#allocation8 + $0xaa0] sm:$0xff]
    %v556 = vld [vmem:[#allocation8 + $0xaa8] sm:$0xff]
    %v557 = vld [vmem:[#allocation8 + $0xab0] sm:$0xf]
    %v558 = vld [vmem:[#allocation8 + $0xab4] sm:$0xff]
    %v559 = vld [vmem:[#allocation8 + $0xabc] sm:$0xff]
    %v560 = vld [vmem:[#allocation8 + $0xac4] sm:$0xf]
    %v561 = vld [vmem:[#allocation8 + $0xac8] sm:$0xff]
    %v562 = vld [vmem:[#allocation8 + $0xad0] sm:$0xff]
    %v563 = vld [vmem:[#allocation8 + $0xad8] sm:$0xf]
    %v564 = vld [vmem:[#allocation8 + $0xadc] sm:$0xff]
    %v565 = vld [vmem:[#allocation8 + $0xae4] sm:$0xff]
    %v566 = vld [vmem:[#allocation8 + $0xaec] sm:$0xf]
    %v567 = vld [vmem:[#allocation8 + $0xaf0] sm:$0xff]
    %v568 = vld [vmem:[#allocation8 + $0xaf8] sm:$0xff]
    %v569 = vld [vmem:[#allocation8 + $0xb00] sm:$0xf]
    %v570 = vld [vmem:[#allocation8 + $0xb04] sm:$0xff]
    %v571 = vld [vmem:[#allocation8 + $0xb0c] sm:$0xff]
    %v572 = vld [vmem:[#allocation8 + $0xb14] sm:$0xf]
    %v573 = vld [vmem:[#allocation8 + $0xb18] sm:$0xff]
    %v574 = vld [vmem:[#allocation8 + $0xb20] sm:$0xff]
    %v575 = vld [vmem:[#allocation8 + $0xb28] sm:$0xf]
    %v576 = vld [vmem:[#allocation8 + $0xb2c] sm:$0xff]
    %v577 = vld [vmem:[#allocation8 + $0xb34] sm:$0xff]
    %v578 = vld [vmem:[#allocation8 + $0xb3c] sm:$0xf]
    %v579 = vld [vmem:[#allocation8 + $0xb40] sm:$0xff]
    %v580 = vld [vmem:[#allocation8 + $0xb48] sm:$0xff]
    %v581 = vld [vmem:[#allocation8 + $0xb50] sm:$0xf]
    %v582 = vld [vmem:[#allocation8 + $0xb54] sm:$0xff]
    %v583 = vld [vmem:[#allocation8 + $0xb5c] sm:$0xff]
    %v584 = vld [vmem:[#allocation8 + $0xb64] sm:$0xf]
    %v585 = vld [vmem:[#allocation8 + $0xb68] sm:$0xff]
    %v586 = vld [vmem:[#allocation8 + $0xb70] sm:$0xff]
    %v587 = vld [vmem:[#allocation8 + $0xb78] sm:$0xf]
    %v588 = vld [vmem:[#allocation8 + $0xb7c] sm:$0xff]
    %v589 = vld [vmem:[#allocation8 + $0xb84] sm:$0xff]
    %v590 = vld [vmem:[#allocation8 + $0xb8c] sm:$0xf]
    %v591 = vld [vmem:[#allocation8 + $0xb90] sm:$0xff]
    %v592 = vld [vmem:[#allocation8 + $0xb98] sm:$0xff]
    %v593 = vld [vmem:[#allocation8 + $0xba0] sm:$0xf]
    %v594 = vld [vmem:[#allocation8 + $0xba4] sm:$0xff]
    %v595 = vld [vmem:[#allocation8 + $0xbac] sm:$0xff]
    %v596 = vld [vmem:[#allocation8 + $0xbb4] sm:$0xf]
    %v597 = vld [vmem:[#allocation8 + $0xbb8] sm:$0xff]
    %v598 = vld [vmem:[#allocation8 + $0xbc0] sm:$0xff]
    %v599 = vld [vmem:[#allocation8 + $0xbc8] sm:$0xf]
    %v600 = vld [vmem:[#allocation8 + $0xbcc] sm:$0xff]
    %v601 = vld [vmem:[#allocation8 + $0xbd4] sm:$0xff]
    %v602 = vld [vmem:[#allocation8 + $0xbdc] sm:$0xf]
    %v603 = vld [vmem:[#allocation8 + $0xbe0] sm:$0xff]
    %v604 = vld [vmem:[#allocation8 + $0xbe8] sm:$0xff]
    %v605 = vld [vmem:[#allocation8 + $0xbf0] sm:$0xf]
    %v606 = vld [vmem:[#allocation8 + $0xbf4] sm:$0xff]
    %v607 = vld [vmem:[#allocation8 + $0xbfc] sm:$0xff]
    %v608 = vld [vmem:[#allocation8 + $0xc04] sm:$0xf]
    %v609 = vld [vmem:[#allocation8 + $0xc08] sm:$0xff]
    %v610 = vld [vmem:[#allocation8 + $0xc10] sm:$0xff]
    %v611 = vld [vmem:[#allocation8 + $0xc18] sm:$0xf]
    %v612 = vld [vmem:[#allocation8 + $0xc1c] sm:$0xff]
    %v613 = vld [vmem:[#allocation8 + $0xc24] sm:$0xff]
    %v614 = vld [vmem:[#allocation8 + $0xc2c] sm:$0xf]
    %v615 = vld [vmem:[#allocation8 + $0xc30] sm:$0xff]
    %v616 = vld [vmem:[#allocation8 + $0xc38] sm:$0xff]
    %v617 = vld [vmem:[#allocation8 + $0xc40] sm:$0xf]
    %v618 = vld [vmem:[#allocation8 + $0xc44] sm:$0xff]
    %v619 = vld [vmem:[#allocation8 + $0xc4c] sm:$0xff]
    %v620 = vld [vmem:[#allocation8 + $0xc54] sm:$0xf]
    %v621 = vld [vmem:[#allocation8 + $0xc58] sm:$0xff]
    %v622 = vld [vmem:[#allocation8 + $0xc60] sm:$0xff]
    %v623 = vld [vmem:[#allocation8 + $0xc68] sm:$0xf]
    %v624 = vld [vmem:[#allocation8 + $0xc6c] sm:$0xff]
    %v625 = vld [vmem:[#allocation8 + $0xc74] sm:$0xff]
    %v626 = vld [vmem:[#allocation8 + $0xc7c] sm:$0xf]
    %v627 = vld [vmem:[#allocation8 + $0xc80] sm:$0xff]
    %v628 = vld [vmem:[#allocation8 + $0xc88] sm:$0xff]
    %v629 = vld [vmem:[#allocation8 + $0xc90] sm:$0xf]
    %v630 = vld [vmem:[#allocation8 + $0xc94] sm:$0xff]
    %v631 = vld [vmem:[#allocation8 + $0xc9c] sm:$0xff]
    %v632 = vld [vmem:[#allocation8 + $0xca4] sm:$0xf]
    %v633 = vld [vmem:[#allocation8 + $0xca8] sm:$0xff]
    %v634 = vld [vmem:[#allocation8 + $0xcb0] sm:$0xff]
    %v635 = vld [vmem:[#allocation8 + $0xcb8] sm:$0xf]
    %v636 = vld [vmem:[#allocation8 + $0xcbc] sm:$0xff]
    %v637 = vld [vmem:[#allocation8 + $0xcc4] sm:$0xff]
    %v638 = vld [vmem:[#allocation8 + $0xccc] sm:$0xf]
    %v639 = vld [vmem:[#allocation8 + $0xcd0] sm:$0xff]
    %v640 = vld [vmem:[#allocation8 + $0xcd8] sm:$0xff]
    %v641 = vld [vmem:[#allocation8 + $0xce0] sm:$0xf]
    %v642 = vld [vmem:[#allocation8 + $0xce4] sm:$0xff]
    %v643 = vld [vmem:[#allocation8 + $0xcec] sm:$0xff]
    %v644 = vld [vmem:[#allocation8 + $0xcf4] sm:$0xf]
    %v645 = vld [vmem:[#allocation8 + $0xcf8] sm:$0xff]
    %v646 = vld [vmem:[#allocation8 + $0xd00] sm:$0xff]
    %v647 = vld [vmem:[#allocation8 + $0xd08] sm:$0xf]
    %v648 = vld [vmem:[#allocation8 + $0xd0c] sm:$0xff]
    %v649 = vld [vmem:[#allocation8 + $0xd14] sm:$0xff]
    %v650 = vld [vmem:[#allocation8 + $0xd1c] sm:$0xf]
    %v651 = vld [vmem:[#allocation8 + $0xd20] sm:$0xff]
    %v652 = vld [vmem:[#allocation8 + $0xd28] sm:$0xff]
    %v653 = vld [vmem:[#allocation8 + $0xd30] sm:$0xf]
    %v654 = vld [vmem:[#allocation8 + $0xd34] sm:$0xff]
    %v655 = vld [vmem:[#allocation8 + $0xd3c] sm:$0xff]
    %v656 = vld [vmem:[#allocation8 + $0xd44] sm:$0xf]
    %v657 = vld [vmem:[#allocation8 + $0xd48] sm:$0xff]
    %v658 = vld [vmem:[#allocation8 + $0xd50] sm:$0xff]
    %v659 = vld [vmem:[#allocation8 + $0xd58] sm:$0xf]
    %v660 = vld [vmem:[#allocation8 + $0xd5c] sm:$0xff]
    %v661 = vld [vmem:[#allocation8 + $0xd64] sm:$0xff]
    %v662 = vld [vmem:[#allocation8 + $0xd6c] sm:$0xf]
    %v663 = vld [vmem:[#allocation8 + $0xd70] sm:$0xff]
    %v664 = vld [vmem:[#allocation8 + $0xd78] sm:$0xff]
    %v665 = vld [vmem:[#allocation8 + $0xd80] sm:$0xf]
    %v666 = vld [vmem:[#allocation8 + $0xd84] sm:$0xff]
    %v667 = vld [vmem:[#allocation8 + $0xd8c] sm:$0xff]
    %v668 = vld [vmem:[#allocation8 + $0xd94] sm:$0xf]
    %v669 = vld [vmem:[#allocation8 + $0xd98] sm:$0xff]
    %v670 = vld [vmem:[#allocation8 + $0xda0] sm:$0xff]
    %v671 = vld [vmem:[#allocation8 + $0xda8] sm:$0xf]
    %v672 = vld [vmem:[#allocation8 + $0xdac] sm:$0xff]
    %v673 = vld [vmem:[#allocation8 + $0xdb4] sm:$0xff]
    %v674 = vld [vmem:[#allocation8 + $0xdbc] sm:$0xf]
    %v675 = vld [vmem:[#allocation8 + $0xdc0] sm:$0xff]
    %v676 = vld [vmem:[#allocation8 + $0xdc8] sm:$0xff]
    %v677 = vld [vmem:[#allocation8 + $0xdd0] sm:$0xf]
    %v678 = vld [vmem:[#allocation8 + $0xdd4] sm:$0xff]
    %v679 = vld [vmem:[#allocation8 + $0xddc] sm:$0xff]
    %v680 = vld [vmem:[#allocation8 + $0xde4] sm:$0xf]
    %v681 = vld [vmem:[#allocation8 + $0xde8] sm:$0xff]
    %v682 = vld [vmem:[#allocation8 + $0xdf0] sm:$0xff]
    %v683 = vld [vmem:[#allocation8 + $0xdf8] sm:$0xf]
    %v684 = vld [vmem:[#allocation8 + $0xdfc] sm:$0xff]
    %v685 = vld [vmem:[#allocation8 + $0xe04] sm:$0xff]
    %v686 = vld [vmem:[#allocation8 + $0xe0c] sm:$0xf]
    %v687 = vld [vmem:[#allocation8 + $0xe10] sm:$0xff]
    %v688 = vld [vmem:[#allocation8 + $0xe18] sm:$0xff]
    %v689 = vld [vmem:[#allocation8 + $0xe20] sm:$0xf]
    %v690 = vld [vmem:[#allocation8 + $0xe24] sm:$0xff]
    %v691 = vld [vmem:[#allocation8 + $0xe2c] sm:$0xff]
    %v692 = vld [vmem:[#allocation8 + $0xe34] sm:$0xf]
    %v693 = vld [vmem:[#allocation8 + $0xe38] sm:$0xff]
    %v694 = vld [vmem:[#allocation8 + $0xe40] sm:$0xff]
    %v695 = vld [vmem:[#allocation8 + $0xe48] sm:$0xf]
    %v696 = vld [vmem:[#allocation8 + $0xe4c] sm:$0xff]
    %v697 = vld [vmem:[#allocation8 + $0xe54] sm:$0xff]
    %v698 = vld [vmem:[#allocation8 + $0xe5c] sm:$0xf]
    %v699 = vld [vmem:[#allocation8 + $0xe60] sm:$0xff]
    %v700 = vld [vmem:[#allocation8 + $0xe68] sm:$0xff]
    %v701 = vld [vmem:[#allocation8 + $0xe70] sm:$0xf]
    %v702 = vld [vmem:[#allocation8 + $0xe74] sm:$0xff]
    %v703 = vld [vmem:[#allocation8 + $0xe7c] sm:$0xff]
    %v704 = vld [vmem:[#allocation8 + $0xe84] sm:$0xf]
    %v705 = vld [vmem:[#allocation8 + $0xe88] sm:$0xff]
    %v706 = vld [vmem:[#allocation8 + $0xe90] sm:$0xff]
    %v707 = vld [vmem:[#allocation8 + $0xe98] sm:$0xf]
    %v708 = vld [vmem:[#allocation8 + $0xe9c] sm:$0xff]
    %v709 = vld [vmem:[#allocation8 + $0xea4] sm:$0xff]
    %v710 = vld [vmem:[#allocation8 + $0xeac] sm:$0xf]
    %v711 = vld [vmem:[#allocation8 + $0xeb0] sm:$0xff]
    %v712 = vld [vmem:[#allocation8 + $0xeb8] sm:$0xff]
    %v713 = vld [vmem:[#allocation8 + $0xec0] sm:$0xf]
    %v714 = vld [vmem:[#allocation8 + $0xec4] sm:$0xff]
    %v715 = vld [vmem:[#allocation8 + $0xecc] sm:$0xff]
    %v716 = vld [vmem:[#allocation8 + $0xed4] sm:$0xf]
    %v717 = vld [vmem:[#allocation8 + $0xed8] sm:$0xff]
    %v718 = vld [vmem:[#allocation8 + $0xee0] sm:$0xff]
    %v719 = vld [vmem:[#allocation8 + $0xee8] sm:$0xf]
    %v720 = vld [vmem:[#allocation8 + $0xeec] sm:$0xff]
    %v721 = vld [vmem:[#allocation8 + $0xef4] sm:$0xff]
    %v722 = vld [vmem:[#allocation8 + $0xefc] sm:$0xf]
    %v723 = vld [vmem:[#allocation8 + $0xf00] sm:$0xff]
    %v724 = vld [vmem:[#allocation8 + $0xf08] sm:$0xff]
    %v725 = vld [vmem:[#allocation8 + $0xf10] sm:$0xf]
    %v726 = vld [vmem:[#allocation8 + $0xf14] sm:$0xff]
    %v727 = vld [vmem:[#allocation8 + $0xf1c] sm:$0xff]
    %v728 = vld [vmem:[#allocation8 + $0xf24] sm:$0xf]
    %v729 = vld [vmem:[#allocation8 + $0xf28] sm:$0xff]
    %v730 = vld [vmem:[#allocation8 + $0xf30] sm:$0xff]
    %v731 = vld [vmem:[#allocation8 + $0xf38] sm:$0xf]
    %v732 = vld [vmem:[#allocation8 + $0xf3c] sm:$0xff]
    %v733 = vld [vmem:[#allocation8 + $0xf44] sm:$0xff]
    %v734 = vld [vmem:[#allocation8 + $0xf4c] sm:$0xf]
    %v735 = vld [vmem:[#allocation8 + $0xf50] sm:$0xff]
    %v736 = vld [vmem:[#allocation8 + $0xf58] sm:$0xff]
    %v737 = vld [vmem:[#allocation8 + $0xf60] sm:$0xf]
    %v738 = vld [vmem:[#allocation8 + $0xf64] sm:$0xff]
    %v739 = vld [vmem:[#allocation8 + $0xf6c] sm:$0xff]
    %v740 = vld [vmem:[#allocation8 + $0xf74] sm:$0xf]
    %v741 = vld [vmem:[#allocation8 + $0xf78] sm:$0xff]
    %v742 = vld [vmem:[#allocation8 + $0xf80] sm:$0xff]
    %v743 = vld [vmem:[#allocation8 + $0xf88] sm:$0xf]
    %v744 = vld [vmem:[#allocation8 + $0xf8c] sm:$0xff]
    %v745 = vld [vmem:[#allocation8 + $0xf94] sm:$0xff]
    %v746 = vld [vmem:[#allocation8 + $0xf9c] sm:$0xf]
    %v747 = vld [vmem:[#allocation8 + $0xfa0] sm:$0xff]
    %v748 = vld [vmem:[#allocation8 + $0xfa8] sm:$0xff]
    %v749 = vld [vmem:[#allocation8 + $0xfb0] sm:$0xf]
    %v750 = vld [vmem:[#allocation8 + $0xfb4] sm:$0xff]
    %v751 = vld [vmem:[#allocation8 + $0xfbc] sm:$0xff]
    %v752 = vld [vmem:[#allocation8 + $0xfc4] sm:$0xf]
    %v753 = vld [vmem:[#allocation8 + $0xfc8] sm:$0xff]
    %v754 = vld [vmem:[#allocation8 + $0xfd0] sm:$0xff]
    %v755 = vld [vmem:[#allocation8 + $0xfd8] sm:$0xf]
    %v756 = vld [vmem:[#allocation8 + $0xfdc] sm:$0xff]
    %v757 = vld [vmem:[#allocation8 + $0xfe4] sm:$0xff]
    %v758 = vld [vmem:[#allocation8 + $0xfec] sm:$0xf]
    %v759 = vld [vmem:[#allocation8 + $0xff0] sm:$0xff]
    %v760 = vld [vmem:[#allocation8 + $0xff8] sm:$0xff]
    %v761 = vld [vmem:[#allocation8 + $0x1000] sm:$0xf]
    %v762 = vld [vmem:[#allocation8 + $0x1004] sm:$0xff]
    %v763 = vld [vmem:[#allocation8 + $0x100c] sm:$0xff]
    %v764 = vld [vmem:[#allocation8 + $0x1014] sm:$0xf]
    %v765 = vld [vmem:[#allocation8 + $0x1018] sm:$0xff]
    %v766 = vld [vmem:[#allocation8 + $0x1020] sm:$0xff]
    %v767 = vld [vmem:[#allocation8 + $0x1028] sm:$0xf]
    %v768 = vld [vmem:[#allocation8 + $0x102c] sm:$0xff]
    %v769 = vld [vmem:[#allocation8 + $0x1034] sm:$0xff]
    %v770 = vld [vmem:[#allocation8 + $0x103c] sm:$0xf]
    %v771 = vld [vmem:[#allocation8 + $0x1040] sm:$0xff]
    %v772 = vld [vmem:[#allocation8 + $0x1048] sm:$0xff]
    %v773 = vld [vmem:[#allocation8 + $0x1050] sm:$0xf]
    %v774 = vld [vmem:[#allocation8 + $0x1054] sm:$0xff]
    %v775 = vld [vmem:[#allocation8 + $0x105c] sm:$0xff]
    %v776 = vld [vmem:[#allocation8 + $0x1064] sm:$0xf]
    %v777 = vld [vmem:[#allocation8 + $0x1068] sm:$0xff]
    %v778 = vld [vmem:[#allocation8 + $0x1070] sm:$0xff]
    %v779 = vld [vmem:[#allocation8 + $0x1078] sm:$0xf]
    %v780 = vld [vmem:[#allocation8 + $0x107c] sm:$0xff]
    %v781 = vld [vmem:[#allocation8 + $0x1084] sm:$0xff]
    %v782 = vld [vmem:[#allocation8 + $0x108c] sm:$0xf]
    %v783 = vld [vmem:[#allocation8 + $0x1090] sm:$0xff]
    %v784 = vld [vmem:[#allocation8 + $0x1098] sm:$0xff]
    %v785 = vld [vmem:[#allocation8 + $0x10a0] sm:$0xf]
    %v786 = vld [vmem:[#allocation8 + $0x10a4] sm:$0xff]
    %v787 = vld [vmem:[#allocation8 + $0x10ac] sm:$0xff]
    %v788 = vld [vmem:[#allocation8 + $0x10b4] sm:$0xf]
    %v789 = vld [vmem:[#allocation8 + $0x10b8] sm:$0xff]
    %v790 = vld [vmem:[#allocation8 + $0x10c0] sm:$0xff]
    %v791 = vld [vmem:[#allocation8 + $0x10c8] sm:$0xf]
    %v792 = vld [vmem:[#allocation8 + $0x10cc] sm:$0xff]
    %v793 = vld [vmem:[#allocation8 + $0x10d4] sm:$0xff]
    %v794 = vld [vmem:[#allocation8 + $0x10dc] sm:$0xf]
    %v795 = vld [vmem:[#allocation8 + $0x10e0] sm:$0xff]
    %v796 = vld [vmem:[#allocation8 + $0x10e8] sm:$0xff]
    %v797 = vld [vmem:[#allocation8 + $0x10f0] sm:$0xf]
    %v798 = vld [vmem:[#allocation8 + $0x10f4] sm:$0xff]
    %v799 = vld [vmem:[#allocation8 + $0x10fc] sm:$0xff]
    %v800 = vld [vmem:[#allocation8 + $0x1104] sm:$0xf]
    %v801 = vld [vmem:[#allocation8 + $0x1108] sm:$0xff]
    %v802 = vld [vmem:[#allocation8 + $0x1110] sm:$0xff]
    %v803 = vld [vmem:[#allocation8 + $0x1118] sm:$0xf]
    %v804 = vld [vmem:[#allocation8 + $0x111c] sm:$0xff]
    %v805 = vld [vmem:[#allocation8 + $0x1124] sm:$0xff]
    %v806 = vld [vmem:[#allocation8 + $0x112c] sm:$0xf]
    %v807 = vld [vmem:[#allocation8 + $0x1130] sm:$0xff]
    %v808 = vld [vmem:[#allocation8 + $0x1138] sm:$0xff]
    %v809 = vld [vmem:[#allocation8 + $0x1140] sm:$0xf]
    %v810 = vld [vmem:[#allocation8 + $0x1144] sm:$0xff]
    %v811 = vld [vmem:[#allocation8 + $0x114c] sm:$0xff]
    %v812 = vld [vmem:[#allocation8 + $0x1154] sm:$0xf]
    %v813 = vld [vmem:[#allocation8 + $0x1158] sm:$0xff]
    %v814 = vld [vmem:[#allocation8 + $0x1160] sm:$0xff]
    %v815 = vld [vmem:[#allocation8 + $0x1168] sm:$0xf]
    %v816 = vld [vmem:[#allocation8 + $0x116c] sm:$0xff]
    %v817 = vld [vmem:[#allocation8 + $0x1174] sm:$0xff]
    %v818 = vld [vmem:[#allocation8 + $0x117c] sm:$0xf]
    %v819 = vld [vmem:[#allocation8 + $0x1180] sm:$0xff]
    %v820 = vld [vmem:[#allocation8 + $0x1188] sm:$0xff]
    %v821 = vld [vmem:[#allocation8 + $0x1190] sm:$0xf]
    %v822 = vld [vmem:[#allocation8 + $0x1194] sm:$0xff]
    %v823 = vld [vmem:[#allocation8 + $0x119c] sm:$0xff]
    %v824 = vld [vmem:[#allocation8 + $0x11a4] sm:$0xf]
    %v825 = vld [vmem:[#allocation8 + $0x11a8] sm:$0xff]
    %v826 = vld [vmem:[#allocation8 + $0x11b0] sm:$0xff]
    %v827 = vld [vmem:[#allocation8 + $0x11b8] sm:$0xf]
    %v828 = vld [vmem:[#allocation8 + $0x11bc] sm:$0xff]
    %v829 = vld [vmem:[#allocation8 + $0x11c4] sm:$0xff]
    %v830 = vld [vmem:[#allocation8 + $0x11cc] sm:$0xf]
    %v831 = vld [vmem:[#allocation8 + $0x11d0] sm:$0xff]
    %v832 = vld [vmem:[#allocation8 + $0x11d8] sm:$0xff]
    %v833 = vld [vmem:[#allocation8 + $0x11e0] sm:$0xf]
    %v834 = vld [vmem:[#allocation8 + $0x11e4] sm:$0xff]
    %v835 = vld [vmem:[#allocation8 + $0x11ec] sm:$0xff]
    %v836 = vld [vmem:[#allocation8 + $0x11f4] sm:$0xf]
    %v837 = vld [vmem:[#allocation8 + $0x11f8] sm:$0xff]
    %v838 = vld [vmem:[#allocation8 + $0x1200] sm:$0xff]
    %v839 = vld [vmem:[#allocation8 + $0x1208] sm:$0xf]
    %v840 = vld [vmem:[#allocation8 + $0x120c] sm:$0xff]
    %v841 = vld [vmem:[#allocation8 + $0x1214] sm:$0xff]
    %v842 = vld [vmem:[#allocation8 + $0x121c] sm:$0xf]
    %v843 = vld [vmem:[#allocation8 + $0x1220] sm:$0xff]
    %v844 = vld [vmem:[#allocation8 + $0x1228] sm:$0xff]
    %v845 = vld [vmem:[#allocation8 + $0x1230] sm:$0xf]
    %v846 = vld [vmem:[#allocation8 + $0x1234] sm:$0xff]
    %v847 = vld [vmem:[#allocation8 + $0x123c] sm:$0xff]
    %v848 = vld [vmem:[#allocation8 + $0x1244] sm:$0xf]
    %v849 = vld [vmem:[#allocation8 + $0x1248] sm:$0xff]
    %v850 = vld [vmem:[#allocation8 + $0x1250] sm:$0xff]
    %v851 = vld [vmem:[#allocation8 + $0x1258] sm:$0xf]
    %v852 = vld [vmem:[#allocation8 + $0x125c] sm:$0xff]
    %v853 = vld [vmem:[#allocation8 + $0x1264] sm:$0xff]
    %v854 = vld [vmem:[#allocation8 + $0x126c] sm:$0xf]
    %v855 = vld [vmem:[#allocation8 + $0x1270] sm:$0xff]
    %v856 = vld [vmem:[#allocation8 + $0x1278] sm:$0xff]
    %v857 = vld [vmem:[#allocation8 + $0x1280] sm:$0xf]
    %v858 = vld [vmem:[#allocation8 + $0x1284] sm:$0xff]
    %v859 = vld [vmem:[#allocation8 + $0x128c] sm:$0xff]
    %v860 = vld [vmem:[#allocation8 + $0x1294] sm:$0xf]
    %v861 = vld [vmem:[#allocation8 + $0x1298] sm:$0xff]
    %v862 = vld [vmem:[#allocation8 + $0x12a0] sm:$0xff]
    %v863 = vld [vmem:[#allocation8 + $0x12a8] sm:$0xf]
    %v864 = vld [vmem:[#allocation8 + $0x12ac] sm:$0xff]
    %v865 = vld [vmem:[#allocation8 + $0x12b4] sm:$0xff]
    %v866 = vld [vmem:[#allocation8 + $0x12bc] sm:$0xf]
    %v867 = vld [vmem:[#allocation8 + $0x12c0] sm:$0xff]
    %v868 = vld [vmem:[#allocation8 + $0x12c8] sm:$0xff]
    %v869 = vld [vmem:[#allocation8 + $0x12d0] sm:$0xf]
    %v870 = vld [vmem:[#allocation8 + $0x12d4] sm:$0xff]
    %v871 = vld [vmem:[#allocation8 + $0x12dc] sm:$0xff]
    %v872 = vld [vmem:[#allocation8 + $0x12e4] sm:$0xf]
    %v873 = vld [vmem:[#allocation8 + $0x12e8] sm:$0xff]
    %v874 = vld [vmem:[#allocation8 + $0x12f0] sm:$0xff]
    %v875 = vld [vmem:[#allocation8 + $0x12f8] sm:$0xf]
    %v876 = vld [vmem:[#allocation8 + $0x12fc] sm:$0xff]
    %v877 = vld [vmem:[#allocation8 + $0x1304] sm:$0xff]
    %v878 = vld [vmem:[#allocation8 + $0x130c] sm:$0xf]
    %v879 = vld [vmem:[#allocation8 + $0x1310] sm:$0xff]
    %v880 = vld [vmem:[#allocation8 + $0x1318] sm:$0xff]
    %v881 = vld [vmem:[#allocation8 + $0x1320] sm:$0xf]
    %v882 = vld [vmem:[#allocation8 + $0x1324] sm:$0xff]
    %v883 = vld [vmem:[#allocation8 + $0x132c] sm:$0xff]
    %v884 = vld [vmem:[#allocation8 + $0x1334] sm:$0xf]
    %v885 = vld [vmem:[#allocation8 + $0x1338] sm:$0xff]
    %v886 = vld [vmem:[#allocation8 + $0x1340] sm:$0xff]
    %v887 = vld [vmem:[#allocation8 + $0x1348] sm:$0xf]
    %v888 = vld [vmem:[#allocation8 + $0x134c] sm:$0xff]
    %v889 = vld [vmem:[#allocation8 + $0x1354] sm:$0xff]
    %v890 = vld [vmem:[#allocation8 + $0x135c] sm:$0xf]
    %v891 = vld [vmem:[#allocation8 + $0x1360] sm:$0xff]
    %v892 = vld [vmem:[#allocation8 + $0x1368] sm:$0xff]
    %v893 = vld [vmem:[#allocation8 + $0x1370] sm:$0xf]
    %v894 = vld [vmem:[#allocation8 + $0x1374] sm:$0xff]
    %v895 = vld [vmem:[#allocation8 + $0x137c] sm:$0xff]
    %v896 = vld [vmem:[#allocation8 + $0x1384] sm:$0xf]
    %v897 = vld [vmem:[#allocation8 + $0x1388] sm:$0xff]
    %v898 = vld [vmem:[#allocation8 + $0x1390] sm:$0xff]
    %v899 = vld [vmem:[#allocation8 + $0x1398] sm:$0xf]
    %v900 = vld [vmem:[#allocation8 + $0x139c] sm:$0xff]
    %v901 = vld [vmem:[#allocation8 + $0x13a4] sm:$0xff]
    %v902 = vld [vmem:[#allocation8 + $0x13ac] sm:$0xf]
    %v903 = vld [vmem:[#allocation8 + $0x13b0] sm:$0xff]
    %v904 = vld [vmem:[#allocation8 + $0x13b8] sm:$0xff]
    %v905 = vld [vmem:[#allocation8 + $0x13c0] sm:$0xf]
    %v906 = vld [vmem:[#allocation8 + $0x13c4] sm:$0xff]
    %v907 = vld [vmem:[#allocation8 + $0x13cc] sm:$0xff]
    %v908 = vld [vmem:[#allocation8 + $0x13d4] sm:$0xf]
    %v909 = vld [vmem:[#allocation8 + $0x13d8] sm:$0xff]
    %v910 = vld [vmem:[#allocation8 + $0x13e0] sm:$0xff]
    %v911 = vld [vmem:[#allocation8 + $0x13e8] sm:$0xf]
    %v912 = vld [vmem:[#allocation8 + $0x13ec] sm:$0xff]
    %v913 = vld [vmem:[#allocation8 + $0x13f4] sm:$0xff]
    %v914 = vld [vmem:[#allocation8 + $0x13fc] sm:$0xf]
    %v915 = vld [vmem:[#allocation8 + $0x1400] sm:$0xff]
    %v916 = vld [vmem:[#allocation8 + $0x1408] sm:$0xff]
    %v917 = vld [vmem:[#allocation8 + $0x1410] sm:$0xf]
    %v918 = vld [vmem:[#allocation8 + $0x1414] sm:$0xff]
    %v919 = vld [vmem:[#allocation8 + $0x141c] sm:$0xff]
    %v920 = vld [vmem:[#allocation8 + $0x1424] sm:$0xf]
    %v921 = vld [vmem:[#allocation8 + $0x1428] sm:$0xff]
    %v922 = vld [vmem:[#allocation8 + $0x1430] sm:$0xff]
    %v923 = vld [vmem:[#allocation8 + $0x1438] sm:$0xf]
    %v924 = vld [vmem:[#allocation8 + $0x143c] sm:$0xff]
    %v925 = vld [vmem:[#allocation8 + $0x1444] sm:$0xff]
    %v926 = vld [vmem:[#allocation8 + $0x144c] sm:$0xf]
    %v927 = vld [vmem:[#allocation8 + $0x1450] sm:$0xff]
    %v928 = vld [vmem:[#allocation8 + $0x1458] sm:$0xff]
    %v929 = vld [vmem:[#allocation8 + $0x1460] sm:$0xf]
    %v930 = vld [vmem:[#allocation8 + $0x1464] sm:$0xff]
    %v931 = vld [vmem:[#allocation8 + $0x146c] sm:$0xff]
    %v932 = vld [vmem:[#allocation8 + $0x1474] sm:$0xf]
    %v933 = vld [vmem:[#allocation8 + $0x1478] sm:$0xff]
    %v934 = vld [vmem:[#allocation8 + $0x1480] sm:$0xff]
    %v935 = vld [vmem:[#allocation8 + $0x1488] sm:$0xf]
    %v936 = vld [vmem:[#allocation8 + $0x148c] sm:$0xff]
    %v937 = vld [vmem:[#allocation8 + $0x1494] sm:$0xff]
    %v938 = vld [vmem:[#allocation8 + $0x149c] sm:$0xf]
    %v939 = vld [vmem:[#allocation8 + $0x14a0] sm:$0xff]
    %v940 = vld [vmem:[#allocation8 + $0x14a8] sm:$0xff]
    %v941 = vld [vmem:[#allocation8 + $0x14b0] sm:$0xf]
    %v942 = vld [vmem:[#allocation8 + $0x14b4] sm:$0xff]
    %v943 = vld [vmem:[#allocation8 + $0x14bc] sm:$0xff]
    %v944 = vld [vmem:[#allocation8 + $0x14c4] sm:$0xf]
    %v945 = vld [vmem:[#allocation8 + $0x14c8] sm:$0xff]
    %v946 = vld [vmem:[#allocation8 + $0x14d0] sm:$0xff]
    %v947 = vld [vmem:[#allocation8 + $0x14d8] sm:$0xf]
    %v948 = vld [vmem:[#allocation8 + $0x14dc] sm:$0xff]
    %v949 = vld [vmem:[#allocation8 + $0x14e4] sm:$0xff]
    %v950 = vld [vmem:[#allocation8 + $0x14ec] sm:$0xf]
    %v951 = vld [vmem:[#allocation8 + $0x14f0] sm:$0xff]
    %v952 = vld [vmem:[#allocation8 + $0x14f8] sm:$0xff]
    %v953 = vld [vmem:[#allocation8 + $0x1500] sm:$0xf]
    %v954 = vld [vmem:[#allocation8 + $0x1504] sm:$0xff]
    %v955 = vld [vmem:[#allocation8 + $0x150c] sm:$0xff]
    %v956 = vld [vmem:[#allocation8 + $0x1514] sm:$0xf]
    %v957 = vld [vmem:[#allocation8 + $0x1518] sm:$0xff]
    %v958 = vld [vmem:[#allocation8 + $0x1520] sm:$0xff]
    %v959 = vld [vmem:[#allocation8 + $0x1528] sm:$0xf]
    %v960 = vld [vmem:[#allocation8 + $0x152c] sm:$0xff]
    %v961 = vld [vmem:[#allocation8 + $0x1534] sm:$0xff]
    %v962 = vld [vmem:[#allocation8 + $0x153c] sm:$0xf]
    %v1251 = vunpack.c.l.b16 %v675
    %v1252 = vunpack.c.h.b16 %v675
    %v1253 = vunpack.c.l.b16 %v676
    %v1254 = vunpack.c.h.b16 %v676
    %v1255 = vunpack.c.l.b16 %v677
    %v1256 = vunpack.c.l.b16 %v678
    %v1257 = vunpack.c.h.b16 %v678
    %v1258 = vunpack.c.l.b16 %v679
    %v1259 = vunpack.c.h.b16 %v679
    %v1260 = vunpack.c.l.b16 %v680
    %v1261 = vunpack.c.l.b16 %v681
    %v1262 = vunpack.c.h.b16 %v681
    %v1263 = vunpack.c.l.b16 %v682
    %v1264 = vunpack.c.h.b16 %v682
    %v1265 = vunpack.c.l.b16 %v683
    %v1266 = vunpack.c.l.b16 %v684
    %v1267 = vunpack.c.h.b16 %v684
    %v1268 = vunpack.c.l.b16 %v685
    %v1269 = vunpack.c.h.b16 %v685
    %v1270 = vunpack.c.l.b16 %v686
    %v1271 = vunpack.c.l.b16 %v687
    %v1272 = vunpack.c.h.b16 %v687
    %v1273 = vunpack.c.l.b16 %v688
    %v1274 = vunpack.c.h.b16 %v688
    %v1275 = vunpack.c.l.b16 %v689
    %v1276 = vunpack.c.l.b16 %v690
    %v1277 = vunpack.c.h.b16 %v690
    %v1278 = vunpack.c.l.b16 %v691
    %v1279 = vunpack.c.h.b16 %v691
    %v1280 = vunpack.c.l.b16 %v692
    %v1281 = vunpack.c.l.b16 %v693
    %v1282 = vunpack.c.h.b16 %v693
    %v1283 = vunpack.c.l.b16 %v694
    %v1284 = vunpack.c.h.b16 %v694
    %v1285 = vunpack.c.l.b16 %v695
    %v1286 = vunpack.c.l.b16 %v696
    %v1287 = vunpack.c.h.b16 %v696
    %v1288 = vunpack.c.l.b16 %v697
    %v1289 = vunpack.c.h.b16 %v697
    %v1290 = vunpack.c.l.b16 %v698
    %v1291 = vunpack.c.l.b16 %v699
    %v1292 = vunpack.c.h.b16 %v699
    %v1293 = vunpack.c.l.b16 %v700
    %v1294 = vunpack.c.h.b16 %v700
    %v1295 = vunpack.c.l.b16 %v701
    %v1296 = vunpack.c.l.b16 %v702
    %v1297 = vunpack.c.h.b16 %v702
    %v1298 = vunpack.c.l.b16 %v703
    %v1299 = vunpack.c.h.b16 %v703
    %v1300 = vunpack.c.l.b16 %v704
    %v1301 = vunpack.c.l.b16 %v705
    %v1302 = vunpack.c.h.b16 %v705
    %v1303 = vunpack.c.l.b16 %v706
    %v1304 = vunpack.c.h.b16 %v706
    %v1305 = vunpack.c.l.b16 %v707
    %v1306 = vunpack.c.l.b16 %v708
    %v1307 = vunpack.c.h.b16 %v708
    %v1308 = vunpack.c.l.b16 %v709
    %v1309 = vunpack.c.h.b16 %v709
    %v1310 = vunpack.c.l.b16 %v710
    %v1311 = vunpack.c.l.b16 %v711
    %v1312 = vunpack.c.h.b16 %v711
    %v1313 = vunpack.c.l.b16 %v712
    %v1314 = vunpack.c.h.b16 %v712
    %v1315 = vunpack.c.l.b16 %v713
    %v1316 = vunpack.c.l.b16 %v714
    %v1317 = vunpack.c.h.b16 %v714
    %v1318 = vunpack.c.l.b16 %v715
    %v1319 = vunpack.c.h.b16 %v715
    %v1320 = vunpack.c.l.b16 %v716
    %v1321 = vunpack.c.l.b16 %v717
    %v1322 = vunpack.c.h.b16 %v717
    %v1323 = vunpack.c.l.b16 %v718
    %v1324 = vunpack.c.h.b16 %v718
    %v1325 = vunpack.c.l.b16 %v719
    %v1326 = vunpack.c.l.b16 %v720
    %v1327 = vunpack.c.h.b16 %v720
    %v1328 = vunpack.c.l.b16 %v721
    %v1329 = vunpack.c.h.b16 %v721
    %v1330 = vunpack.c.l.b16 %v722
    %v1331 = vunpack.c.l.b16 %v723
    %v1332 = vunpack.c.h.b16 %v723
    %v1333 = vunpack.c.l.b16 %v724
    %v1334 = vunpack.c.h.b16 %v724
    %v1335 = vunpack.c.l.b16 %v725
    %v1336 = vunpack.c.l.b16 %v726
    %v1337 = vunpack.c.h.b16 %v726
    %v1338 = vunpack.c.l.b16 %v727
    %v1339 = vunpack.c.h.b16 %v727
    %v1340 = vunpack.c.l.b16 %v728
    %v1341 = vunpack.c.l.b16 %v729
    %v1342 = vunpack.c.h.b16 %v729
    %v1343 = vunpack.c.l.b16 %v730
    %v1344 = vunpack.c.h.b16 %v730
    %v1345 = vunpack.c.l.b16 %v731
    %v1346 = vunpack.c.l.b16 %v732
    %v1347 = vunpack.c.h.b16 %v732
    %v1348 = vunpack.c.l.b16 %v733
    %v1349 = vunpack.c.h.b16 %v733
    %v1350 = vunpack.c.l.b16 %v734
    %v1351 = vunpack.c.l.b16 %v735
    %v1352 = vunpack.c.h.b16 %v735
    %v1353 = vunpack.c.l.b16 %v736
    %v1354 = vunpack.c.h.b16 %v736
    %v1355 = vunpack.c.l.b16 %v737
    %v1356 = vunpack.c.l.b16 %v738
    %v1357 = vunpack.c.h.b16 %v738
    %v1358 = vunpack.c.l.b16 %v739
    %v1359 = vunpack.c.h.b16 %v739
    %v1360 = vunpack.c.l.b16 %v740
    %v1361 = vunpack.c.l.b16 %v741
    %v1362 = vunpack.c.h.b16 %v741
    %v1363 = vunpack.c.l.b16 %v742
    %v1364 = vunpack.c.h.b16 %v742
    %v1365 = vunpack.c.l.b16 %v743
    %v1366 = vunpack.c.l.b16 %v744
    %v1367 = vunpack.c.h.b16 %v744
    %v1368 = vunpack.c.l.b16 %v745
    %v1369 = vunpack.c.h.b16 %v745
    %v1370 = vunpack.c.l.b16 %v746
    %v1371 = vunpack.c.l.b16 %v747
    %v1372 = vunpack.c.h.b16 %v747
    %v1373 = vunpack.c.l.b16 %v748
    %v1374 = vunpack.c.h.b16 %v748
    %v1375 = vunpack.c.l.b16 %v749
    %v1376 = vunpack.c.l.b16 %v750
    %v1377 = vunpack.c.h.b16 %v750
    %v1378 = vunpack.c.l.b16 %v751
    %v1379 = vunpack.c.h.b16 %v751
    %v1380 = vunpack.c.l.b16 %v752
    %v1381 = vunpack.c.l.b16 %v753
    %v1382 = vunpack.c.h.b16 %v753
    %v1383 = vunpack.c.l.b16 %v754
    %v1384 = vunpack.c.h.b16 %v754
    %v1385 = vunpack.c.l.b16 %v755
    %v1386 = vunpack.c.l.b16 %v756
    %v1387 = vunpack.c.h.b16 %v756
    %v1388 = vunpack.c.l.b16 %v757
    %v1389 = vunpack.c.h.b16 %v757
    %v1390 = vunpack.c.l.b16 %v758
    %v1391 = vunpack.c.l.b16 %v759
    %v1392 = vunpack.c.h.b16 %v759
    %v1393 = vunpack.c.l.b16 %v760
    %v1394 = vunpack.c.h.b16 %v760
    %v1395 = vunpack.c.l.b16 %v761
    %v1396 = vunpack.c.l.b16 %v762
    %v1397 = vunpack.c.h.b16 %v762
    %v1398 = vunpack.c.l.b16 %v763
    %v1399 = vunpack.c.h.b16 %v763
    %v1400 = vunpack.c.l.b16 %v764
    %v1401 = vunpack.c.l.b16 %v765
    %v1402 = vunpack.c.h.b16 %v765
    %v1403 = vunpack.c.l.b16 %v766
    %v1404 = vunpack.c.h.b16 %v766
    %v1405 = vunpack.c.l.b16 %v767
    %v1406 = vunpack.c.l.b16 %v768
    %v1407 = vunpack.c.h.b16 %v768
    %v1408 = vunpack.c.l.b16 %v769
    %v1409 = vunpack.c.h.b16 %v769
    %v1410 = vunpack.c.l.b16 %v770
    %v1411 = vunpack.c.l.b16 %v771
    %v1412 = vunpack.c.h.b16 %v771
    %v1413 = vunpack.c.l.b16 %v772
    %v1414 = vunpack.c.h.b16 %v772
    %v1415 = vunpack.c.l.b16 %v773
    %v1416 = vunpack.c.l.b16 %v774
    %v1417 = vunpack.c.h.b16 %v774
    %v1418 = vunpack.c.l.b16 %v775
    %v1419 = vunpack.c.h.b16 %v775
    %v1420 = vunpack.c.l.b16 %v776
    %v1421 = vunpack.c.l.b16 %v777
    %v1422 = vunpack.c.h.b16 %v777
    %v1423 = vunpack.c.l.b16 %v778
    %v1424 = vunpack.c.h.b16 %v778
    %v1425 = vunpack.c.l.b16 %v779
    %v1426 = vunpack.c.l.b16 %v780
    %v1427 = vunpack.c.h.b16 %v780
    %v1428 = vunpack.c.l.b16 %v781
    %v1429 = vunpack.c.h.b16 %v781
    %v1430 = vunpack.c.l.b16 %v782
    %v1431 = vunpack.c.l.b16 %v783
    %v1432 = vunpack.c.h.b16 %v783
    %v1433 = vunpack.c.l.b16 %v784
    %v1434 = vunpack.c.h.b16 %v784
    %v1435 = vunpack.c.l.b16 %v785
    %v1436 = vunpack.c.l.b16 %v786
    %v1437 = vunpack.c.h.b16 %v786
    %v1438 = vunpack.c.l.b16 %v787
    %v1439 = vunpack.c.h.b16 %v787
    %v1440 = vunpack.c.l.b16 %v788
    %v1441 = vunpack.c.l.b16 %v789
    %v1442 = vunpack.c.h.b16 %v789
    %v1443 = vunpack.c.l.b16 %v790
    %v1444 = vunpack.c.h.b16 %v790
    %v1445 = vunpack.c.l.b16 %v791
    %v1446 = vunpack.c.l.b16 %v792
    %v1447 = vunpack.c.h.b16 %v792
    %v1448 = vunpack.c.l.b16 %v793
    %v1449 = vunpack.c.h.b16 %v793
    %v1450 = vunpack.c.l.b16 %v794
    %v1451 = vunpack.c.l.b16 %v795
    %v1452 = vunpack.c.h.b16 %v795
    %v1453 = vunpack.c.l.b16 %v796
    %v1454 = vunpack.c.h.b16 %v796
    %v1455 = vunpack.c.l.b16 %v797
    %v1456 = vunpack.c.l.b16 %v798
    %v1457 = vunpack.c.h.b16 %v798
    %v1458 = vunpack.c.l.b16 %v799
    %v1459 = vunpack.c.h.b16 %v799
    %v1460 = vunpack.c.l.b16 %v800
    %v1461 = vunpack.c.l.b16 %v801
    %v1462 = vunpack.c.h.b16 %v801
    %v1463 = vunpack.c.l.b16 %v802
    %v1464 = vunpack.c.h.b16 %v802
    %v1465 = vunpack.c.l.b16 %v803
    %v1466 = vunpack.c.l.b16 %v804
    %v1467 = vunpack.c.h.b16 %v804
    %v1468 = vunpack.c.l.b16 %v805
    %v1469 = vunpack.c.h.b16 %v805
    %v1470 = vunpack.c.l.b16 %v806
    %v1471 = vunpack.c.l.b16 %v807
    %v1472 = vunpack.c.h.b16 %v807
    %v1473 = vunpack.c.l.b16 %v808
    %v1474 = vunpack.c.h.b16 %v808
    %v1475 = vunpack.c.l.b16 %v809
    %v1476 = vunpack.c.l.b16 %v810
    %v1477 = vunpack.c.h.b16 %v810
    %v1478 = vunpack.c.l.b16 %v811
    %v1479 = vunpack.c.h.b16 %v811
    %v1480 = vunpack.c.l.b16 %v812
    %v1481 = vunpack.c.l.b16 %v813
    %v1482 = vunpack.c.h.b16 %v813
    %v1483 = vunpack.c.l.b16 %v814
    %v1484 = vunpack.c.h.b16 %v814
    %v1485 = vunpack.c.l.b16 %v815
    %v1486 = vunpack.c.l.b16 %v816
    %v1487 = vunpack.c.h.b16 %v816
    %v1488 = vunpack.c.l.b16 %v817
    %v1489 = vunpack.c.h.b16 %v817
    %v1490 = vunpack.c.l.b16 %v818
    %v1491 = vunpack.c.l.b16 %v819
    %v1492 = vunpack.c.h.b16 %v819
    %v1493 = vunpack.c.l.b16 %v820
    %v1494 = vunpack.c.h.b16 %v820
    %v1495 = vunpack.c.l.b16 %v821
    %v1496 = vunpack.c.l.b16 %v822
    %v1497 = vunpack.c.h.b16 %v822
    %v1498 = vunpack.c.l.b16 %v823
    %v1499 = vunpack.c.h.b16 %v823
    %v1500 = vunpack.c.l.b16 %v824
    %v1501 = vunpack.c.l.b16 %v825
    %v1502 = vunpack.c.h.b16 %v825
    %v1503 = vunpack.c.l.b16 %v826
    %v1504 = vunpack.c.h.b16 %v826
    %v1505 = vunpack.c.l.b16 %v827
    %v1506 = vunpack.c.l.b16 %v828
    %v1507 = vunpack.c.h.b16 %v828
    %v1508 = vunpack.c.l.b16 %v829
    %v1509 = vunpack.c.h.b16 %v829
    %v1510 = vunpack.c.l.b16 %v830
    %v1511 = vunpack.c.l.b16 %v831
    %v1512 = vunpack.c.h.b16 %v831
    %v1513 = vunpack.c.l.b16 %v832
    %v1514 = vunpack.c.h.b16 %v832
    %v1515 = vunpack.c.l.b16 %v833
    %v1516 = vunpack.c.l.b16 %v834
    %v1517 = vunpack.c.h.b16 %v834
    %v1518 = vunpack.c.l.b16 %v835
    %v1519 = vunpack.c.h.b16 %v835
    %v1520 = vunpack.c.l.b16 %v836
    %v1521 = vunpack.c.l.b16 %v837
    %v1522 = vunpack.c.h.b16 %v837
    %v1523 = vunpack.c.l.b16 %v838
    %v1524 = vunpack.c.h.b16 %v838
    %v1525 = vunpack.c.l.b16 %v839
    %v1526 = vunpack.c.l.b16 %v840
    %v1527 = vunpack.c.h.b16 %v840
    %v1528 = vunpack.c.l.b16 %v841
    %v1529 = vunpack.c.h.b16 %v841
    %v1530 = vunpack.c.l.b16 %v842
    %v1531 = vunpack.c.l.b16 %v843
    %v1532 = vunpack.c.h.b16 %v843
    %v1533 = vunpack.c.l.b16 %v844
    %v1534 = vunpack.c.h.b16 %v844
    %v1535 = vunpack.c.l.b16 %v845
    %v1536 = vunpack.c.l.b16 %v846
    %v1537 = vunpack.c.h.b16 %v846
    %v1538 = vunpack.c.l.b16 %v847
    %v1539 = vunpack.c.h.b16 %v847
    %v1540 = vunpack.c.l.b16 %v848
    %v1541 = vunpack.c.l.b16 %v849
    %v1542 = vunpack.c.h.b16 %v849
    %v1543 = vunpack.c.l.b16 %v850
    %v1544 = vunpack.c.h.b16 %v850
    %v1545 = vunpack.c.l.b16 %v851
    %v1546 = vunpack.c.l.b16 %v852
    %v1547 = vunpack.c.h.b16 %v852
    %v1548 = vunpack.c.l.b16 %v853
    %v1549 = vunpack.c.h.b16 %v853
    %v1550 = vunpack.c.l.b16 %v854
    %v1551 = vunpack.c.l.b16 %v855
    %v1552 = vunpack.c.h.b16 %v855
    %v1553 = vunpack.c.l.b16 %v856
    %v1554 = vunpack.c.h.b16 %v856
    %v1555 = vunpack.c.l.b16 %v857
    %v1556 = vunpack.c.l.b16 %v858
    %v1557 = vunpack.c.h.b16 %v858
    %v1558 = vunpack.c.l.b16 %v859
    %v1559 = vunpack.c.h.b16 %v859
    %v1560 = vunpack.c.l.b16 %v860
    %v1561 = vunpack.c.l.b16 %v861
    %v1562 = vunpack.c.h.b16 %v861
    %v1563 = vunpack.c.l.b16 %v862
    %v1564 = vunpack.c.h.b16 %v862
    %v1565 = vunpack.c.l.b16 %v863
    %v1566 = vunpack.c.l.b16 %v864
    %v1567 = vunpack.c.h.b16 %v864
    %v1568 = vunpack.c.l.b16 %v865
    %v1569 = vunpack.c.h.b16 %v865
    %v1570 = vunpack.c.l.b16 %v866
    %v1571 = vunpack.c.l.b16 %v867
    %v1572 = vunpack.c.h.b16 %v867
    %v1573 = vunpack.c.l.b16 %v868
    %v1574 = vunpack.c.h.b16 %v868
    %v1575 = vunpack.c.l.b16 %v869
    %v1576 = vunpack.c.l.b16 %v870
    %v1577 = vunpack.c.h.b16 %v870
    %v1578 = vunpack.c.l.b16 %v871
    %v1579 = vunpack.c.h.b16 %v871
    %v1580 = vunpack.c.l.b16 %v872
    %v1581 = vunpack.c.l.b16 %v873
    %v1582 = vunpack.c.h.b16 %v873
    %v1583 = vunpack.c.l.b16 %v874
    %v1584 = vunpack.c.h.b16 %v874
    %v1585 = vunpack.c.l.b16 %v875
    %v1586 = vunpack.c.l.b16 %v876
    %v1587 = vunpack.c.h.b16 %v876
    %v1588 = vunpack.c.l.b16 %v877
    %v1589 = vunpack.c.h.b16 %v877
    %v1590 = vunpack.c.l.b16 %v878
    %v1591 = vunpack.c.l.b16 %v879
    %v1592 = vunpack.c.h.b16 %v879
    %v1593 = vunpack.c.l.b16 %v880
    %v1594 = vunpack.c.h.b16 %v880
    %v1595 = vunpack.c.l.b16 %v881
    %v1596 = vunpack.c.l.b16 %v882
    %v1597 = vunpack.c.h.b16 %v882
    %v1598 = vunpack.c.l.b16 %v883
    %v1599 = vunpack.c.h.b16 %v883
    %v1600 = vunpack.c.l.b16 %v884
    %v1601 = vunpack.c.l.b16 %v885
    %v1602 = vunpack.c.h.b16 %v885
    %v1603 = vunpack.c.l.b16 %v886
    %v1604 = vunpack.c.h.b16 %v886
    %v1605 = vunpack.c.l.b16 %v887
    %v1606 = vunpack.c.l.b16 %v888
    %v1607 = vunpack.c.h.b16 %v888
    %v1608 = vunpack.c.l.b16 %v889
    %v1609 = vunpack.c.h.b16 %v889
    %v1610 = vunpack.c.l.b16 %v890
    %v1611 = vunpack.c.l.b16 %v891
    %v1612 = vunpack.c.h.b16 %v891
    %v1613 = vunpack.c.l.b16 %v892
    %v1614 = vunpack.c.h.b16 %v892
    %v1615 = vunpack.c.l.b16 %v893
    %v1616 = vunpack.c.l.b16 %v894
    %v1617 = vunpack.c.h.b16 %v894
    %v1618 = vunpack.c.l.b16 %v895
    %v1619 = vunpack.c.h.b16 %v895
    %v1620 = vunpack.c.l.b16 %v896
    %v1621 = vunpack.c.l.b16 %v897
    %v1622 = vunpack.c.h.b16 %v897
    %v1623 = vunpack.c.l.b16 %v898
    %v1624 = vunpack.c.h.b16 %v898
    %v1625 = vunpack.c.l.b16 %v899
    %v1626 = vunpack.c.l.b16 %v900
    %v1627 = vunpack.c.h.b16 %v900
    %v1628 = vunpack.c.l.b16 %v901
    %v1629 = vunpack.c.h.b16 %v901
    %v1630 = vunpack.c.l.b16 %v902
    %v1631 = vunpack.c.l.b16 %v903
    %v1632 = vunpack.c.h.b16 %v903
    %v1633 = vunpack.c.l.b16 %v904
    %v1634 = vunpack.c.h.b16 %v904
    %v1635 = vunpack.c.l.b16 %v905
    %v1636 = vunpack.c.l.b16 %v906
    %v1637 = vunpack.c.h.b16 %v906
    %v1638 = vunpack.c.l.b16 %v907
    %v1639 = vunpack.c.h.b16 %v907
    %v1640 = vunpack.c.l.b16 %v908
    %v1641 = vunpack.c.l.b16 %v909
    %v1642 = vunpack.c.h.b16 %v909
    %v1643 = vunpack.c.l.b16 %v910
    %v1644 = vunpack.c.h.b16 %v910
    %v1645 = vunpack.c.l.b16 %v911
    %v1646 = vunpack.c.l.b16 %v912
    %v1647 = vunpack.c.h.b16 %v912
    %v1648 = vunpack.c.l.b16 %v913
    %v1649 = vunpack.c.h.b16 %v913
    %v1650 = vunpack.c.l.b16 %v914
    %v1651 = vunpack.c.l.b16 %v915
    %v1652 = vunpack.c.h.b16 %v915
    %v1653 = vunpack.c.l.b16 %v916
    %v1654 = vunpack.c.h.b16 %v916
    %v1655 = vunpack.c.l.b16 %v917
    %v1656 = vunpack.c.l.b16 %v918
    %v1657 = vunpack.c.h.b16 %v918
    %v1658 = vunpack.c.l.b16 %v919
    %v1659 = vunpack.c.h.b16 %v919
    %v1660 = vunpack.c.l.b16 %v920
    %v1661 = vunpack.c.l.b16 %v921
    %v1662 = vunpack.c.h.b16 %v921
    %v1663 = vunpack.c.l.b16 %v922
    %v1664 = vunpack.c.h.b16 %v922
    %v1665 = vunpack.c.l.b16 %v923
    %v1666 = vunpack.c.l.b16 %v924
    %v1667 = vunpack.c.h.b16 %v924
    %v1668 = vunpack.c.l.b16 %v925
    %v1669 = vunpack.c.h.b16 %v925
    %v1670 = vunpack.c.l.b16 %v926
    %v1671 = vunpack.c.l.b16 %v927
    %v1672 = vunpack.c.h.b16 %v927
    %v1673 = vunpack.c.l.b16 %v928
    %v1674 = vunpack.c.h.b16 %v928
    %v1675 = vunpack.c.l.b16 %v929
    %v1676 = vunpack.c.l.b16 %v930
    %v1677 = vunpack.c.h.b16 %v930
    %v1678 = vunpack.c.l.b16 %v931
    %v1679 = vunpack.c.h.b16 %v931
    %v1680 = vunpack.c.l.b16 %v932
    %v1681 = vunpack.c.l.b16 %v933
    %v1682 = vunpack.c.h.b16 %v933
    %v1683 = vunpack.c.l.b16 %v934
    %v1684 = vunpack.c.h.b16 %v934
    %v1685 = vunpack.c.l.b16 %v935
    %v1686 = vunpack.c.l.b16 %v936
    %v1687 = vunpack.c.h.b16 %v936
    %v1688 = vunpack.c.l.b16 %v937
    %v1689 = vunpack.c.h.b16 %v937
    %v1690 = vunpack.c.l.b16 %v938
    %v1691 = vunpack.c.l.b16 %v939
    %v1692 = vunpack.c.h.b16 %v939
    %v1693 = vunpack.c.l.b16 %v940
    %v1694 = vunpack.c.h.b16 %v940
    %v1695 = vunpack.c.l.b16 %v941
    %v1696 = vunpack.c.l.b16 %v942
    %v1697 = vunpack.c.h.b16 %v942
    %v1698 = vunpack.c.l.b16 %v943
    %v1699 = vunpack.c.h.b16 %v943
    %v1700 = vunpack.c.l.b16 %v944
    %v1701 = vunpack.c.l.b16 %v945
    %v1702 = vunpack.c.h.b16 %v945
    %v1703 = vunpack.c.l.b16 %v946
    %v1704 = vunpack.c.h.b16 %v946
    %v1705 = vunpack.c.l.b16 %v947
    %v1706 = vunpack.c.l.b16 %v948
    %v1707 = vunpack.c.h.b16 %v948
    %v1708 = vunpack.c.l.b16 %v949
    %v1709 = vunpack.c.h.b16 %v949
    %v1710 = vunpack.c.l.b16 %v950
    %v1711 = vunpack.c.l.b16 %v951
    %v1712 = vunpack.c.h.b16 %v951
    %v1713 = vunpack.c.l.b16 %v952
    %v1714 = vunpack.c.h.b16 %v952
    %v1715 = vunpack.c.l.b16 %v953
    %v1716 = vunpack.c.l.b16 %v954
    %v1717 = vunpack.c.h.b16 %v954
    %v1718 = vunpack.c.l.b16 %v955
    %v1719 = vunpack.c.h.b16 %v955
    %v1720 = vunpack.c.l.b16 %v956
    %v1721 = vunpack.c.l.b16 %v957
    %v1722 = vunpack.c.h.b16 %v957
    %v1723 = vunpack.c.l.b16 %v958
    %v1724 = vunpack.c.h.b16 %v958
    %v1725 = vunpack.c.l.b16 %v959
    %v1726 = vunpack.c.l.b16 %v960
    %v1727 = vunpack.c.h.b16 %v960
    %v1728 = vunpack.c.l.b16 %v961
    %v1729 = vunpack.c.h.b16 %v961
    %v1730 = vunpack.c.l.b16 %v962
    %v1731 = vpack.c.b16 %v1256, %v1251
    %v1732 = vpack.c.b16 %v1257, %v1252
    %v1733 = vpack.c.b16 %v1258, %v1253
    %v1734 = vpack.c.b16 %v1259, %v1254
    %v1735 = vpack.c.b16 %v1260, %v1255
    %v1736 = vpack.c.b16 %v1266, %v1261
    %v1737 = vpack.c.b16 %v1267, %v1262
    %v1738 = vpack.c.b16 %v1268, %v1263
    %v1739 = vpack.c.b16 %v1269, %v1264
    %v1740 = vpack.c.b16 %v1270, %v1265
    %v1741 = vpack.c.b16 %v1276, %v1271
    %v1742 = vpack.c.b16 %v1277, %v1272
    %v1743 = vpack.c.b16 %v1278, %v1273
    %v1744 = vpack.c.b16 %v1279, %v1274
    %v1745 = vpack.c.b16 %v1280, %v1275
    %v1746 = vpack.c.b16 %v1286, %v1281
    %v1747 = vpack.c.b16 %v1287, %v1282
    %v1748 = vpack.c.b16 %v1288, %v1283
    %v1749 = vpack.c.b16 %v1289, %v1284
    %v1750 = vpack.c.b16 %v1290, %v1285
    %v1751 = vpack.c.b16 %v1296, %v1291
    %v1752 = vpack.c.b16 %v1297, %v1292
    %v1753 = vpack.c.b16 %v1298, %v1293
    %v1754 = vpack.c.b16 %v1299, %v1294
    %v1755 = vpack.c.b16 %v1300, %v1295
    %v1756 = vpack.c.b16 %v1306, %v1301
    %v1757 = vpack.c.b16 %v1307, %v1302
    %v1758 = vpack.c.b16 %v1308, %v1303
    %v1759 = vpack.c.b16 %v1309, %v1304
    %v1760 = vpack.c.b16 %v1310, %v1305
    %v1761 = vpack.c.b16 %v1316, %v1311
    %v1762 = vpack.c.b16 %v1317, %v1312
    %v1763 = vpack.c.b16 %v1318, %v1313
    %v1764 = vpack.c.b16 %v1319, %v1314
    %v1765 = vpack.c.b16 %v1320, %v1315
    %v1766 = vpack.c.b16 %v1326, %v1321
    %v1767 = vpack.c.b16 %v1327, %v1322
    %v1768 = vpack.c.b16 %v1328, %v1323
    %v1769 = vpack.c.b16 %v1329, %v1324
    %v1770 = vpack.c.b16 %v1330, %v1325
    %v1771 = vpack.c.b16 %v1336, %v1331
    %v1772 = vpack.c.b16 %v1337, %v1332
    %v1773 = vpack.c.b16 %v1338, %v1333
    %v1774 = vpack.c.b16 %v1339, %v1334
    %v1775 = vpack.c.b16 %v1340, %v1335
    %v1776 = vpack.c.b16 %v1346, %v1341
    %v1777 = vpack.c.b16 %v1347, %v1342
    %v1778 = vpack.c.b16 %v1348, %v1343
    %v1779 = vpack.c.b16 %v1349, %v1344
    %v1780 = vpack.c.b16 %v1350, %v1345
    %v1781 = vpack.c.b16 %v1356, %v1351
    %v1782 = vpack.c.b16 %v1357, %v1352
    %v1783 = vpack.c.b16 %v1358, %v1353
    %v1784 = vpack.c.b16 %v1359, %v1354
    %v1785 = vpack.c.b16 %v1360, %v1355
    %v1786 = vpack.c.b16 %v1366, %v1361
    %v1787 = vpack.c.b16 %v1367, %v1362
    %v1788 = vpack.c.b16 %v1368, %v1363
    %v1789 = vpack.c.b16 %v1369, %v1364
    %v1790 = vpack.c.b16 %v1370, %v1365
    %v1791 = vpack.c.b16 %v1376, %v1371
    %v1792 = vpack.c.b16 %v1377, %v1372
    %v1793 = vpack.c.b16 %v1378, %v1373
    %v1794 = vpack.c.b16 %v1379, %v1374
    %v1795 = vpack.c.b16 %v1380, %v1375
    %v1796 = vpack.c.b16 %v1386, %v1381
    %v1797 = vpack.c.b16 %v1387, %v1382
    %v1798 = vpack.c.b16 %v1388, %v1383
    %v1799 = vpack.c.b16 %v1389, %v1384
    %v1800 = vpack.c.b16 %v1390, %v1385
    %v1801 = vpack.c.b16 %v1396, %v1391
    %v1802 = vpack.c.b16 %v1397, %v1392
    %v1803 = vpack.c.b16 %v1398, %v1393
    %v1804 = vpack.c.b16 %v1399, %v1394
    %v1805 = vpack.c.b16 %v1400, %v1395
    %v1806 = vpack.c.b16 %v1406, %v1401
    %v1807 = vpack.c.b16 %v1407, %v1402
    %v1808 = vpack.c.b16 %v1408, %v1403
    %v1809 = vpack.c.b16 %v1409, %v1404
    %v1810 = vpack.c.b16 %v1410, %v1405
    %v1811 = vpack.c.b16 %v1416, %v1411
    %v1812 = vpack.c.b16 %v1417, %v1412
    %v1813 = vpack.c.b16 %v1418, %v1413
    %v1814 = vpack.c.b16 %v1419, %v1414
    %v1815 = vpack.c.b16 %v1420, %v1415
    %v1816 = vpack.c.b16 %v1426, %v1421
    %v1817 = vpack.c.b16 %v1427, %v1422
    %v1818 = vpack.c.b16 %v1428, %v1423
    %v1819 = vpack.c.b16 %v1429, %v1424
    %v1820 = vpack.c.b16 %v1430, %v1425
    %v1821 = vpack.c.b16 %v1436, %v1431
    %v1822 = vpack.c.b16 %v1437, %v1432
    %v1823 = vpack.c.b16 %v1438, %v1433
    %v1824 = vpack.c.b16 %v1439, %v1434
    %v1825 = vpack.c.b16 %v1440, %v1435
    %v1826 = vpack.c.b16 %v1446, %v1441
    %v1827 = vpack.c.b16 %v1447, %v1442
    %v1828 = vpack.c.b16 %v1448, %v1443
    %v1829 = vpack.c.b16 %v1449, %v1444
    %v1830 = vpack.c.b16 %v1450, %v1445
    %v1831 = vpack.c.b16 %v1456, %v1451
    %v1832 = vpack.c.b16 %v1457, %v1452
    %v1833 = vpack.c.b16 %v1458, %v1453
    %v1834 = vpack.c.b16 %v1459, %v1454
    %v1835 = vpack.c.b16 %v1460, %v1455
    %v1836 = vpack.c.b16 %v1466, %v1461
    %v1837 = vpack.c.b16 %v1467, %v1462
    %v1838 = vpack.c.b16 %v1468, %v1463
    %v1839 = vpack.c.b16 %v1469, %v1464
    %v1840 = vpack.c.b16 %v1470, %v1465
    %v1841 = vpack.c.b16 %v1476, %v1471
    %v1842 = vpack.c.b16 %v1477, %v1472
    %v1843 = vpack.c.b16 %v1478, %v1473
    %v1844 = vpack.c.b16 %v1479, %v1474
    %v1845 = vpack.c.b16 %v1480, %v1475
    %v1846 = vpack.c.b16 %v1486, %v1481
    %v1847 = vpack.c.b16 %v1487, %v1482
    %v1848 = vpack.c.b16 %v1488, %v1483
    %v1849 = vpack.c.b16 %v1489, %v1484
    %v1850 = vpack.c.b16 %v1490, %v1485
    %v1851 = vpack.c.b16 %v1496, %v1491
    %v1852 = vpack.c.b16 %v1497, %v1492
    %v1853 = vpack.c.b16 %v1498, %v1493
    %v1854 = vpack.c.b16 %v1499, %v1494
    %v1855 = vpack.c.b16 %v1500, %v1495
    %v1856 = vpack.c.b16 %v1506, %v1501
    %v1857 = vpack.c.b16 %v1507, %v1502
    %v1858 = vpack.c.b16 %v1508, %v1503
    %v1859 = vpack.c.b16 %v1509, %v1504
    %v1860 = vpack.c.b16 %v1510, %v1505
    %v1861 = vpack.c.b16 %v1516, %v1511
    %v1862 = vpack.c.b16 %v1517, %v1512
    %v1863 = vpack.c.b16 %v1518, %v1513
    %v1864 = vpack.c.b16 %v1519, %v1514
    %v1865 = vpack.c.b16 %v1520, %v1515
    %v1866 = vpack.c.b16 %v1526, %v1521
    %v1867 = vpack.c.b16 %v1527, %v1522
    %v1868 = vpack.c.b16 %v1528, %v1523
    %v1869 = vpack.c.b16 %v1529, %v1524
    %v1870 = vpack.c.b16 %v1530, %v1525
    %v1871 = vpack.c.b16 %v1536, %v1531
    %v1872 = vpack.c.b16 %v1537, %v1532
    %v1873 = vpack.c.b16 %v1538, %v1533
    %v1874 = vpack.c.b16 %v1539, %v1534
    %v1875 = vpack.c.b16 %v1540, %v1535
    %v1876 = vpack.c.b16 %v1546, %v1541
    %v1877 = vpack.c.b16 %v1547, %v1542
    %v1878 = vpack.c.b16 %v1548, %v1543
    %v1879 = vpack.c.b16 %v1549, %v1544
    %v1880 = vpack.c.b16 %v1550, %v1545
    %v1881 = vpack.c.b16 %v1556, %v1551
    %v1882 = vpack.c.b16 %v1557, %v1552
    %v1883 = vpack.c.b16 %v1558, %v1553
    %v1884 = vpack.c.b16 %v1559, %v1554
    %v1885 = vpack.c.b16 %v1560, %v1555
    %v1886 = vpack.c.b16 %v1566, %v1561
    %v1887 = vpack.c.b16 %v1567, %v1562
    %v1888 = vpack.c.b16 %v1568, %v1563
    %v1889 = vpack.c.b16 %v1569, %v1564
    %v1890 = vpack.c.b16 %v1570, %v1565
    %v1891 = vpack.c.b16 %v1576, %v1571
    %v1892 = vpack.c.b16 %v1577, %v1572
    %v1893 = vpack.c.b16 %v1578, %v1573
    %v1894 = vpack.c.b16 %v1579, %v1574
    %v1895 = vpack.c.b16 %v1580, %v1575
    %v1896 = vpack.c.b16 %v1586, %v1581
    %v1897 = vpack.c.b16 %v1587, %v1582
    %v1898 = vpack.c.b16 %v1588, %v1583
    %v1899 = vpack.c.b16 %v1589, %v1584
    %v1900 = vpack.c.b16 %v1590, %v1585
    %v1901 = vpack.c.b16 %v1596, %v1591
    %v1902 = vpack.c.b16 %v1597, %v1592
    %v1903 = vpack.c.b16 %v1598, %v1593
    %v1904 = vpack.c.b16 %v1599, %v1594
    %v1905 = vpack.c.b16 %v1600, %v1595
    %v1906 = vpack.c.b16 %v1606, %v1601
    %v1907 = vpack.c.b16 %v1607, %v1602
    %v1908 = vpack.c.b16 %v1608, %v1603
    %v1909 = vpack.c.b16 %v1609, %v1604
    %v1910 = vpack.c.b16 %v1610, %v1605
    %v1911 = vpack.c.b16 %v1616, %v1611
    %v1912 = vpack.c.b16 %v1617, %v1612
    %v1913 = vpack.c.b16 %v1618, %v1613
    %v1914 = vpack.c.b16 %v1619, %v1614
    %v1915 = vpack.c.b16 %v1620, %v1615
    %v1916 = vpack.c.b16 %v1626, %v1621
    %v1917 = vpack.c.b16 %v1627, %v1622
    %v1918 = vpack.c.b16 %v1628, %v1623
    %v1919 = vpack.c.b16 %v1629, %v1624
    %v1920 = vpack.c.b16 %v1630, %v1625
    %v1921 = vpack.c.b16 %v1636, %v1631
    %v1922 = vpack.c.b16 %v1637, %v1632
    %v1923 = vpack.c.b16 %v1638, %v1633
    %v1924 = vpack.c.b16 %v1639, %v1634
    %v1925 = vpack.c.b16 %v1640, %v1635
    %v1926 = vpack.c.b16 %v1646, %v1641
    %v1927 = vpack.c.b16 %v1647, %v1642
    %v1928 = vpack.c.b16 %v1648, %v1643
    %v1929 = vpack.c.b16 %v1649, %v1644
    %v1930 = vpack.c.b16 %v1650, %v1645
    %v1931 = vpack.c.b16 %v1656, %v1651
    %v1932 = vpack.c.b16 %v1657, %v1652
    %v1933 = vpack.c.b16 %v1658, %v1653
    %v1934 = vpack.c.b16 %v1659, %v1654
    %v1935 = vpack.c.b16 %v1660, %v1655
    %v1936 = vpack.c.b16 %v1666, %v1661
    %v1937 = vpack.c.b16 %v1667, %v1662
    %v1938 = vpack.c.b16 %v1668, %v1663
    %v1939 = vpack.c.b16 %v1669, %v1664
    %v1940 = vpack.c.b16 %v1670, %v1665
    %v1941 = vpack.c.b16 %v1676, %v1671
    %v1942 = vpack.c.b16 %v1677, %v1672
    %v1943 = vpack.c.b16 %v1678, %v1673
    %v1944 = vpack.c.b16 %v1679, %v1674
    %v1945 = vpack.c.b16 %v1680, %v1675
    %v1946 = vpack.c.b16 %v1686, %v1681
    %v1947 = vpack.c.b16 %v1687, %v1682
    %v1948 = vpack.c.b16 %v1688, %v1683
    %v1949 = vpack.c.b16 %v1689, %v1684
    %v1950 = vpack.c.b16 %v1690, %v1685
    %v1951 = vpack.c.b16 %v1696, %v1691
    %v1952 = vpack.c.b16 %v1697, %v1692
    %v1953 = vpack.c.b16 %v1698, %v1693
    %v1954 = vpack.c.b16 %v1699, %v1694
    %v1955 = vpack.c.b16 %v1700, %v1695
    %v1956 = vpack.c.b16 %v1706, %v1701
    %v1957 = vpack.c.b16 %v1707, %v1702
    %v1958 = vpack.c.b16 %v1708, %v1703
    %v1959 = vpack.c.b16 %v1709, %v1704
    %v1960 = vpack.c.b16 %v1710, %v1705
    %v1961 = vpack.c.b16 %v1716, %v1711
    %v1962 = vpack.c.b16 %v1717, %v1712
    %v1963 = vpack.c.b16 %v1718, %v1713
    %v1964 = vpack.c.b16 %v1719, %v1714
    %v1965 = vpack.c.b16 %v1720, %v1715
    %v1966 = vpack.c.b16 %v1726, %v1721
    %v1967 = vpack.c.b16 %v1727, %v1722
    %v1968 = vpack.c.b16 %v1728, %v1723
    %v1969 = vpack.c.b16 %v1729, %v1724
    %v1970 = vpack.c.b16 %v1730, %v1725
    %2211 = vmatprep.subr.bf16.mxu0 %v1767
    %2212 = vmatpush1.bf16.msra.mxu0 %v1766
    %2213 = vmatprep.subr.bf16.mxu0 %v1762
    %2214 = vmatpush1.bf16.msra.mxu0 %v1761
    %2215 = vmatprep.subr.bf16.mxu0 %v1757
    %2216 = vmatpush1.bf16.msra.mxu0 %v1756
    %2217 = vmatprep.subr.bf16.mxu0 %v1752
    %2218 = vmatpush1.bf16.msra.mxu0 %v1751
    %2219 = vmatprep.subr.bf16.mxu0 %v1747
    %2220 = vmatpush1.bf16.msra.mxu0 %v1746
    %2221 = vmatprep.subr.bf16.mxu0 %v1742
    %2222 = vmatpush1.bf16.msra.mxu0 %v1741
    %2223 = vmatprep.subr.bf16.mxu0 %v1737
    %2224 = vmatpush1.bf16.msra.mxu0 %v1736
    %2225 = vmatprep.subr.bf16.mxu0 %v1732
    %2226 = vmatpush1.bf16.msra.mxu0 %v1731
    %2227 = vmatprep.subr.bf16.mxu0 %v1807
    %2228 = vmatpush2.bf16.msra.mxu0 %v1806
    %2229 = vmatprep.subr.bf16.mxu0 %v1802
    %2230 = vmatpush2.bf16.msra.mxu0 %v1801
    %2231 = vmatprep.subr.bf16.mxu0 %v1797
    %2232 = vmatpush2.bf16.msra.mxu0 %v1796
    %2233 = vmatprep.subr.bf16.mxu0 %v1792
    %2234 = vmatpush2.bf16.msra.mxu0 %v1791
    %2235 = vmatprep.subr.bf16.mxu0 %v1787
    %2236 = vmatpush2.bf16.msra.mxu0 %v1786
    %2237 = vmatprep.subr.bf16.mxu0 %v1782
    %2238 = vmatpush2.bf16.msra.mxu0 %v1781
    %2239 = vmatprep.subr.bf16.mxu0 %v1777
    %2240 = vmatpush2.bf16.msra.mxu0 %v1776
    %2241 = vmatprep.subr.bf16.mxu0 %v1772
    %2242 = vmatpush2.bf16.msra.mxu0 %v1771
    %2243 = vmatprep.mubr.bf16.mxu0 %v142
    %2244 = vmatmul.mubr.bf16.gmra.mxu0 %v141
    %v2245 = vpop.f32.mrf.mxu0
    %v2246 = vadd.f32 0.0, %v2245
    %v2247 = vpop.f32.mrf.mxu0
    %v2248 = vadd.f32 0.0, %v2247
    %v2249 = vpop.f32.mrf.mxu0
    %v2250 = vpop.f32.mrf.mxu0
    %2251 = vdwg.mxu0
    %2252 = vmatprep.subr.bf16.mxu0 %v1847
    %2253 = vmatpush1.bf16.msra.mxu0 %v1846
    %2254 = vmatprep.subr.bf16.mxu0 %v1842
    %2255 = vmatpush1.bf16.msra.mxu0 %v1841
    %2256 = vmatprep.subr.bf16.mxu0 %v1837
    %2257 = vmatpush1.bf16.msra.mxu0 %v1836
    %2258 = vmatprep.subr.bf16.mxu0 %v1832
    %2259 = vmatpush1.bf16.msra.mxu0 %v1831
    %2260 = vmatprep.subr.bf16.mxu0 %v1827
    %2261 = vmatpush1.bf16.msra.mxu0 %v1826
    %2262 = vmatprep.subr.bf16.mxu0 %v1822
    %2263 = vmatpush1.bf16.msra.mxu0 %v1821
    %2264 = vmatprep.subr.bf16.mxu0 %v1817
    %2265 = vmatpush1.bf16.msra.mxu0 %v1816
    %2266 = vmatprep.subr.bf16.mxu0 %v1812
    %2267 = vmatpush1.bf16.msra.mxu0 %v1811
    %2268 = vmatprep.subr.bf16.mxu0 %v1887
    %2269 = vmatpush2.bf16.msra.mxu0 %v1886
    %2270 = vmatprep.subr.bf16.mxu0 %v1882
    %2271 = vmatpush2.bf16.msra.mxu0 %v1881
    %2272 = vmatprep.subr.bf16.mxu0 %v1877
    %2273 = vmatpush2.bf16.msra.mxu0 %v1876
    %2274 = vmatprep.subr.bf16.mxu0 %v1872
    %2275 = vmatpush2.bf16.msra.mxu0 %v1871
    %2276 = vmatprep.subr.bf16.mxu0 %v1867
    %2277 = vmatpush2.bf16.msra.mxu0 %v1866
    %2278 = vmatprep.subr.bf16.mxu0 %v1862
    %2279 = vmatpush2.bf16.msra.mxu0 %v1861
    %2280 = vmatprep.subr.bf16.mxu0 %v1857
    %2281 = vmatpush2.bf16.msra.mxu0 %v1856
    %2282 = vmatprep.subr.bf16.mxu0 %v1852
    %2283 = vmatpush2.bf16.msra.mxu0 %v1851
    %2284 = vmatprep.mubr.bf16.mxu0 %v144
    %2285 = vmatmul.mubr.bf16.gmra.mxu0 %v143
    %v2286 = vpop.f32.mrf.mxu0
    %v2287 = vadd.f32 %v2246, %v2286
    %v2288 = vpop.f32.mrf.mxu0
    %v2289 = vadd.f32 %v2248, %v2288
    %v2290 = vpop.f32.mrf.mxu0
    %v2291 = vpop.f32.mrf.mxu0
    %2292 = vdwg.mxu0
    %2293 = vmatprep.subr.bf16.mxu0 %v1927
    %2294 = vmatpush1.bf16.msra.mxu0 %v1926
    %2295 = vmatprep.subr.bf16.mxu0 %v1922
    %2296 = vmatpush1.bf16.msra.mxu0 %v1921
    %2297 = vmatprep.subr.bf16.mxu0 %v1917
    %2298 = vmatpush1.bf16.msra.mxu0 %v1916
    %2299 = vmatprep.subr.bf16.mxu0 %v1912
    %2300 = vmatpush1.bf16.msra.mxu0 %v1911
    %2301 = vmatprep.subr.bf16.mxu0 %v1907
    %2302 = vmatpush1.bf16.msra.mxu0 %v1906
    %2303 = vmatprep.subr.bf16.mxu0 %v1902
    %2304 = vmatpush1.bf16.msra.mxu0 %v1901
    %2305 = vmatprep.subr.bf16.mxu0 %v1897
    %2306 = vmatpush1.bf16.msra.mxu0 %v1896
    %2307 = vmatprep.subr.bf16.mxu0 %v1892
    %2308 = vmatpush1.bf16.msra.mxu0 %v1891
    %2309 = vmatprep.subr.bf16.mxu0 %v1967
    %2310 = vmatpush2.bf16.msra.mxu0 %v1966
    %2311 = vmatprep.subr.bf16.mxu0 %v1962
    %2312 = vmatpush2.bf16.msra.mxu0 %v1961
    %2313 = vmatprep.subr.bf16.mxu0 %v1957
    %2314 = vmatpush2.bf16.msra.mxu0 %v1956
    %2315 = vmatprep.subr.bf16.mxu0 %v1952
    %2316 = vmatpush2.bf16.msra.mxu0 %v1951
    %2317 = vmatprep.subr.bf16.mxu0 %v1947
    %2318 = vmatpush2.bf16.msra.mxu0 %v1946
    %2319 = vmatprep.subr.bf16.mxu0 %v1942
    %2320 = vmatpush2.bf16.msra.mxu0 %v1941
    %2321 = vmatprep.subr.bf16.mxu0 %v1937
    %2322 = vmatpush2.bf16.msra.mxu0 %v1936
    %2323 = vmatprep.subr.bf16.mxu0 %v1932
    %2324 = vmatpush2.bf16.msra.mxu0 %v1931
    %2325 = vmatprep.mubr.bf16.mxu0 %v146
    %2326 = vmatmul.mubr.bf16.gmra.mxu0 %v145
    %v2327 = vpop.f32.mrf.mxu0
    %v2328 = vadd.f32 %v2287, %v2327
    %v2329 = vpop.f32.mrf.mxu0
    %v2330 = vadd.f32 %v2289, %v2329
    %v2331 = vpop.f32.mrf.mxu0
    %v2332 = vpop.f32.mrf.mxu0
    %2333 = vdwg.mxu0
    %2334 = vmatprep.subr.bf16.mxu0 %v1769
    %2335 = vmatpush1.bf16.msra.mxu0 %v1768
    %2336 = vmatprep.subr.bf16.mxu0 %v1764
    %2337 = vmatpush1.bf16.msra.mxu0 %v1763
    %2338 = vmatprep.subr.bf16.mxu0 %v1759
    %2339 = vmatpush1.bf16.msra.mxu0 %v1758
    %2340 = vmatprep.subr.bf16.mxu0 %v1754
    %2341 = vmatpush1.bf16.msra.mxu0 %v1753
    %2342 = vmatprep.subr.bf16.mxu0 %v1749
    %2343 = vmatpush1.bf16.msra.mxu0 %v1748
    %2344 = vmatprep.subr.bf16.mxu0 %v1744
    %2345 = vmatpush1.bf16.msra.mxu0 %v1743
    %2346 = vmatprep.subr.bf16.mxu0 %v1739
    %2347 = vmatpush1.bf16.msra.mxu0 %v1738
    %2348 = vmatprep.subr.bf16.mxu0 %v1734
    %2349 = vmatpush1.bf16.msra.mxu0 %v1733
    %2350 = vmatprep.subr.bf16.mxu0 %v1809
    %2351 = vmatpush2.bf16.msra.mxu0 %v1808
    %2352 = vmatprep.subr.bf16.mxu0 %v1804
    %2353 = vmatpush2.bf16.msra.mxu0 %v1803
    %2354 = vmatprep.subr.bf16.mxu0 %v1799
    %2355 = vmatpush2.bf16.msra.mxu0 %v1798
    %2356 = vmatprep.subr.bf16.mxu0 %v1794
    %2357 = vmatpush2.bf16.msra.mxu0 %v1793
    %2358 = vmatprep.subr.bf16.mxu0 %v1789
    %2359 = vmatpush2.bf16.msra.mxu0 %v1788
    %2360 = vmatprep.subr.bf16.mxu0 %v1784
    %2361 = vmatpush2.bf16.msra.mxu0 %v1783
    %2362 = vmatprep.subr.bf16.mxu0 %v1779
    %2363 = vmatpush2.bf16.msra.mxu0 %v1778
    %2364 = vmatprep.subr.bf16.mxu0 %v1774
    %2365 = vmatpush2.bf16.msra.mxu0 %v1773
    %2366 = vmatprep.mubr.bf16.mxu0 %v142
    %2367 = vmatmul.mubr.bf16.gmra.mxu0 %v141
    %v2368 = vpop.f32.mrf.mxu0
    %v2369 = vadd.f32 0.0, %v2368
    %v2370 = vpop.f32.mrf.mxu0
    %v2371 = vadd.f32 0.0, %v2370
    %v2372 = vpop.f32.mrf.mxu0
    %v2373 = vpop.f32.mrf.mxu0
    %2374 = vdwg.mxu0
    %2375 = vmatprep.subr.bf16.mxu0 %v1849
    %2376 = vmatpush1.bf16.msra.mxu0 %v1848
    %2377 = vmatprep.subr.bf16.mxu0 %v1844
    %2378 = vmatpush1.bf16.msra.mxu0 %v1843
    %2379 = vmatprep.subr.bf16.mxu0 %v1839
    %2380 = vmatpush1.bf16.msra.mxu0 %v1838
    %2381 = vmatprep.subr.bf16.mxu0 %v1834
    %2382 = vmatpush1.bf16.msra.mxu0 %v1833
    %2383 = vmatprep.subr.bf16.mxu0 %v1829
    %2384 = vmatpush1.bf16.msra.mxu0 %v1828
    %2385 = vmatprep.subr.bf16.mxu0 %v1824
    %2386 = vmatpush1.bf16.msra.mxu0 %v1823
    %2387 = vmatprep.subr.bf16.mxu0 %v1819
    %2388 = vmatpush1.bf16.msra.mxu0 %v1818
    %2389 = vmatprep.subr.bf16.mxu0 %v1814
    %2390 = vmatpush1.bf16.msra.mxu0 %v1813
    %2391 = vmatprep.subr.bf16.mxu0 %v1889
    %2392 = vmatpush2.bf16.msra.mxu0 %v1888
    %2393 = vmatprep.subr.bf16.mxu0 %v1884
    %2394 = vmatpush2.bf16.msra.mxu0 %v1883
    %2395 = vmatprep.subr.bf16.mxu0 %v1879
    %2396 = vmatpush2.bf16.msra.mxu0 %v1878
    %2397 = vmatprep.subr.bf16.mxu0 %v1874
    %2398 = vmatpush2.bf16.msra.mxu0 %v1873
    %2399 = vmatprep.subr.bf16.mxu0 %v1869
    %2400 = vmatpush2.bf16.msra.mxu0 %v1868
    %2401 = vmatprep.subr.bf16.mxu0 %v1864
    %2402 = vmatpush2.bf16.msra.mxu0 %v1863
    %2403 = vmatprep.subr.bf16.mxu0 %v1859
    %2404 = vmatpush2.bf16.msra.mxu0 %v1858
    %2405 = vmatprep.subr.bf16.mxu0 %v1854
    %2406 = vmatpush2.bf16.msra.mxu0 %v1853
    %2407 = vmatprep.mubr.bf16.mxu0 %v144
    %2408 = vmatmul.mubr.bf16.gmra.mxu0 %v143
    %v2409 = vpop.f32.mrf.mxu0
    %v2410 = vadd.f32 %v2369, %v2409
    %v2411 = vpop.f32.mrf.mxu0
    %v2412 = vadd.f32 %v2371, %v2411
    %v2413 = vpop.f32.mrf.mxu0
    %v2414 = vpop.f32.mrf.mxu0
    %2415 = vdwg.mxu0
    %2416 = vmatprep.subr.bf16.mxu0 %v1929
    %2417 = vmatpush1.bf16.msra.mxu0 %v1928
    %2418 = vmatprep.subr.bf16.mxu0 %v1924
    %2419 = vmatpush1.bf16.msra.mxu0 %v1923
    %2420 = vmatprep.subr.bf16.mxu0 %v1919
    %2421 = vmatpush1.bf16.msra.mxu0 %v1918
    %2422 = vmatprep.subr.bf16.mxu0 %v1914
    %2423 = vmatpush1.bf16.msra.mxu0 %v1913
    %2424 = vmatprep.subr.bf16.mxu0 %v1909
    %2425 = vmatpush1.bf16.msra.mxu0 %v1908
    %2426 = vmatprep.subr.bf16.mxu0 %v1904
    %2427 = vmatpush1.bf16.msra.mxu0 %v1903
    %2428 = vmatprep.subr.bf16.mxu0 %v1899
    %2429 = vmatpush1.bf16.msra.mxu0 %v1898
    %2430 = vmatprep.subr.bf16.mxu0 %v1894
    %2431 = vmatpush1.bf16.msra.mxu0 %v1893
    %2432 = vmatprep.subr.bf16.mxu0 %v1969
    %2433 = vmatpush2.bf16.msra.mxu0 %v1968
    %2434 = vmatprep.subr.bf16.mxu0 %v1964
    %2435 = vmatpush2.bf16.msra.mxu0 %v1963
    %2436 = vmatprep.subr.bf16.mxu0 %v1959
    %2437 = vmatpush2.bf16.msra.mxu0 %v1958
    %2438 = vmatprep.subr.bf16.mxu0 %v1954
    %2439 = vmatpush2.bf16.msra.mxu0 %v1953
    %2440 = vmatprep.subr.bf16.mxu0 %v1949
    %2441 = vmatpush2.bf16.msra.mxu0 %v1948
    %2442 = vmatprep.subr.bf16.mxu0 %v1944
    %2443 = vmatpush2.bf16.msra.mxu0 %v1943
    %2444 = vmatprep.subr.bf16.mxu0 %v1939
    %2445 = vmatpush2.bf16.msra.mxu0 %v1938
    %2446 = vmatprep.subr.bf16.mxu0 %v1934
    %2447 = vmatpush2.bf16.msra.mxu0 %v1933
    %2448 = vmatprep.mubr.bf16.mxu0 %v146
    %2449 = vmatmul.mubr.bf16.gmra.mxu0 %v145
    %v2450 = vpop.f32.mrf.mxu0
    %v2451 = vadd.f32 %v2410, %v2450
    %v2452 = vpop.f32.mrf.mxu0
    %v2453 = vadd.f32 %v2412, %v2452
    %v2454 = vpop.f32.mrf.mxu0
    %v2455 = vpop.f32.mrf.mxu0
    %2456 = vdwg.mxu0
    %2457 = vmatprep.subr.bf16.mxu0 0
    %2458 = vmatpush1.bf16.msra.mxu0 %v1770
    %2459 = vmatprep.subr.bf16.mxu0 0
    %2460 = vmatpush1.bf16.msra.mxu0 %v1765
    %2461 = vmatprep.subr.bf16.mxu0 0
    %2462 = vmatpush1.bf16.msra.mxu0 %v1760
    %2463 = vmatprep.subr.bf16.mxu0 0
    %2464 = vmatpush1.bf16.msra.mxu0 %v1755
    %2465 = vmatprep.subr.bf16.mxu0 0
    %2466 = vmatpush1.bf16.msra.mxu0 %v1750
    %2467 = vmatprep.subr.bf16.mxu0 0
    %2468 = vmatpush1.bf16.msra.mxu0 %v1745
    %2469 = vmatprep.subr.bf16.mxu0 0
    %2470 = vmatpush1.bf16.msra.mxu0 %v1740
    %2471 = vmatprep.subr.bf16.mxu0 0
    %2472 = vmatpush1.bf16.msra.mxu0 %v1735
    %2473 = vmatprep.subr.bf16.mxu0 0
    %2474 = vmatpush2.bf16.msra.mxu0 %v1810
    %2475 = vmatprep.subr.bf16.mxu0 0
    %2476 = vmatpush2.bf16.msra.mxu0 %v1805
    %2477 = vmatprep.subr.bf16.mxu0 0
    %2478 = vmatpush2.bf16.msra.mxu0 %v1800
    %2479 = vmatprep.subr.bf16.mxu0 0
    %2480 = vmatpush2.bf16.msra.mxu0 %v1795
    %2481 = vmatprep.subr.bf16.mxu0 0
    %2482 = vmatpush2.bf16.msra.mxu0 %v1790
    %2483 = vmatprep.subr.bf16.mxu0 0
    %2484 = vmatpush2.bf16.msra.mxu0 %v1785
    %2485 = vmatprep.subr.bf16.mxu0 0
    %2486 = vmatpush2.bf16.msra.mxu0 %v1780
    %2487 = vmatprep.subr.bf16.mxu0 0
    %2488 = vmatpush2.bf16.msra.mxu0 %v1775
    %2489 = vmatprep.mubr.bf16.mxu0 %v142
    %2490 = vmatmul.mubr.bf16.gmra.mxu0 %v141
    %v2491 = vpop.f32.mrf.mxu0
    %v2492 = vadd.f32 0.0, %v2491
    %v2493 = vpop.f32.mrf.mxu0
    %v2494 = vpop.f32.mrf.mxu0
    %v2495 = vpop.f32.mrf.mxu0
    %2496 = vdwg.mxu0
    %2497 = vmatprep.subr.bf16.mxu0 0
    %2498 = vmatpush1.bf16.msra.mxu0 %v1850
    %2499 = vmatprep.subr.bf16.mxu0 0
    %2500 = vmatpush1.bf16.msra.mxu0 %v1845
    %2501 = vmatprep.subr.bf16.mxu0 0
    %2502 = vmatpush1.bf16.msra.mxu0 %v1840
    %2503 = vmatprep.subr.bf16.mxu0 0
    %2504 = vmatpush1.bf16.msra.mxu0 %v1835
    %2505 = vmatprep.subr.bf16.mxu0 0
    %2506 = vmatpush1.bf16.msra.mxu0 %v1830
    %2507 = vmatprep.subr.bf16.mxu0 0
    %2508 = vmatpush1.bf16.msra.mxu0 %v1825
    %2509 = vmatprep.subr.bf16.mxu0 0
    %2510 = vmatpush1.bf16.msra.mxu0 %v1820
    %2511 = vmatprep.subr.bf16.mxu0 0
    %2512 = vmatpush1.bf16.msra.mxu0 %v1815
    %2513 = vmatprep.subr.bf16.mxu0 0
    %2514 = vmatpush2.bf16.msra.mxu0 %v1890
    %2515 = vmatprep.subr.bf16.mxu0 0
    %2516 = vmatpush2.bf16.msra.mxu0 %v1885
    %2517 = vmatprep.subr.bf16.mxu0 0
    %2518 = vmatpush2.bf16.msra.mxu0 %v1880
    %2519 = vmatprep.subr.bf16.mxu0 0
    %2520 = vmatpush2.bf16.msra.mxu0 %v1875
    %2521 = vmatprep.subr.bf16.mxu0 0
    %2522 = vmatpush2.bf16.msra.mxu0 %v1870
    %2523 = vmatprep.subr.bf16.mxu0 0
    %2524 = vmatpush2.bf16.msra.mxu0 %v1865
    %2525 = vmatprep.subr.bf16.mxu0 0
    %2526 = vmatpush2.bf16.msra.mxu0 %v1860
    %2527 = vmatprep.subr.bf16.mxu0 0
    %2528 = vmatpush2.bf16.msra.mxu0 %v1855
    %2529 = vmatprep.mubr.bf16.mxu0 %v144
    %2530 = vmatmul.mubr.bf16.gmra.mxu0 %v143
    %v2531 = vpop.f32.mrf.mxu0
    %v2532 = vadd.f32 %v2492, %v2531
    %v2533 = vpop.f32.mrf.mxu0
    %v2534 = vpop.f32.mrf.mxu0
    %v2535 = vpop.f32.mrf.mxu0
    %2536 = vdwg.mxu0
    %2537 = vmatprep.subr.bf16.mxu0 0
    %2538 = vmatpush1.bf16.msra.mxu0 %v1930
    %2539 = vmatprep.subr.bf16.mxu0 0
    %2540 = vmatpush1.bf16.msra.mxu0 %v1925
    %2541 = vmatprep.subr.bf16.mxu0 0
    %2542 = vmatpush1.bf16.msra.mxu0 %v1920
    %2543 = vmatprep.subr.bf16.mxu0 0
    %2544 = vmatpush1.bf16.msra.mxu0 %v1915
    %2545 = vmatprep.subr.bf16.mxu0 0
    %2546 = vmatpush1.bf16.msra.mxu0 %v1910
    %2547 = vmatprep.subr.bf16.mxu0 0
    %2548 = vmatpush1.bf16.msra.mxu0 %v1905
    %2549 = vmatprep.subr.bf16.mxu0 0
    %2550 = vmatpush1.bf16.msra.mxu0 %v1900
    %2551 = vmatprep.subr.bf16.mxu0 0
    %2552 = vmatpush1.bf16.msra.mxu0 %v1895
    %2553 = vmatprep.subr.bf16.mxu0 0
    %2554 = vmatpush2.bf16.msra.mxu0 %v1970
    %2555 = vmatprep.subr.bf16.mxu0 0
    %2556 = vmatpush2.bf16.msra.mxu0 %v1965
    %2557 = vmatprep.subr.bf16.mxu0 0
    %2558 = vmatpush2.bf16.msra.mxu0 %v1960
    %2559 = vmatprep.subr.bf16.mxu0 0
    %2560 = vmatpush2.bf16.msra.mxu0 %v1955
    %2561 = vmatprep.subr.bf16.mxu0 0
    %2562 = vmatpush2.bf16.msra.mxu0 %v1950
    %2563 = vmatprep.subr.bf16.mxu0 0
    %2564 = vmatpush2.bf16.msra.mxu0 %v1945
    %2565 = vmatprep.subr.bf16.mxu0 0
    %2566 = vmatpush2.bf16.msra.mxu0 %v1940
    %2567 = vmatprep.subr.bf16.mxu0 0
    %2568 = vmatpush2.bf16.msra.mxu0 %v1935
    %2569 = vmatprep.mubr.bf16.mxu0 %v146
    %2570 = vmatmul.mubr.bf16.gmra.mxu0 %v145
    %v2571 = vpop.f32.mrf.mxu0
    %v2572 = vadd.f32 %v2532, %v2571
    %v2573 = vpop.f32.mrf.mxu0
    %v2574 = vpop.f32.mrf.mxu0
    %v2575 = vpop.f32.mrf.mxu0
    %2576 = vdwg.mxu0
    %v3105 = vunpack.c.l.b16 %v147
    %v3106 = vunpack.c.h.b16 %v147
    %v3107 = vunpack.c.l.b16 %v148
    %v3108 = vunpack.c.h.b16 %v148
    %v3109 = vunpack.c.l.b16 %v149
    %v3110 = vunpack.c.l.b16 %v150
    %v3111 = vunpack.c.h.b16 %v150
    %v3112 = vunpack.c.l.b16 %v151
    %v3113 = vunpack.c.h.b16 %v151
    %v3114 = vunpack.c.l.b16 %v152
    %v3115 = vunpack.c.l.b16 %v153
    %v3116 = vunpack.c.h.b16 %v153
    %v3117 = vunpack.c.l.b16 %v154
    %v3118 = vunpack.c.h.b16 %v154
    %v3119 = vunpack.c.l.b16 %v155
    %v3120 = vunpack.c.l.b16 %v156
    %v3121 = vunpack.c.h.b16 %v156
    %v3122 = vunpack.c.l.b16 %v157
    %v3123 = vunpack.c.h.b16 %v157
    %v3124 = vunpack.c.l.b16 %v158
    %v3125 = vunpack.c.l.b16 %v159
    %v3126 = vunpack.c.h.b16 %v159
    %v3127 = vunpack.c.l.b16 %v160
    %v3128 = vunpack.c.h.b16 %v160
    %v3129 = vunpack.c.l.b16 %v161
    %v3130 = vunpack.c.l.b16 %v162
    %v3131 = vunpack.c.h.b16 %v162
    %v3132 = vunpack.c.l.b16 %v163
    %v3133 = vunpack.c.h.b16 %v163
    %v3134 = vunpack.c.l.b16 %v164
    %v3135 = vunpack.c.l.b16 %v165
    %v3136 = vunpack.c.h.b16 %v165
    %v3137 = vunpack.c.l.b16 %v166
    %v3138 = vunpack.c.h.b16 %v166
    %v3139 = vunpack.c.l.b16 %v167
    %v3140 = vunpack.c.l.b16 %v168
    %v3141 = vunpack.c.h.b16 %v168
    %v3142 = vunpack.c.l.b16 %v169
    %v3143 = vunpack.c.h.b16 %v169
    %v3144 = vunpack.c.l.b16 %v170
    %v3145 = vunpack.c.l.b16 %v171
    %v3146 = vunpack.c.h.b16 %v171
    %v3147 = vunpack.c.l.b16 %v172
    %v3148 = vunpack.c.h.b16 %v172
    %v3149 = vunpack.c.l.b16 %v173
    %v3150 = vunpack.c.l.b16 %v174
    %v3151 = vunpack.c.h.b16 %v174
    %v3152 = vunpack.c.l.b16 %v175
    %v3153 = vunpack.c.h.b16 %v175
    %v3154 = vunpack.c.l.b16 %v176
    %v3155 = vunpack.c.l.b16 %v177
    %v3156 = vunpack.c.h.b16 %v177
    %v3157 = vunpack.c.l.b16 %v178
    %v3158 = vunpack.c.h.b16 %v178
    %v3159 = vunpack.c.l.b16 %v179
    %v3160 = vunpack.c.l.b16 %v180
    %v3161 = vunpack.c.h.b16 %v180
    %v3162 = vunpack.c.l.b16 %v181
    %v3163 = vunpack.c.h.b16 %v181
    %v3164 = vunpack.c.l.b16 %v182
    %v3165 = vunpack.c.l.b16 %v183
    %v3166 = vunpack.c.h.b16 %v183
    %v3167 = vunpack.c.l.b16 %v184
    %v3168 = vunpack.c.h.b16 %v184
    %v3169 = vunpack.c.l.b16 %v185
    %v3170 = vunpack.c.l.b16 %v186
    %v3171 = vunpack.c.h.b16 %v186
    %v3172 = vunpack.c.l.b16 %v187
    %v3173 = vunpack.c.h.b16 %v187
    %v3174 = vunpack.c.l.b16 %v188
    %v3175 = vunpack.c.l.b16 %v189
    %v3176 = vunpack.c.h.b16 %v189
    %v3177 = vunpack.c.l.b16 %v190
    %v3178 = vunpack.c.h.b16 %v190
    %v3179 = vunpack.c.l.b16 %v191
    %v3180 = vunpack.c.l.b16 %v192
    %v3181 = vunpack.c.h.b16 %v192
    %v3182 = vunpack.c.l.b16 %v193
    %v3183 = vunpack.c.h.b16 %v193
    %v3184 = vunpack.c.l.b16 %v194
    %v3185 = vunpack.c.l.b16 %v195
    %v3186 = vunpack.c.h.b16 %v195
    %v3187 = vunpack.c.l.b16 %v196
    %v3188 = vunpack.c.h.b16 %v196
    %v3189 = vunpack.c.l.b16 %v197
    %v3190 = vunpack.c.l.b16 %v198
    %v3191 = vunpack.c.h.b16 %v198
    %v3192 = vunpack.c.l.b16 %v199
    %v3193 = vunpack.c.h.b16 %v199
    %v3194 = vunpack.c.l.b16 %v200
    %v3195 = vunpack.c.l.b16 %v201
    %v3196 = vunpack.c.h.b16 %v201
    %v3197 = vunpack.c.l.b16 %v202
    %v3198 = vunpack.c.h.b16 %v202
    %v3199 = vunpack.c.l.b16 %v203
    %v3200 = vunpack.c.l.b16 %v204
    %v3201 = vunpack.c.h.b16 %v204
    %v3202 = vunpack.c.l.b16 %v205
    %v3203 = vunpack.c.h.b16 %v205
    %v3204 = vunpack.c.l.b16 %v206
    %v3205 = vunpack.c.l.b16 %v207
    %v3206 = vunpack.c.h.b16 %v207
    %v3207 = vunpack.c.l.b16 %v208
    %v3208 = vunpack.c.h.b16 %v208
    %v3209 = vunpack.c.l.b16 %v209
    %v3210 = vunpack.c.l.b16 %v210
    %v3211 = vunpack.c.h.b16 %v210
    %v3212 = vunpack.c.l.b16 %v211
    %v3213 = vunpack.c.h.b16 %v211
    %v3214 = vunpack.c.l.b16 %v212
    %v3215 = vunpack.c.l.b16 %v213
    %v3216 = vunpack.c.h.b16 %v213
    %v3217 = vunpack.c.l.b16 %v214
    %v3218 = vunpack.c.h.b16 %v214
    %v3219 = vunpack.c.l.b16 %v215
    %v3220 = vunpack.c.l.b16 %v216
    %v3221 = vunpack.c.h.b16 %v216
    %v3222 = vunpack.c.l.b16 %v217
    %v3223 = vunpack.c.h.b16 %v217
    %v3224 = vunpack.c.l.b16 %v218
    %v3225 = vunpack.c.l.b16 %v219
    %v3226 = vunpack.c.h.b16 %v219
    %v3227 = vunpack.c.l.b16 %v220
    %v3228 = vunpack.c.h.b16 %v220
    %v3229 = vunpack.c.l.b16 %v221
    %v3230 = vunpack.c.l.b16 %v222
    %v3231 = vunpack.c.h.b16 %v222
    %v3232 = vunpack.c.l.b16 %v223
    %v3233 = vunpack.c.h.b16 %v223
    %v3234 = vunpack.c.l.b16 %v224
    %v3235 = vunpack.c.l.b16 %v225
    %v3236 = vunpack.c.h.b16 %v225
    %v3237 = vunpack.c.l.b16 %v226
    %v3238 = vunpack.c.h.b16 %v226
    %v3239 = vunpack.c.l.b16 %v227
    %v3240 = vunpack.c.l.b16 %v228
    %v3241 = vunpack.c.h.b16 %v228
    %v3242 = vunpack.c.l.b16 %v229
    %v3243 = vunpack.c.h.b16 %v229
    %v3244 = vunpack.c.l.b16 %v230
    %v3245 = vunpack.c.l.b16 %v231
    %v3246 = vunpack.c.h.b16 %v231
    %v3247 = vunpack.c.l.b16 %v232
    %v3248 = vunpack.c.h.b16 %v232
    %v3249 = vunpack.c.l.b16 %v233
    %v3250 = vunpack.c.l.b16 %v234
    %v3251 = vunpack.c.h.b16 %v234
    %v3252 = vunpack.c.l.b16 %v235
    %v3253 = vunpack.c.h.b16 %v235
    %v3254 = vunpack.c.l.b16 %v236
    %v3255 = vunpack.c.l.b16 %v237
    %v3256 = vunpack.c.h.b16 %v237
    %v3257 = vunpack.c.l.b16 %v238
    %v3258 = vunpack.c.h.b16 %v238
    %v3259 = vunpack.c.l.b16 %v239
    %v3260 = vunpack.c.l.b16 %v240
    %v3261 = vunpack.c.h.b16 %v240
    %v3262 = vunpack.c.l.b16 %v241
    %v3263 = vunpack.c.h.b16 %v241
    %v3264 = vunpack.c.l.b16 %v242
    %v3265 = vunpack.c.l.b16 %v243
    %v3266 = vunpack.c.h.b16 %v243
    %v3267 = vunpack.c.l.b16 %v244
    %v3268 = vunpack.c.h.b16 %v244
    %v3269 = vunpack.c.l.b16 %v245
    %v3270 = vunpack.c.l.b16 %v246
    %v3271 = vunpack.c.h.b16 %v246
    %v3272 = vunpack.c.l.b16 %v247
    %v3273 = vunpack.c.h.b16 %v247
    %v3274 = vunpack.c.l.b16 %v248
    %v3275 = vunpack.c.l.b16 %v249
    %v3276 = vunpack.c.h.b16 %v249
    %v3277 = vunpack.c.l.b16 %v250
    %v3278 = vunpack.c.h.b16 %v250
    %v3279 = vunpack.c.l.b16 %v251
    %v3280 = vunpack.c.l.b16 %v252
    %v3281 = vunpack.c.h.b16 %v252
    %v3282 = vunpack.c.l.b16 %v253
    %v3283 = vunpack.c.h.b16 %v253
    %v3284 = vunpack.c.l.b16 %v254
    %v3285 = vunpack.c.l.b16 %v255
    %v3286 = vunpack.c.h.b16 %v255
    %v3287 = vunpack.c.l.b16 %v256
    %v3288 = vunpack.c.h.b16 %v256
    %v3289 = vunpack.c.l.b16 %v257
    %v3290 = vunpack.c.l.b16 %v258
    %v3291 = vunpack.c.h.b16 %v258
    %v3292 = vunpack.c.l.b16 %v259
    %v3293 = vunpack.c.h.b16 %v259
    %v3294 = vunpack.c.l.b16 %v260
    %v3295 = vunpack.c.l.b16 %v261
    %v3296 = vunpack.c.h.b16 %v261
    %v3297 = vunpack.c.l.b16 %v262
    %v3298 = vunpack.c.h.b16 %v262
    %v3299 = vunpack.c.l.b16 %v263
    %v3300 = vunpack.c.l.b16 %v264
    %v3301 = vunpack.c.h.b16 %v264
    %v3302 = vunpack.c.l.b16 %v265
    %v3303 = vunpack.c.h.b16 %v265
    %v3304 = vunpack.c.l.b16 %v266
    %v3305 = vunpack.c.l.b16 %v267
    %v3306 = vunpack.c.h.b16 %v267
    %v3307 = vunpack.c.l.b16 %v268
    %v3308 = vunpack.c.h.b16 %v268
    %v3309 = vunpack.c.l.b16 %v269
    %v3310 = vunpack.c.l.b16 %v270
    %v3311 = vunpack.c.h.b16 %v270
    %v3312 = vunpack.c.l.b16 %v271
    %v3313 = vunpack.c.h.b16 %v271
    %v3314 = vunpack.c.l.b16 %v272
    %v3315 = vunpack.c.l.b16 %v273
    %v3316 = vunpack.c.h.b16 %v273
    %v3317 = vunpack.c.l.b16 %v274
    %v3318 = vunpack.c.h.b16 %v274
    %v3319 = vunpack.c.l.b16 %v275
    %v3320 = vunpack.c.l.b16 %v276
    %v3321 = vunpack.c.h.b16 %v276
    %v3322 = vunpack.c.l.b16 %v277
    %v3323 = vunpack.c.h.b16 %v277
    %v3324 = vunpack.c.l.b16 %v278
    %v3325 = vunpack.c.l.b16 %v279
    %v3326 = vunpack.c.h.b16 %v279
    %v3327 = vunpack.c.l.b16 %v280
    %v3328 = vunpack.c.h.b16 %v280
    %v3329 = vunpack.c.l.b16 %v281
    %v3330 = vunpack.c.l.b16 %v282
    %v3331 = vunpack.c.h.b16 %v282
    %v3332 = vunpack.c.l.b16 %v283
    %v3333 = vunpack.c.h.b16 %v283
    %v3334 = vunpack.c.l.b16 %v284
    %v3335 = vunpack.c.l.b16 %v285
    %v3336 = vunpack.c.h.b16 %v285
    %v3337 = vunpack.c.l.b16 %v286
    %v3338 = vunpack.c.h.b16 %v286
    %v3339 = vunpack.c.l.b16 %v287
    %v3340 = vunpack.c.l.b16 %v288
    %v3341 = vunpack.c.h.b16 %v288
    %v3342 = vunpack.c.l.b16 %v289
    %v3343 = vunpack.c.h.b16 %v289
    %v3344 = vunpack.c.l.b16 %v290
    %v3345 = vunpack.c.l.b16 %v291
    %v3346 = vunpack.c.h.b16 %v291
    %v3347 = vunpack.c.l.b16 %v292
    %v3348 = vunpack.c.h.b16 %v292
    %v3349 = vunpack.c.l.b16 %v293
    %v3350 = vunpack.c.l.b16 %v294
    %v3351 = vunpack.c.h.b16 %v294
    %v3352 = vunpack.c.l.b16 %v295
    %v3353 = vunpack.c.h.b16 %v295
    %v3354 = vunpack.c.l.b16 %v296
    %v3355 = vunpack.c.l.b16 %v297
    %v3356 = vunpack.c.h.b16 %v297
    %v3357 = vunpack.c.l.b16 %v298
    %v3358 = vunpack.c.h.b16 %v298
    %v3359 = vunpack.c.l.b16 %v299
    %v3360 = vunpack.c.l.b16 %v300
    %v3361 = vunpack.c.h.b16 %v300
    %v3362 = vunpack.c.l.b16 %v301
    %v3363 = vunpack.c.h.b16 %v301
    %v3364 = vunpack.c.l.b16 %v302
    %v3365 = vunpack.c.l.b16 %v303
    %v3366 = vunpack.c.h.b16 %v303
    %v3367 = vunpack.c.l.b16 %v304
    %v3368 = vunpack.c.h.b16 %v304
    %v3369 = vunpack.c.l.b16 %v305
    %v3370 = vunpack.c.l.b16 %v306
    %v3371 = vunpack.c.h.b16 %v306
    %v3372 = vunpack.c.l.b16 %v307
    %v3373 = vunpack.c.h.b16 %v307
    %v3374 = vunpack.c.l.b16 %v308
    %v3375 = vunpack.c.l.b16 %v309
    %v3376 = vunpack.c.h.b16 %v309
    %v3377 = vunpack.c.l.b16 %v310
    %v3378 = vunpack.c.h.b16 %v310
    %v3379 = vunpack.c.l.b16 %v311
    %v3380 = vunpack.c.l.b16 %v312
    %v3381 = vunpack.c.h.b16 %v312
    %v3382 = vunpack.c.l.b16 %v313
    %v3383 = vunpack.c.h.b16 %v313
    %v3384 = vunpack.c.l.b16 %v314
    %v3385 = vunpack.c.l.b16 %v315
    %v3386 = vunpack.c.h.b16 %v315
    %v3387 = vunpack.c.l.b16 %v316
    %v3388 = vunpack.c.h.b16 %v316
    %v3389 = vunpack.c.l.b16 %v317
    %v3390 = vunpack.c.l.b16 %v318
    %v3391 = vunpack.c.h.b16 %v318
    %v3392 = vunpack.c.l.b16 %v319
    %v3393 = vunpack.c.h.b16 %v319
    %v3394 = vunpack.c.l.b16 %v320
    %v3395 = vunpack.c.l.b16 %v321
    %v3396 = vunpack.c.h.b16 %v321
    %v3397 = vunpack.c.l.b16 %v322
    %v3398 = vunpack.c.h.b16 %v322
    %v3399 = vunpack.c.l.b16 %v323
    %v3400 = vunpack.c.l.b16 %v324
    %v3401 = vunpack.c.h.b16 %v324
    %v3402 = vunpack.c.l.b16 %v325
    %v3403 = vunpack.c.h.b16 %v325
    %v3404 = vunpack.c.l.b16 %v326
    %v3405 = vunpack.c.l.b16 %v327
    %v3406 = vunpack.c.h.b16 %v327
    %v3407 = vunpack.c.l.b16 %v328
    %v3408 = vunpack.c.h.b16 %v328
    %v3409 = vunpack.c.l.b16 %v329
    %v3410 = vunpack.c.l.b16 %v330
    %v3411 = vunpack.c.h.b16 %v330
    %v3412 = vunpack.c.l.b16 %v331
    %v3413 = vunpack.c.h.b16 %v331
    %v3414 = vunpack.c.l.b16 %v332
    %v3415 = vunpack.c.l.b16 %v333
    %v3416 = vunpack.c.h.b16 %v333
    %v3417 = vunpack.c.l.b16 %v334
    %v3418 = vunpack.c.h.b16 %v334
    %v3419 = vunpack.c.l.b16 %v335
    %v3420 = vunpack.c.l.b16 %v336
    %v3421 = vunpack.c.h.b16 %v336
    %v3422 = vunpack.c.l.b16 %v337
    %v3423 = vunpack.c.h.b16 %v337
    %v3424 = vunpack.c.l.b16 %v338
    %v3425 = vunpack.c.l.b16 %v339
    %v3426 = vunpack.c.h.b16 %v339
    %v3427 = vunpack.c.l.b16 %v340
    %v3428 = vunpack.c.h.b16 %v340
    %v3429 = vunpack.c.l.b16 %v341
    %v3430 = vunpack.c.l.b16 %v342
    %v3431 = vunpack.c.h.b16 %v342
    %v3432 = vunpack.c.l.b16 %v343
    %v3433 = vunpack.c.h.b16 %v343
    %v3434 = vunpack.c.l.b16 %v344
    %v3435 = vunpack.c.l.b16 %v345
    %v3436 = vunpack.c.h.b16 %v345
    %v3437 = vunpack.c.l.b16 %v346
    %v3438 = vunpack.c.h.b16 %v346
    %v3439 = vunpack.c.l.b16 %v347
    %v3440 = vunpack.c.l.b16 %v348
    %v3441 = vunpack.c.h.b16 %v348
    %v3442 = vunpack.c.l.b16 %v349
    %v3443 = vunpack.c.h.b16 %v349
    %v3444 = vunpack.c.l.b16 %v350
    %v3445 = vunpack.c.l.b16 %v351
    %v3446 = vunpack.c.h.b16 %v351
    %v3447 = vunpack.c.l.b16 %v352
    %v3448 = vunpack.c.h.b16 %v352
    %v3449 = vunpack.c.l.b16 %v353
    %v3450 = vunpack.c.l.b16 %v354
    %v3451 = vunpack.c.h.b16 %v354
    %v3452 = vunpack.c.l.b16 %v355
    %v3453 = vunpack.c.h.b16 %v355
    %v3454 = vunpack.c.l.b16 %v356
    %v3455 = vunpack.c.l.b16 %v357
    %v3456 = vunpack.c.h.b16 %v357
    %v3457 = vunpack.c.l.b16 %v358
    %v3458 = vunpack.c.h.b16 %v358
    %v3459 = vunpack.c.l.b16 %v359
    %v3460 = vunpack.c.l.b16 %v360
    %v3461 = vunpack.c.h.b16 %v360
    %v3462 = vunpack.c.l.b16 %v361
    %v3463 = vunpack.c.h.b16 %v361
    %v3464 = vunpack.c.l.b16 %v362
    %v3465 = vunpack.c.l.b16 %v363
    %v3466 = vunpack.c.h.b16 %v363
    %v3467 = vunpack.c.l.b16 %v364
    %v3468 = vunpack.c.h.b16 %v364
    %v3469 = vunpack.c.l.b16 %v365
    %v3470 = vunpack.c.l.b16 %v366
    %v3471 = vunpack.c.h.b16 %v366
    %v3472 = vunpack.c.l.b16 %v367
    %v3473 = vunpack.c.h.b16 %v367
    %v3474 = vunpack.c.l.b16 %v368
    %v3475 = vunpack.c.l.b16 %v369
    %v3476 = vunpack.c.h.b16 %v369
    %v3477 = vunpack.c.l.b16 %v370
    %v3478 = vunpack.c.h.b16 %v370
    %v3479 = vunpack.c.l.b16 %v371
    %v3480 = vunpack.c.l.b16 %v372
    %v3481 = vunpack.c.h.b16 %v372
    %v3482 = vunpack.c.l.b16 %v373
    %v3483 = vunpack.c.h.b16 %v373
    %v3484 = vunpack.c.l.b16 %v374
    %v3485 = vunpack.c.l.b16 %v375
    %v3486 = vunpack.c.h.b16 %v375
    %v3487 = vunpack.c.l.b16 %v376
    %v3488 = vunpack.c.h.b16 %v376
    %v3489 = vunpack.c.l.b16 %v377
    %v3490 = vunpack.c.l.b16 %v378
    %v3491 = vunpack.c.h.b16 %v378
    %v3492 = vunpack.c.l.b16 %v379
    %v3493 = vunpack.c.h.b16 %v379
    %v3494 = vunpack.c.l.b16 %v380
    %v3495 = vunpack.c.l.b16 %v381
    %v3496 = vunpack.c.h.b16 %v381
    %v3497 = vunpack.c.l.b16 %v382
    %v3498 = vunpack.c.h.b16 %v382
    %v3499 = vunpack.c.l.b16 %v383
    %v3500 = vunpack.c.l.b16 %v384
    %v3501 = vunpack.c.h.b16 %v384
    %v3502 = vunpack.c.l.b16 %v385
    %v3503 = vunpack.c.h.b16 %v385
    %v3504 = vunpack.c.l.b16 %v386
    %v3505 = vunpack.c.l.b16 %v387
    %v3506 = vunpack.c.h.b16 %v387
    %v3507 = vunpack.c.l.b16 %v388
    %v3508 = vunpack.c.h.b16 %v388
    %v3509 = vunpack.c.l.b16 %v389
    %v3510 = vunpack.c.l.b16 %v390
    %v3511 = vunpack.c.h.b16 %v390
    %v3512 = vunpack.c.l.b16 %v391
    %v3513 = vunpack.c.h.b16 %v391
    %v3514 = vunpack.c.l.b16 %v392
    %v3515 = vunpack.c.l.b16 %v393
    %v3516 = vunpack.c.h.b16 %v393
    %v3517 = vunpack.c.l.b16 %v394
    %v3518 = vunpack.c.h.b16 %v394
    %v3519 = vunpack.c.l.b16 %v395
    %v3520 = vunpack.c.l.b16 %v396
    %v3521 = vunpack.c.h.b16 %v396
    %v3522 = vunpack.c.l.b16 %v397
    %v3523 = vunpack.c.h.b16 %v397
    %v3524 = vunpack.c.l.b16 %v398
    %v3525 = vunpack.c.l.b16 %v399
    %v3526 = vunpack.c.h.b16 %v399
    %v3527 = vunpack.c.l.b16 %v400
    %v3528 = vunpack.c.h.b16 %v400
    %v3529 = vunpack.c.l.b16 %v401
    %v3530 = vunpack.c.l.b16 %v402
    %v3531 = vunpack.c.h.b16 %v402
    %v3532 = vunpack.c.l.b16 %v403
    %v3533 = vunpack.c.h.b16 %v403
    %v3534 = vunpack.c.l.b16 %v404
    %v3535 = vunpack.c.l.b16 %v405
    %v3536 = vunpack.c.h.b16 %v405
    %v3537 = vunpack.c.l.b16 %v406
    %v3538 = vunpack.c.h.b16 %v406
    %v3539 = vunpack.c.l.b16 %v407
    %v3540 = vunpack.c.l.b16 %v408
    %v3541 = vunpack.c.h.b16 %v408
    %v3542 = vunpack.c.l.b16 %v409
    %v3543 = vunpack.c.h.b16 %v409
    %v3544 = vunpack.c.l.b16 %v410
    %v3545 = vunpack.c.l.b16 %v411
    %v3546 = vunpack.c.h.b16 %v411
    %v3547 = vunpack.c.l.b16 %v412
    %v3548 = vunpack.c.h.b16 %v412
    %v3549 = vunpack.c.l.b16 %v413
    %v3550 = vunpack.c.l.b16 %v414
    %v3551 = vunpack.c.h.b16 %v414
    %v3552 = vunpack.c.l.b16 %v415
    %v3553 = vunpack.c.h.b16 %v415
    %v3554 = vunpack.c.l.b16 %v416
    %v3555 = vunpack.c.l.b16 %v417
    %v3556 = vunpack.c.h.b16 %v417
    %v3557 = vunpack.c.l.b16 %v418
    %v3558 = vunpack.c.h.b16 %v418
    %v3559 = vunpack.c.l.b16 %v419
    %v3560 = vunpack.c.l.b16 %v420
    %v3561 = vunpack.c.h.b16 %v420
    %v3562 = vunpack.c.l.b16 %v421
    %v3563 = vunpack.c.h.b16 %v421
    %v3564 = vunpack.c.l.b16 %v422
    %v3565 = vunpack.c.l.b16 %v423
    %v3566 = vunpack.c.h.b16 %v423
    %v3567 = vunpack.c.l.b16 %v424
    %v3568 = vunpack.c.h.b16 %v424
    %v3569 = vunpack.c.l.b16 %v425
    %v3570 = vunpack.c.l.b16 %v426
    %v3571 = vunpack.c.h.b16 %v426
    %v3572 = vunpack.c.l.b16 %v427
    %v3573 = vunpack.c.h.b16 %v427
    %v3574 = vunpack.c.l.b16 %v428
    %v3575 = vunpack.c.l.b16 %v429
    %v3576 = vunpack.c.h.b16 %v429
    %v3577 = vunpack.c.l.b16 %v430
    %v3578 = vunpack.c.h.b16 %v430
    %v3579 = vunpack.c.l.b16 %v431
    %v3580 = vunpack.c.l.b16 %v432
    %v3581 = vunpack.c.h.b16 %v432
    %v3582 = vunpack.c.l.b16 %v433
    %v3583 = vunpack.c.h.b16 %v433
    %v3584 = vunpack.c.l.b16 %v434
    %v3585 = vunpack.c.l.b16 %v435
    %v3586 = vunpack.c.h.b16 %v435
    %v3587 = vunpack.c.l.b16 %v436
    %v3588 = vunpack.c.h.b16 %v436
    %v3589 = vunpack.c.l.b16 %v437
    %v3590 = vunpack.c.l.b16 %v438
    %v3591 = vunpack.c.h.b16 %v438
    %v3592 = vunpack.c.l.b16 %v439
    %v3593 = vunpack.c.h.b16 %v439
    %v3594 = vunpack.c.l.b16 %v440
    %v3595 = vunpack.c.l.b16 %v441
    %v3596 = vunpack.c.h.b16 %v441
    %v3597 = vunpack.c.l.b16 %v442
    %v3598 = vunpack.c.h.b16 %v442
    %v3599 = vunpack.c.l.b16 %v443
    %v3600 = vunpack.c.l.b16 %v444
    %v3601 = vunpack.c.h.b16 %v444
    %v3602 = vunpack.c.l.b16 %v445
    %v3603 = vunpack.c.h.b16 %v445
    %v3604 = vunpack.c.l.b16 %v446
    %v3605 = vunpack.c.l.b16 %v447
    %v3606 = vunpack.c.h.b16 %v447
    %v3607 = vunpack.c.l.b16 %v448
    %v3608 = vunpack.c.h.b16 %v448
    %v3609 = vunpack.c.l.b16 %v449
    %v3610 = vunpack.c.l.b16 %v450
    %v3611 = vunpack.c.h.b16 %v450
    %v3612 = vunpack.c.l.b16 %v451
    %v3613 = vunpack.c.h.b16 %v451
    %v3614 = vunpack.c.l.b16 %v452
    %v3615 = vunpack.c.l.b16 %v453
    %v3616 = vunpack.c.h.b16 %v453
    %v3617 = vunpack.c.l.b16 %v454
    %v3618 = vunpack.c.h.b16 %v454
    %v3619 = vunpack.c.l.b16 %v455
    %v3620 = vunpack.c.l.b16 %v456
    %v3621 = vunpack.c.h.b16 %v456
    %v3622 = vunpack.c.l.b16 %v457
    %v3623 = vunpack.c.h.b16 %v457
    %v3624 = vunpack.c.l.b16 %v458
    %v3625 = vunpack.c.l.b16 %v459
    %v3626 = vunpack.c.h.b16 %v459
    %v3627 = vunpack.c.l.b16 %v460
    %v3628 = vunpack.c.h.b16 %v460
    %v3629 = vunpack.c.l.b16 %v461
    %v3630 = vunpack.c.l.b16 %v462
    %v3631 = vunpack.c.h.b16 %v462
    %v3632 = vunpack.c.l.b16 %v463
    %v3633 = vunpack.c.h.b16 %v463
    %v3634 = vunpack.c.l.b16 %v464
    %v3635 = vunpack.c.l.b16 %v465
    %v3636 = vunpack.c.h.b16 %v465
    %v3637 = vunpack.c.l.b16 %v466
    %v3638 = vunpack.c.h.b16 %v466
    %v3639 = vunpack.c.l.b16 %v467
    %v3640 = vunpack.c.l.b16 %v468
    %v3641 = vunpack.c.h.b16 %v468
    %v3642 = vunpack.c.l.b16 %v469
    %v3643 = vunpack.c.h.b16 %v469
    %v3644 = vunpack.c.l.b16 %v470
    %v3645 = vunpack.c.l.b16 %v471
    %v3646 = vunpack.c.h.b16 %v471
    %v3647 = vunpack.c.l.b16 %v472
    %v3648 = vunpack.c.h.b16 %v472
    %v3649 = vunpack.c.l.b16 %v473
    %v3650 = vunpack.c.l.b16 %v474
    %v3651 = vunpack.c.h.b16 %v474
    %v3652 = vunpack.c.l.b16 %v475
    %v3653 = vunpack.c.h.b16 %v475
    %v3654 = vunpack.c.l.b16 %v476
    %v3655 = vunpack.c.l.b16 %v477
    %v3656 = vunpack.c.h.b16 %v477
    %v3657 = vunpack.c.l.b16 %v478
    %v3658 = vunpack.c.h.b16 %v478
    %v3659 = vunpack.c.l.b16 %v479
    %v3660 = vunpack.c.l.b16 %v480
    %v3661 = vunpack.c.h.b16 %v480
    %v3662 = vunpack.c.l.b16 %v481
    %v3663 = vunpack.c.h.b16 %v481
    %v3664 = vunpack.c.l.b16 %v482
    %v3665 = vunpack.c.l.b16 %v483
    %v3666 = vunpack.c.h.b16 %v483
    %v3667 = vunpack.c.l.b16 %v484
    %v3668 = vunpack.c.h.b16 %v484
    %v3669 = vunpack.c.l.b16 %v485
    %v3670 = vunpack.c.l.b16 %v486
    %v3671 = vunpack.c.h.b16 %v486
    %v3672 = vunpack.c.l.b16 %v487
    %v3673 = vunpack.c.h.b16 %v487
    %v3674 = vunpack.c.l.b16 %v488
    %v3675 = vunpack.c.l.b16 %v489
    %v3676 = vunpack.c.h.b16 %v489
    %v3677 = vunpack.c.l.b16 %v490
    %v3678 = vunpack.c.h.b16 %v490
    %v3679 = vunpack.c.l.b16 %v491
    %v3680 = vunpack.c.l.b16 %v492
    %v3681 = vunpack.c.h.b16 %v492
    %v3682 = vunpack.c.l.b16 %v493
    %v3683 = vunpack.c.h.b16 %v493
    %v3684 = vunpack.c.l.b16 %v494
    %v3685 = vunpack.c.l.b16 %v495
    %v3686 = vunpack.c.h.b16 %v495
    %v3687 = vunpack.c.l.b16 %v496
    %v3688 = vunpack.c.h.b16 %v496
    %v3689 = vunpack.c.l.b16 %v497
    %v3690 = vunpack.c.l.b16 %v498
    %v3691 = vunpack.c.h.b16 %v498
    %v3692 = vunpack.c.l.b16 %v499
    %v3693 = vunpack.c.h.b16 %v499
    %v3694 = vunpack.c.l.b16 %v500
    %v3695 = vunpack.c.l.b16 %v501
    %v3696 = vunpack.c.h.b16 %v501
    %v3697 = vunpack.c.l.b16 %v502
    %v3698 = vunpack.c.h.b16 %v502
    %v3699 = vunpack.c.l.b16 %v503
    %v3700 = vunpack.c.l.b16 %v504
    %v3701 = vunpack.c.h.b16 %v504
    %v3702 = vunpack.c.l.b16 %v505
    %v3703 = vunpack.c.h.b16 %v505
    %v3704 = vunpack.c.l.b16 %v506
    %v3705 = vunpack.c.l.b16 %v507
    %v3706 = vunpack.c.h.b16 %v507
    %v3707 = vunpack.c.l.b16 %v508
    %v3708 = vunpack.c.h.b16 %v508
    %v3709 = vunpack.c.l.b16 %v509
    %v3710 = vunpack.c.l.b16 %v510
    %v3711 = vunpack.c.h.b16 %v510
    %v3712 = vunpack.c.l.b16 %v511
    %v3713 = vunpack.c.h.b16 %v511
    %v3714 = vunpack.c.l.b16 %v512
    %v3715 = vunpack.c.l.b16 %v513
    %v3716 = vunpack.c.h.b16 %v513
    %v3717 = vunpack.c.l.b16 %v514
    %v3718 = vunpack.c.h.b16 %v514
    %v3719 = vunpack.c.l.b16 %v515
    %v3720 = vunpack.c.l.b16 %v516
    %v3721 = vunpack.c.h.b16 %v516
    %v3722 = vunpack.c.l.b16 %v517
    %v3723 = vunpack.c.h.b16 %v517
    %v3724 = vunpack.c.l.b16 %v518
    %v3725 = vunpack.c.l.b16 %v519
    %v3726 = vunpack.c.h.b16 %v519
    %v3727 = vunpack.c.l.b16 %v520
    %v3728 = vunpack.c.h.b16 %v520
    %v3729 = vunpack.c.l.b16 %v521
    %v3730 = vunpack.c.l.b16 %v522
    %v3731 = vunpack.c.h.b16 %v522
    %v3732 = vunpack.c.l.b16 %v523
    %v3733 = vunpack.c.h.b16 %v523
    %v3734 = vunpack.c.l.b16 %v524
    %v3735 = vunpack.c.l.b16 %v525
    %v3736 = vunpack.c.h.b16 %v525
    %v3737 = vunpack.c.l.b16 %v526
    %v3738 = vunpack.c.h.b16 %v526
    %v3739 = vunpack.c.l.b16 %v527
    %v3740 = vunpack.c.l.b16 %v528
    %v3741 = vunpack.c.h.b16 %v528
    %v3742 = vunpack.c.l.b16 %v529
    %v3743 = vunpack.c.h.b16 %v529
    %v3744 = vunpack.c.l.b16 %v530
    %v3745 = vunpack.c.l.b16 %v531
    %v3746 = vunpack.c.h.b16 %v531
    %v3747 = vunpack.c.l.b16 %v532
    %v3748 = vunpack.c.h.b16 %v532
    %v3749 = vunpack.c.l.b16 %v533
    %v3750 = vunpack.c.l.b16 %v534
    %v3751 = vunpack.c.h.b16 %v534
    %v3752 = vunpack.c.l.b16 %v535
    %v3753 = vunpack.c.h.b16 %v535
    %v3754 = vunpack.c.l.b16 %v536
    %v3755 = vunpack.c.l.b16 %v537
    %v3756 = vunpack.c.h.b16 %v537
    %v3757 = vunpack.c.l.b16 %v538
    %v3758 = vunpack.c.h.b16 %v538
    %v3759 = vunpack.c.l.b16 %v539
    %v3760 = vunpack.c.l.b16 %v540
    %v3761 = vunpack.c.h.b16 %v540
    %v3762 = vunpack.c.l.b16 %v541
    %v3763 = vunpack.c.h.b16 %v541
    %v3764 = vunpack.c.l.b16 %v542
    %v3765 = vunpack.c.l.b16 %v543
    %v3766 = vunpack.c.h.b16 %v543
    %v3767 = vunpack.c.l.b16 %v544
    %v3768 = vunpack.c.h.b16 %v544
    %v3769 = vunpack.c.l.b16 %v545
    %v3770 = vunpack.c.l.b16 %v546
    %v3771 = vunpack.c.h.b16 %v546
    %v3772 = vunpack.c.l.b16 %v547
    %v3773 = vunpack.c.h.b16 %v547
    %v3774 = vunpack.c.l.b16 %v548
    %v3775 = vunpack.c.l.b16 %v549
    %v3776 = vunpack.c.h.b16 %v549
    %v3777 = vunpack.c.l.b16 %v550
    %v3778 = vunpack.c.h.b16 %v550
    %v3779 = vunpack.c.l.b16 %v551
    %v3780 = vunpack.c.l.b16 %v552
    %v3781 = vunpack.c.h.b16 %v552
    %v3782 = vunpack.c.l.b16 %v553
    %v3783 = vunpack.c.h.b16 %v553
    %v3784 = vunpack.c.l.b16 %v554
    %v3785 = vunpack.c.l.b16 %v555
    %v3786 = vunpack.c.h.b16 %v555
    %v3787 = vunpack.c.l.b16 %v556
    %v3788 = vunpack.c.h.b16 %v556
    %v3789 = vunpack.c.l.b16 %v557
    %v3790 = vunpack.c.l.b16 %v558
    %v3791 = vunpack.c.h.b16 %v558
    %v3792 = vunpack.c.l.b16 %v559
    %v3793 = vunpack.c.h.b16 %v559
    %v3794 = vunpack.c.l.b16 %v560
    %v3795 = vunpack.c.l.b16 %v561
    %v3796 = vunpack.c.h.b16 %v561
    %v3797 = vunpack.c.l.b16 %v562
    %v3798 = vunpack.c.h.b16 %v562
    %v3799 = vunpack.c.l.b16 %v563
    %v3800 = vunpack.c.l.b16 %v564
    %v3801 = vunpack.c.h.b16 %v564
    %v3802 = vunpack.c.l.b16 %v565
    %v3803 = vunpack.c.h.b16 %v565
    %v3804 = vunpack.c.l.b16 %v566
    %v3805 = vunpack.c.l.b16 %v567
    %v3806 = vunpack.c.h.b16 %v567
    %v3807 = vunpack.c.l.b16 %v568
    %v3808 = vunpack.c.h.b16 %v568
    %v3809 = vunpack.c.l.b16 %v569
    %v3810 = vunpack.c.l.b16 %v570
    %v3811 = vunpack.c.h.b16 %v570
    %v3812 = vunpack.c.l.b16 %v571
    %v3813 = vunpack.c.h.b16 %v571
    %v3814 = vunpack.c.l.b16 %v572
    %v3815 = vunpack.c.l.b16 %v573
    %v3816 = vunpack.c.h.b16 %v573
    %v3817 = vunpack.c.l.b16 %v574
    %v3818 = vunpack.c.h.b16 %v574
    %v3819 = vunpack.c.l.b16 %v575
    %v3820 = vunpack.c.l.b16 %v576
    %v3821 = vunpack.c.h.b16 %v576
    %v3822 = vunpack.c.l.b16 %v577
    %v3823 = vunpack.c.h.b16 %v577
    %v3824 = vunpack.c.l.b16 %v578
    %v3825 = vunpack.c.l.b16 %v579
    %v3826 = vunpack.c.h.b16 %v579
    %v3827 = vunpack.c.l.b16 %v580
    %v3828 = vunpack.c.h.b16 %v580
    %v3829 = vunpack.c.l.b16 %v581
    %v3830 = vunpack.c.l.b16 %v582
    %v3831 = vunpack.c.h.b16 %v582
    %v3832 = vunpack.c.l.b16 %v583
    %v3833 = vunpack.c.h.b16 %v583
    %v3834 = vunpack.c.l.b16 %v584
    %v3835 = vunpack.c.l.b16 %v585
    %v3836 = vunpack.c.h.b16 %v585
    %v3837 = vunpack.c.l.b16 %v586
    %v3838 = vunpack.c.h.b16 %v586
    %v3839 = vunpack.c.l.b16 %v587
    %v3840 = vunpack.c.l.b16 %v588
    %v3841 = vunpack.c.h.b16 %v588
    %v3842 = vunpack.c.l.b16 %v589
    %v3843 = vunpack.c.h.b16 %v589
    %v3844 = vunpack.c.l.b16 %v590
    %v3845 = vunpack.c.l.b16 %v591
    %v3846 = vunpack.c.h.b16 %v591
    %v3847 = vunpack.c.l.b16 %v592
    %v3848 = vunpack.c.h.b16 %v592
    %v3849 = vunpack.c.l.b16 %v593
    %v3850 = vunpack.c.l.b16 %v594
    %v3851 = vunpack.c.h.b16 %v594
    %v3852 = vunpack.c.l.b16 %v595
    %v3853 = vunpack.c.h.b16 %v595
    %v3854 = vunpack.c.l.b16 %v596
    %v3855 = vunpack.c.l.b16 %v597
    %v3856 = vunpack.c.h.b16 %v597
    %v3857 = vunpack.c.l.b16 %v598
    %v3858 = vunpack.c.h.b16 %v598
    %v3859 = vunpack.c.l.b16 %v599
    %v3860 = vunpack.c.l.b16 %v600
    %v3861 = vunpack.c.h.b16 %v600
    %v3862 = vunpack.c.l.b16 %v601
    %v3863 = vunpack.c.h.b16 %v601
    %v3864 = vunpack.c.l.b16 %v602
    %v3865 = vunpack.c.l.b16 %v603
    %v3866 = vunpack.c.h.b16 %v603
    %v3867 = vunpack.c.l.b16 %v604
    %v3868 = vunpack.c.h.b16 %v604
    %v3869 = vunpack.c.l.b16 %v605
    %v3870 = vunpack.c.l.b16 %v606
    %v3871 = vunpack.c.h.b16 %v606
    %v3872 = vunpack.c.l.b16 %v607
    %v3873 = vunpack.c.h.b16 %v607
    %v3874 = vunpack.c.l.b16 %v608
    %v3875 = vunpack.c.l.b16 %v609
    %v3876 = vunpack.c.h.b16 %v609
    %v3877 = vunpack.c.l.b16 %v610
    %v3878 = vunpack.c.h.b16 %v610
    %v3879 = vunpack.c.l.b16 %v611
    %v3880 = vunpack.c.l.b16 %v612
    %v3881 = vunpack.c.h.b16 %v612
    %v3882 = vunpack.c.l.b16 %v613
    %v3883 = vunpack.c.h.b16 %v613
    %v3884 = vunpack.c.l.b16 %v614
    %v3885 = vunpack.c.l.b16 %v615
    %v3886 = vunpack.c.h.b16 %v615
    %v3887 = vunpack.c.l.b16 %v616
    %v3888 = vunpack.c.h.b16 %v616
    %v3889 = vunpack.c.l.b16 %v617
    %v3890 = vunpack.c.l.b16 %v618
    %v3891 = vunpack.c.h.b16 %v618
    %v3892 = vunpack.c.l.b16 %v619
    %v3893 = vunpack.c.h.b16 %v619
    %v3894 = vunpack.c.l.b16 %v620
    %v3895 = vunpack.c.l.b16 %v621
    %v3896 = vunpack.c.h.b16 %v621
    %v3897 = vunpack.c.l.b16 %v622
    %v3898 = vunpack.c.h.b16 %v622
    %v3899 = vunpack.c.l.b16 %v623
    %v3900 = vunpack.c.l.b16 %v624
    %v3901 = vunpack.c.h.b16 %v624
    %v3902 = vunpack.c.l.b16 %v625
    %v3903 = vunpack.c.h.b16 %v625
    %v3904 = vunpack.c.l.b16 %v626
    %v3905 = vunpack.c.l.b16 %v627
    %v3906 = vunpack.c.h.b16 %v627
    %v3907 = vunpack.c.l.b16 %v628
    %v3908 = vunpack.c.h.b16 %v628
    %v3909 = vunpack.c.l.b16 %v629
    %v3910 = vunpack.c.l.b16 %v630
    %v3911 = vunpack.c.h.b16 %v630
    %v3912 = vunpack.c.l.b16 %v631
    %v3913 = vunpack.c.h.b16 %v631
    %v3914 = vunpack.c.l.b16 %v632
    %v3915 = vunpack.c.l.b16 %v633
    %v3916 = vunpack.c.h.b16 %v633
    %v3917 = vunpack.c.l.b16 %v634
    %v3918 = vunpack.c.h.b16 %v634
    %v3919 = vunpack.c.l.b16 %v635
    %v3920 = vunpack.c.l.b16 %v636
    %v3921 = vunpack.c.h.b16 %v636
    %v3922 = vunpack.c.l.b16 %v637
    %v3923 = vunpack.c.h.b16 %v637
    %v3924 = vunpack.c.l.b16 %v638
    %v3925 = vunpack.c.l.b16 %v639
    %v3926 = vunpack.c.h.b16 %v639
    %v3927 = vunpack.c.l.b16 %v640
    %v3928 = vunpack.c.h.b16 %v640
    %v3929 = vunpack.c.l.b16 %v641
    %v3930 = vunpack.c.l.b16 %v642
    %v3931 = vunpack.c.h.b16 %v642
    %v3932 = vunpack.c.l.b16 %v643
    %v3933 = vunpack.c.h.b16 %v643
    %v3934 = vunpack.c.l.b16 %v644
    %v3935 = vunpack.c.l.b16 %v645
    %v3936 = vunpack.c.h.b16 %v645
    %v3937 = vunpack.c.l.b16 %v646
    %v3938 = vunpack.c.h.b16 %v646
    %v3939 = vunpack.c.l.b16 %v647
    %v3940 = vunpack.c.l.b16 %v648
    %v3941 = vunpack.c.h.b16 %v648
    %v3942 = vunpack.c.l.b16 %v649
    %v3943 = vunpack.c.h.b16 %v649
    %v3944 = vunpack.c.l.b16 %v650
    %v3945 = vunpack.c.l.b16 %v651
    %v3946 = vunpack.c.h.b16 %v651
    %v3947 = vunpack.c.l.b16 %v652
    %v3948 = vunpack.c.h.b16 %v652
    %v3949 = vunpack.c.l.b16 %v653
    %v3950 = vunpack.c.l.b16 %v654
    %v3951 = vunpack.c.h.b16 %v654
    %v3952 = vunpack.c.l.b16 %v655
    %v3953 = vunpack.c.h.b16 %v655
    %v3954 = vunpack.c.l.b16 %v656
    %v3955 = vunpack.c.l.b16 %v657
    %v3956 = vunpack.c.h.b16 %v657
    %v3957 = vunpack.c.l.b16 %v658
    %v3958 = vunpack.c.h.b16 %v658
    %v3959 = vunpack.c.l.b16 %v659
    %v3960 = vunpack.c.l.b16 %v660
    %v3961 = vunpack.c.h.b16 %v660
    %v3962 = vunpack.c.l.b16 %v661
    %v3963 = vunpack.c.h.b16 %v661
    %v3964 = vunpack.c.l.b16 %v662
    %v3965 = vunpack.c.l.b16 %v663
    %v3966 = vunpack.c.h.b16 %v663
    %v3967 = vunpack.c.l.b16 %v664
    %v3968 = vunpack.c.h.b16 %v664
    %v3969 = vunpack.c.l.b16 %v665
    %v3970 = vunpack.c.l.b16 %v666
    %v3971 = vunpack.c.h.b16 %v666
    %v3972 = vunpack.c.l.b16 %v667
    %v3973 = vunpack.c.h.b16 %v667
    %v3974 = vunpack.c.l.b16 %v668
    %v3975 = vunpack.c.l.b16 %v669
    %v3976 = vunpack.c.h.b16 %v669
    %v3977 = vunpack.c.l.b16 %v670
    %v3978 = vunpack.c.h.b16 %v670
    %v3979 = vunpack.c.l.b16 %v671
    %v3980 = vunpack.c.l.b16 %v672
    %v3981 = vunpack.c.h.b16 %v672
    %v3982 = vunpack.c.l.b16 %v673
    %v3983 = vunpack.c.h.b16 %v673
    %v3984 = vunpack.c.l.b16 %v674
    %v3985 = vpack.c.b16 %v3110, %v3105
    %v3986 = vpack.c.b16 %v3111, %v3106
    %v3987 = vpack.c.b16 %v3112, %v3107
    %v3988 = vpack.c.b16 %v3113, %v3108
    %v3989 = vpack.c.b16 %v3114, %v3109
    %v3990 = vpack.c.b16 %v3120, %v3115
    %v3991 = vpack.c.b16 %v3121, %v3116
    %v3992 = vpack.c.b16 %v3122, %v3117
    %v3993 = vpack.c.b16 %v3123, %v3118
    %v3994 = vpack.c.b16 %v3124, %v3119
    %v3995 = vpack.c.b16 %v3130, %v3125
    %v3996 = vpack.c.b16 %v3131, %v3126
    %v3997 = vpack.c.b16 %v3132, %v3127
    %v3998 = vpack.c.b16 %v3133, %v3128
    %v3999 = vpack.c.b16 %v3134, %v3129
    %v4000 = vpack.c.b16 %v3140, %v3135
    %v4001 = vpack.c.b16 %v3141, %v3136
    %v4002 = vpack.c.b16 %v3142, %v3137
    %v4003 = vpack.c.b16 %v3143, %v3138
    %v4004 = vpack.c.b16 %v3144, %v3139
    %v4005 = vpack.c.b16 %v3150, %v3145
    %v4006 = vpack.c.b16 %v3151, %v3146
    %v4007 = vpack.c.b16 %v3152, %v3147
    %v4008 = vpack.c.b16 %v3153, %v3148
    %v4009 = vpack.c.b16 %v3154, %v3149
    %v4010 = vpack.c.b16 %v3160, %v3155
    %v4011 = vpack.c.b16 %v3161, %v3156
    %v4012 = vpack.c.b16 %v3162, %v3157
    %v4013 = vpack.c.b16 %v3163, %v3158
    %v4014 = vpack.c.b16 %v3164, %v3159
    %v4015 = vpack.c.b16 %v3170, %v3165
    %v4016 = vpack.c.b16 %v3171, %v3166
    %v4017 = vpack.c.b16 %v3172, %v3167
    %v4018 = vpack.c.b16 %v3173, %v3168
    %v4019 = vpack.c.b16 %v3174, %v3169
    %v4020 = vpack.c.b16 %v3180, %v3175
    %v4021 = vpack.c.b16 %v3181, %v3176
    %v4022 = vpack.c.b16 %v3182, %v3177
    %v4023 = vpack.c.b16 %v3183, %v3178
    %v4024 = vpack.c.b16 %v3184, %v3179
    %v4025 = vpack.c.b16 %v3190, %v3185
    %v4026 = vpack.c.b16 %v3191, %v3186
    %v4027 = vpack.c.b16 %v3192, %v3187
    %v4028 = vpack.c.b16 %v3193, %v3188
    %v4029 = vpack.c.b16 %v3194, %v3189
    %v4030 = vpack.c.b16 %v3200, %v3195
    %v4031 = vpack.c.b16 %v3201, %v3196
    %v4032 = vpack.c.b16 %v3202, %v3197
    %v4033 = vpack.c.b16 %v3203, %v3198
    %v4034 = vpack.c.b16 %v3204, %v3199
    %v4035 = vpack.c.b16 %v3210, %v3205
    %v4036 = vpack.c.b16 %v3211, %v3206
    %v4037 = vpack.c.b16 %v3212, %v3207
    %v4038 = vpack.c.b16 %v3213, %v3208
    %v4039 = vpack.c.b16 %v3214, %v3209
    %v4040 = vpack.c.b16 %v3220, %v3215
    %v4041 = vpack.c.b16 %v3221, %v3216
    %v4042 = vpack.c.b16 %v3222, %v3217
    %v4043 = vpack.c.b16 %v3223, %v3218
    %v4044 = vpack.c.b16 %v3224, %v3219
    %v4045 = vpack.c.b16 %v3230, %v3225
    %v4046 = vpack.c.b16 %v3231, %v3226
    %v4047 = vpack.c.b16 %v3232, %v3227
    %v4048 = vpack.c.b16 %v3233, %v3228
    %v4049 = vpack.c.b16 %v3234, %v3229
    %v4050 = vpack.c.b16 %v3240, %v3235
    %v4051 = vpack.c.b16 %v3241, %v3236
    %v4052 = vpack.c.b16 %v3242, %v3237
    %v4053 = vpack.c.b16 %v3243, %v3238
    %v4054 = vpack.c.b16 %v3244, %v3239
    %v4055 = vpack.c.b16 %v3250, %v3245
    %v4056 = vpack.c.b16 %v3251, %v3246
    %v4057 = vpack.c.b16 %v3252, %v3247
    %v4058 = vpack.c.b16 %v3253, %v3248
    %v4059 = vpack.c.b16 %v3254, %v3249
    %v4060 = vpack.c.b16 %v3260, %v3255
    %v4061 = vpack.c.b16 %v3261, %v3256
    %v4062 = vpack.c.b16 %v3262, %v3257
    %v4063 = vpack.c.b16 %v3263, %v3258
    %v4064 = vpack.c.b16 %v3264, %v3259
    %v4065 = vpack.c.b16 %v3270, %v3265
    %v4066 = vpack.c.b16 %v3271, %v3266
    %v4067 = vpack.c.b16 %v3272, %v3267
    %v4068 = vpack.c.b16 %v3273, %v3268
    %v4069 = vpack.c.b16 %v3274, %v3269
    %v4070 = vpack.c.b16 %v3280, %v3275
    %v4071 = vpack.c.b16 %v3281, %v3276
    %v4072 = vpack.c.b16 %v3282, %v3277
    %v4073 = vpack.c.b16 %v3283, %v3278
    %v4074 = vpack.c.b16 %v3284, %v3279
    %v4075 = vpack.c.b16 %v3290, %v3285
    %v4076 = vpack.c.b16 %v3291, %v3286
    %v4077 = vpack.c.b16 %v3292, %v3287
    %v4078 = vpack.c.b16 %v3293, %v3288
    %v4079 = vpack.c.b16 %v3294, %v3289
    %v4080 = vpack.c.b16 %v3300, %v3295
    %v4081 = vpack.c.b16 %v3301, %v3296
    %v4082 = vpack.c.b16 %v3302, %v3297
    %v4083 = vpack.c.b16 %v3303, %v3298
    %v4084 = vpack.c.b16 %v3304, %v3299
    %v4085 = vpack.c.b16 %v3310, %v3305
    %v4086 = vpack.c.b16 %v3311, %v3306
    %v4087 = vpack.c.b16 %v3312, %v3307
    %v4088 = vpack.c.b16 %v3313, %v3308
    %v4089 = vpack.c.b16 %v3314, %v3309
    %v4090 = vpack.c.b16 %v3320, %v3315
    %v4091 = vpack.c.b16 %v3321, %v3316
    %v4092 = vpack.c.b16 %v3322, %v3317
    %v4093 = vpack.c.b16 %v3323, %v3318
    %v4094 = vpack.c.b16 %v3324, %v3319
    %v4095 = vpack.c.b16 %v3330, %v3325
    %v4096 = vpack.c.b16 %v3331, %v3326
    %v4097 = vpack.c.b16 %v3332, %v3327
    %v4098 = vpack.c.b16 %v3333, %v3328
    %v4099 = vpack.c.b16 %v3334, %v3329
    %v4100 = vpack.c.b16 %v3340, %v3335
    %v4101 = vpack.c.b16 %v3341, %v3336
    %v4102 = vpack.c.b16 %v3342, %v3337
    %v4103 = vpack.c.b16 %v3343, %v3338
    %v4104 = vpack.c.b16 %v3344, %v3339
    %v4105 = vpack.c.b16 %v3350, %v3345
    %v4106 = vpack.c.b16 %v3351, %v3346
    %v4107 = vpack.c.b16 %v3352, %v3347
    %v4108 = vpack.c.b16 %v3353, %v3348
    %v4109 = vpack.c.b16 %v3354, %v3349
    %v4110 = vpack.c.b16 %v3360, %v3355
    %v4111 = vpack.c.b16 %v3361, %v3356
    %v4112 = vpack.c.b16 %v3362, %v3357
    %v4113 = vpack.c.b16 %v3363, %v3358
    %v4114 = vpack.c.b16 %v3364, %v3359
    %v4115 = vpack.c.b16 %v3370, %v3365
    %v4116 = vpack.c.b16 %v3371, %v3366
    %v4117 = vpack.c.b16 %v3372, %v3367
    %v4118 = vpack.c.b16 %v3373, %v3368
    %v4119 = vpack.c.b16 %v3374, %v3369
    %v4120 = vpack.c.b16 %v3380, %v3375
    %v4121 = vpack.c.b16 %v3381, %v3376
    %v4122 = vpack.c.b16 %v3382, %v3377
    %v4123 = vpack.c.b16 %v3383, %v3378
    %v4124 = vpack.c.b16 %v3384, %v3379
    %v4125 = vpack.c.b16 %v3390, %v3385
    %v4126 = vpack.c.b16 %v3391, %v3386
    %v4127 = vpack.c.b16 %v3392, %v3387
    %v4128 = vpack.c.b16 %v3393, %v3388
    %v4129 = vpack.c.b16 %v3394, %v3389
    %v4130 = vpack.c.b16 %v3400, %v3395
    %v4131 = vpack.c.b16 %v3401, %v3396
    %v4132 = vpack.c.b16 %v3402, %v3397
    %v4133 = vpack.c.b16 %v3403, %v3398
    %v4134 = vpack.c.b16 %v3404, %v3399
    %v4135 = vpack.c.b16 %v3410, %v3405
    %v4136 = vpack.c.b16 %v3411, %v3406
    %v4137 = vpack.c.b16 %v3412, %v3407
    %v4138 = vpack.c.b16 %v3413, %v3408
    %v4139 = vpack.c.b16 %v3414, %v3409
    %v4140 = vpack.c.b16 %v3420, %v3415
    %v4141 = vpack.c.b16 %v3421, %v3416
    %v4142 = vpack.c.b16 %v3422, %v3417
    %v4143 = vpack.c.b16 %v3423, %v3418
    %v4144 = vpack.c.b16 %v3424, %v3419
    %v4145 = vpack.c.b16 %v3430, %v3425
    %v4146 = vpack.c.b16 %v3431, %v3426
    %v4147 = vpack.c.b16 %v3432, %v3427
    %v4148 = vpack.c.b16 %v3433, %v3428
    %v4149 = vpack.c.b16 %v3434, %v3429
    %v4150 = vpack.c.b16 %v3440, %v3435
    %v4151 = vpack.c.b16 %v3441, %v3436
    %v4152 = vpack.c.b16 %v3442, %v3437
    %v4153 = vpack.c.b16 %v3443, %v3438
    %v4154 = vpack.c.b16 %v3444, %v3439
    %v4155 = vpack.c.b16 %v3450, %v3445
    %v4156 = vpack.c.b16 %v3451, %v3446
    %v4157 = vpack.c.b16 %v3452, %v3447
    %v4158 = vpack.c.b16 %v3453, %v3448
    %v4159 = vpack.c.b16 %v3454, %v3449
    %v4160 = vpack.c.b16 %v3460, %v3455
    %v4161 = vpack.c.b16 %v3461, %v3456
    %v4162 = vpack.c.b16 %v3462, %v3457
    %v4163 = vpack.c.b16 %v3463, %v3458
    %v4164 = vpack.c.b16 %v3464, %v3459
    %v4165 = vpack.c.b16 %v3470, %v3465
    %v4166 = vpack.c.b16 %v3471, %v3466
    %v4167 = vpack.c.b16 %v3472, %v3467
    %v4168 = vpack.c.b16 %v3473, %v3468
    %v4169 = vpack.c.b16 %v3474, %v3469
    %v4170 = vpack.c.b16 %v3480, %v3475
    %v4171 = vpack.c.b16 %v3481, %v3476
    %v4172 = vpack.c.b16 %v3482, %v3477
    %v4173 = vpack.c.b16 %v3483, %v3478
    %v4174 = vpack.c.b16 %v3484, %v3479
    %v4175 = vpack.c.b16 %v3490, %v3485
    %v4176 = vpack.c.b16 %v3491, %v3486
    %v4177 = vpack.c.b16 %v3492, %v3487
    %v4178 = vpack.c.b16 %v3493, %v3488
    %v4179 = vpack.c.b16 %v3494, %v3489
    %v4180 = vpack.c.b16 %v3500, %v3495
    %v4181 = vpack.c.b16 %v3501, %v3496
    %v4182 = vpack.c.b16 %v3502, %v3497
    %v4183 = vpack.c.b16 %v3503, %v3498
    %v4184 = vpack.c.b16 %v3504, %v3499
    %v4185 = vpack.c.b16 %v3510, %v3505
    %v4186 = vpack.c.b16 %v3511, %v3506
    %v4187 = vpack.c.b16 %v3512, %v3507
    %v4188 = vpack.c.b16 %v3513, %v3508
    %v4189 = vpack.c.b16 %v3514, %v3509
    %v4190 = vpack.c.b16 %v3520, %v3515
    %v4191 = vpack.c.b16 %v3521, %v3516
    %v4192 = vpack.c.b16 %v3522, %v3517
    %v4193 = vpack.c.b16 %v3523, %v3518
    %v4194 = vpack.c.b16 %v3524, %v3519
    %v4195 = vpack.c.b16 %v3530, %v3525
    %v4196 = vpack.c.b16 %v3531, %v3526
    %v4197 = vpack.c.b16 %v3532, %v3527
    %v4198 = vpack.c.b16 %v3533, %v3528
    %v4199 = vpack.c.b16 %v3534, %v3529
    %v4200 = vpack.c.b16 %v3540, %v3535
    %v4201 = vpack.c.b16 %v3541, %v3536
    %v4202 = vpack.c.b16 %v3542, %v3537
    %v4203 = vpack.c.b16 %v3543, %v3538
    %v4204 = vpack.c.b16 %v3544, %v3539
    %v4205 = vpack.c.b16 %v3550, %v3545
    %v4206 = vpack.c.b16 %v3551, %v3546
    %v4207 = vpack.c.b16 %v3552, %v3547
    %v4208 = vpack.c.b16 %v3553, %v3548
    %v4209 = vpack.c.b16 %v3554, %v3549
    %v4210 = vpack.c.b16 %v3560, %v3555
    %v4211 = vpack.c.b16 %v3561, %v3556
    %v4212 = vpack.c.b16 %v3562, %v3557
    %v4213 = vpack.c.b16 %v3563, %v3558
    %v4214 = vpack.c.b16 %v3564, %v3559
    %v4215 = vpack.c.b16 %v3570, %v3565
    %v4216 = vpack.c.b16 %v3571, %v3566
    %v4217 = vpack.c.b16 %v3572, %v3567
    %v4218 = vpack.c.b16 %v3573, %v3568
    %v4219 = vpack.c.b16 %v3574, %v3569
    %v4220 = vpack.c.b16 %v3580, %v3575
    %v4221 = vpack.c.b16 %v3581, %v3576
    %v4222 = vpack.c.b16 %v3582, %v3577
    %v4223 = vpack.c.b16 %v3583, %v3578
    %v4224 = vpack.c.b16 %v3584, %v3579
    %v4225 = vpack.c.b16 %v3590, %v3585
    %v4226 = vpack.c.b16 %v3591, %v3586
    %v4227 = vpack.c.b16 %v3592, %v3587
    %v4228 = vpack.c.b16 %v3593, %v3588
    %v4229 = vpack.c.b16 %v3594, %v3589
    %v4230 = vpack.c.b16 %v3600, %v3595
    %v4231 = vpack.c.b16 %v3601, %v3596
    %v4232 = vpack.c.b16 %v3602, %v3597
    %v4233 = vpack.c.b16 %v3603, %v3598
    %v4234 = vpack.c.b16 %v3604, %v3599
    %v4235 = vpack.c.b16 %v3610, %v3605
    %v4236 = vpack.c.b16 %v3611, %v3606
    %v4237 = vpack.c.b16 %v3612, %v3607
    %v4238 = vpack.c.b16 %v3613, %v3608
    %v4239 = vpack.c.b16 %v3614, %v3609
    %v4240 = vpack.c.b16 %v3620, %v3615
    %v4241 = vpack.c.b16 %v3621, %v3616
    %v4242 = vpack.c.b16 %v3622, %v3617
    %v4243 = vpack.c.b16 %v3623, %v3618
    %v4244 = vpack.c.b16 %v3624, %v3619
    %v4245 = vpack.c.b16 %v3630, %v3625
    %v4246 = vpack.c.b16 %v3631, %v3626
    %v4247 = vpack.c.b16 %v3632, %v3627
    %v4248 = vpack.c.b16 %v3633, %v3628
    %v4249 = vpack.c.b16 %v3634, %v3629
    %v4250 = vpack.c.b16 %v3640, %v3635
    %v4251 = vpack.c.b16 %v3641, %v3636
    %v4252 = vpack.c.b16 %v3642, %v3637
    %v4253 = vpack.c.b16 %v3643, %v3638
    %v4254 = vpack.c.b16 %v3644, %v3639
    %v4255 = vpack.c.b16 %v3650, %v3645
    %v4256 = vpack.c.b16 %v3651, %v3646
    %v4257 = vpack.c.b16 %v3652, %v3647
    %v4258 = vpack.c.b16 %v3653, %v3648
    %v4259 = vpack.c.b16 %v3654, %v3649
    %v4260 = vpack.c.b16 %v3660, %v3655
    %v4261 = vpack.c.b16 %v3661, %v3656
    %v4262 = vpack.c.b16 %v3662, %v3657
    %v4263 = vpack.c.b16 %v3663, %v3658
    %v4264 = vpack.c.b16 %v3664, %v3659
    %v4265 = vpack.c.b16 %v3670, %v3665
    %v4266 = vpack.c.b16 %v3671, %v3666
    %v4267 = vpack.c.b16 %v3672, %v3667
    %v4268 = vpack.c.b16 %v3673, %v3668
    %v4269 = vpack.c.b16 %v3674, %v3669
    %v4270 = vpack.c.b16 %v3680, %v3675
    %v4271 = vpack.c.b16 %v3681, %v3676
    %v4272 = vpack.c.b16 %v3682, %v3677
    %v4273 = vpack.c.b16 %v3683, %v3678
    %v4274 = vpack.c.b16 %v3684, %v3679
    %v4275 = vpack.c.b16 %v3690, %v3685
    %v4276 = vpack.c.b16 %v3691, %v3686
    %v4277 = vpack.c.b16 %v3692, %v3687
    %v4278 = vpack.c.b16 %v3693, %v3688
    %v4279 = vpack.c.b16 %v3694, %v3689
    %v4280 = vpack.c.b16 %v3700, %v3695
    %v4281 = vpack.c.b16 %v3701, %v3696
    %v4282 = vpack.c.b16 %v3702, %v3697
    %v4283 = vpack.c.b16 %v3703, %v3698
    %v4284 = vpack.c.b16 %v3704, %v3699
    %v4285 = vpack.c.b16 %v3710, %v3705
    %v4286 = vpack.c.b16 %v3711, %v3706
    %v4287 = vpack.c.b16 %v3712, %v3707
    %v4288 = vpack.c.b16 %v3713, %v3708
    %v4289 = vpack.c.b16 %v3714, %v3709
    %v4290 = vpack.c.b16 %v3720, %v3715
    %v4291 = vpack.c.b16 %v3721, %v3716
    %v4292 = vpack.c.b16 %v3722, %v3717
    %v4293 = vpack.c.b16 %v3723, %v3718
    %v4294 = vpack.c.b16 %v3724, %v3719
    %v4295 = vpack.c.b16 %v3730, %v3725
    %v4296 = vpack.c.b16 %v3731, %v3726
    %v4297 = vpack.c.b16 %v3732, %v3727
    %v4298 = vpack.c.b16 %v3733, %v3728
    %v4299 = vpack.c.b16 %v3734, %v3729
    %v4300 = vpack.c.b16 %v3740, %v3735
    %v4301 = vpack.c.b16 %v3741, %v3736
    %v4302 = vpack.c.b16 %v3742, %v3737
    %v4303 = vpack.c.b16 %v3743, %v3738
    %v4304 = vpack.c.b16 %v3744, %v3739
    %v4305 = vpack.c.b16 %v3750, %v3745
    %v4306 = vpack.c.b16 %v3751, %v3746
    %v4307 = vpack.c.b16 %v3752, %v3747
    %v4308 = vpack.c.b16 %v3753, %v3748
    %v4309 = vpack.c.b16 %v3754, %v3749
    %v4310 = vpack.c.b16 %v3760, %v3755
    %v4311 = vpack.c.b16 %v3761, %v3756
    %v4312 = vpack.c.b16 %v3762, %v3757
    %v4313 = vpack.c.b16 %v3763, %v3758
    %v4314 = vpack.c.b16 %v3764, %v3759
    %v4315 = vpack.c.b16 %v3770, %v3765
    %v4316 = vpack.c.b16 %v3771, %v3766
    %v4317 = vpack.c.b16 %v3772, %v3767
    %v4318 = vpack.c.b16 %v3773, %v3768
    %v4319 = vpack.c.b16 %v3774, %v3769
    %v4320 = vpack.c.b16 %v3780, %v3775
    %v4321 = vpack.c.b16 %v3781, %v3776
    %v4322 = vpack.c.b16 %v3782, %v3777
    %v4323 = vpack.c.b16 %v3783, %v3778
    %v4324 = vpack.c.b16 %v3784, %v3779
    %v4325 = vpack.c.b16 %v3790, %v3785
    %v4326 = vpack.c.b16 %v3791, %v3786
    %v4327 = vpack.c.b16 %v3792, %v3787
    %v4328 = vpack.c.b16 %v3793, %v3788
    %v4329 = vpack.c.b16 %v3794, %v3789
    %v4330 = vpack.c.b16 %v3800, %v3795
    %v4331 = vpack.c.b16 %v3801, %v3796
    %v4332 = vpack.c.b16 %v3802, %v3797
    %v4333 = vpack.c.b16 %v3803, %v3798
    %v4334 = vpack.c.b16 %v3804, %v3799
    %v4335 = vpack.c.b16 %v3810, %v3805
    %v4336 = vpack.c.b16 %v3811, %v3806
    %v4337 = vpack.c.b16 %v3812, %v3807
    %v4338 = vpack.c.b16 %v3813, %v3808
    %v4339 = vpack.c.b16 %v3814, %v3809
    %v4340 = vpack.c.b16 %v3820, %v3815
    %v4341 = vpack.c.b16 %v3821, %v3816
    %v4342 = vpack.c.b16 %v3822, %v3817
    %v4343 = vpack.c.b16 %v3823, %v3818
    %v4344 = vpack.c.b16 %v3824, %v3819
    %v4345 = vpack.c.b16 %v3830, %v3825
    %v4346 = vpack.c.b16 %v3831, %v3826
    %v4347 = vpack.c.b16 %v3832, %v3827
    %v4348 = vpack.c.b16 %v3833, %v3828
    %v4349 = vpack.c.b16 %v3834, %v3829
    %v4350 = vpack.c.b16 %v3840, %v3835
    %v4351 = vpack.c.b16 %v3841, %v3836
    %v4352 = vpack.c.b16 %v3842, %v3837
    %v4353 = vpack.c.b16 %v3843, %v3838
    %v4354 = vpack.c.b16 %v3844, %v3839
    %v4355 = vpack.c.b16 %v3850, %v3845
    %v4356 = vpack.c.b16 %v3851, %v3846
    %v4357 = vpack.c.b16 %v3852, %v3847
    %v4358 = vpack.c.b16 %v3853, %v3848
    %v4359 = vpack.c.b16 %v3854, %v3849
    %v4360 = vpack.c.b16 %v3860, %v3855
    %v4361 = vpack.c.b16 %v3861, %v3856
    %v4362 = vpack.c.b16 %v3862, %v3857
    %v4363 = vpack.c.b16 %v3863, %v3858
    %v4364 = vpack.c.b16 %v3864, %v3859
    %v4365 = vpack.c.b16 %v3870, %v3865
    %v4366 = vpack.c.b16 %v3871, %v3866
    %v4367 = vpack.c.b16 %v3872, %v3867
    %v4368 = vpack.c.b16 %v3873, %v3868
    %v4369 = vpack.c.b16 %v3874, %v3869
    %v4370 = vpack.c.b16 %v3880, %v3875
    %v4371 = vpack.c.b16 %v3881, %v3876
    %v4372 = vpack.c.b16 %v3882, %v3877
    %v4373 = vpack.c.b16 %v3883, %v3878
    %v4374 = vpack.c.b16 %v3884, %v3879
    %v4375 = vpack.c.b16 %v3890, %v3885
    %v4376 = vpack.c.b16 %v3891, %v3886
    %v4377 = vpack.c.b16 %v3892, %v3887
    %v4378 = vpack.c.b16 %v3893, %v3888
    %v4379 = vpack.c.b16 %v3894, %v3889
    %v4380 = vpack.c.b16 %v3900, %v3895
    %v4381 = vpack.c.b16 %v3901, %v3896
    %v4382 = vpack.c.b16 %v3902, %v3897
    %v4383 = vpack.c.b16 %v3903, %v3898
    %v4384 = vpack.c.b16 %v3904, %v3899
    %v4385 = vpack.c.b16 %v3910, %v3905
    %v4386 = vpack.c.b16 %v3911, %v3906
    %v4387 = vpack.c.b16 %v3912, %v3907
    %v4388 = vpack.c.b16 %v3913, %v3908
    %v4389 = vpack.c.b16 %v3914, %v3909
    %v4390 = vpack.c.b16 %v3920, %v3915
    %v4391 = vpack.c.b16 %v3921, %v3916
    %v4392 = vpack.c.b16 %v3922, %v3917
    %v4393 = vpack.c.b16 %v3923, %v3918
    %v4394 = vpack.c.b16 %v3924, %v3919
    %v4395 = vpack.c.b16 %v3930, %v3925
    %v4396 = vpack.c.b16 %v3931, %v3926
    %v4397 = vpack.c.b16 %v3932, %v3927
    %v4398 = vpack.c.b16 %v3933, %v3928
    %v4399 = vpack.c.b16 %v3934, %v3929
    %v4400 = vpack.c.b16 %v3940, %v3935
    %v4401 = vpack.c.b16 %v3941, %v3936
    %v4402 = vpack.c.b16 %v3942, %v3937
    %v4403 = vpack.c.b16 %v3943, %v3938
    %v4404 = vpack.c.b16 %v3944, %v3939
    %v4405 = vpack.c.b16 %v3950, %v3945
    %v4406 = vpack.c.b16 %v3951, %v3946
    %v4407 = vpack.c.b16 %v3952, %v3947
    %v4408 = vpack.c.b16 %v3953, %v3948
    %v4409 = vpack.c.b16 %v3954, %v3949
    %v4410 = vpack.c.b16 %v3960, %v3955
    %v4411 = vpack.c.b16 %v3961, %v3956
    %v4412 = vpack.c.b16 %v3962, %v3957
    %v4413 = vpack.c.b16 %v3963, %v3958
    %v4414 = vpack.c.b16 %v3964, %v3959
    %v4415 = vpack.c.b16 %v3970, %v3965
    %v4416 = vpack.c.b16 %v3971, %v3966
    %v4417 = vpack.c.b16 %v3972, %v3967
    %v4418 = vpack.c.b16 %v3973, %v3968
    %v4419 = vpack.c.b16 %v3974, %v3969
    %v4420 = vpack.c.b16 %v3980, %v3975
    %v4421 = vpack.c.b16 %v3981, %v3976
    %v4422 = vpack.c.b16 %v3982, %v3977
    %v4423 = vpack.c.b16 %v3983, %v3978
    %v4424 = vpack.c.b16 %v3984, %v3979
    %4865 = vmatprep.subr.bf16.mxu0 %v4021
    %4866 = vmatpush1.bf16.msra.mxu0 %v4020
    %4867 = vmatprep.subr.bf16.mxu0 %v4016
    %4868 = vmatpush1.bf16.msra.mxu0 %v4015
    %4869 = vmatprep.subr.bf16.mxu0 %v4011
    %4870 = vmatpush1.bf16.msra.mxu0 %v4010
    %4871 = vmatprep.subr.bf16.mxu0 %v4006
    %4872 = vmatpush1.bf16.msra.mxu0 %v4005
    %4873 = vmatprep.subr.bf16.mxu0 %v4001
    %4874 = vmatpush1.bf16.msra.mxu0 %v4000
    %4875 = vmatprep.subr.bf16.mxu0 %v3996
    %4876 = vmatpush1.bf16.msra.mxu0 %v3995
    %4877 = vmatprep.subr.bf16.mxu0 %v3991
    %4878 = vmatpush1.bf16.msra.mxu0 %v3990
    %4879 = vmatprep.subr.bf16.mxu0 %v3986
    %4880 = vmatpush1.bf16.msra.mxu0 %v3985
    %4881 = vmatprep.subr.bf16.mxu0 %v4061
    %4882 = vmatpush2.bf16.msra.mxu0 %v4060
    %4883 = vmatprep.subr.bf16.mxu0 %v4056
    %4884 = vmatpush2.bf16.msra.mxu0 %v4055
    %4885 = vmatprep.subr.bf16.mxu0 %v4051
    %4886 = vmatpush2.bf16.msra.mxu0 %v4050
    %4887 = vmatprep.subr.bf16.mxu0 %v4046
    %4888 = vmatpush2.bf16.msra.mxu0 %v4045
    %4889 = vmatprep.subr.bf16.mxu0 %v4041
    %4890 = vmatpush2.bf16.msra.mxu0 %v4040
    %4891 = vmatprep.subr.bf16.mxu0 %v4036
    %4892 = vmatpush2.bf16.msra.mxu0 %v4035
    %4893 = vmatprep.subr.bf16.mxu0 %v4031
    %4894 = vmatpush2.bf16.msra.mxu0 %v4030
    %4895 = vmatprep.subr.bf16.mxu0 %v4026
    %4896 = vmatpush2.bf16.msra.mxu0 %v4025
    %4897 = vmatprep.mubr.bf16.mxu0 %v125
    %4898 = vmatmul.mubr.bf16.gmra.mxu0 %v124
    %v4899 = vpop.f32.mrf.mxu0
    %v4900 = vadd.f32 %v2328, %v4899
    %v4901 = vpop.f32.mrf.mxu0
    %v4902 = vadd.f32 %v2330, %v4901
    %v4903 = vpop.f32.mrf.mxu0
    %v4904 = vpop.f32.mrf.mxu0
    %4905 = vdwg.mxu0
    %4906 = vmatprep.subr.bf16.mxu0 %v4101
    %4907 = vmatpush1.bf16.msra.mxu0 %v4100
    %4908 = vmatprep.subr.bf16.mxu0 %v4096
    %4909 = vmatpush1.bf16.msra.mxu0 %v4095
    %4910 = vmatprep.subr.bf16.mxu0 %v4091
    %4911 = vmatpush1.bf16.msra.mxu0 %v4090
    %4912 = vmatprep.subr.bf16.mxu0 %v4086
    %4913 = vmatpush1.bf16.msra.mxu0 %v4085
    %4914 = vmatprep.subr.bf16.mxu0 %v4081
    %4915 = vmatpush1.bf16.msra.mxu0 %v4080
    %4916 = vmatprep.subr.bf16.mxu0 %v4076
    %4917 = vmatpush1.bf16.msra.mxu0 %v4075
    %4918 = vmatprep.subr.bf16.mxu0 %v4071
    %4919 = vmatpush1.bf16.msra.mxu0 %v4070
    %4920 = vmatprep.subr.bf16.mxu0 %v4066
    %4921 = vmatpush1.bf16.msra.mxu0 %v4065
    %4922 = vmatprep.subr.bf16.mxu0 %v4141
    %4923 = vmatpush2.bf16.msra.mxu0 %v4140
    %4924 = vmatprep.subr.bf16.mxu0 %v4136
    %4925 = vmatpush2.bf16.msra.mxu0 %v4135
    %4926 = vmatprep.subr.bf16.mxu0 %v4131
    %4927 = vmatpush2.bf16.msra.mxu0 %v4130
    %4928 = vmatprep.subr.bf16.mxu0 %v4126
    %4929 = vmatpush2.bf16.msra.mxu0 %v4125
    %4930 = vmatprep.subr.bf16.mxu0 %v4121
    %4931 = vmatpush2.bf16.msra.mxu0 %v4120
    %4932 = vmatprep.subr.bf16.mxu0 %v4116
    %4933 = vmatpush2.bf16.msra.mxu0 %v4115
    %4934 = vmatprep.subr.bf16.mxu0 %v4111
    %4935 = vmatpush2.bf16.msra.mxu0 %v4110
    %4936 = vmatprep.subr.bf16.mxu0 %v4106
    %4937 = vmatpush2.bf16.msra.mxu0 %v4105
    %4938 = vmatprep.mubr.bf16.mxu0 %v127
    %4939 = vmatmul.mubr.bf16.gmra.mxu0 %v126
    %v4940 = vpop.f32.mrf.mxu0
    %v4941 = vadd.f32 %v4900, %v4940
    %v4942 = vpop.f32.mrf.mxu0
    %v4943 = vadd.f32 %v4902, %v4942
    %v4944 = vpop.f32.mrf.mxu0
    %v4945 = vpop.f32.mrf.mxu0
    %4946 = vdwg.mxu0
    %4947 = vmatprep.subr.bf16.mxu0 %v4181
    %4948 = vmatpush1.bf16.msra.mxu0 %v4180
    %4949 = vmatprep.subr.bf16.mxu0 %v4176
    %4950 = vmatpush1.bf16.msra.mxu0 %v4175
    %4951 = vmatprep.subr.bf16.mxu0 %v4171
    %4952 = vmatpush1.bf16.msra.mxu0 %v4170
    %4953 = vmatprep.subr.bf16.mxu0 %v4166
    %4954 = vmatpush1.bf16.msra.mxu0 %v4165
    %4955 = vmatprep.subr.bf16.mxu0 %v4161
    %4956 = vmatpush1.bf16.msra.mxu0 %v4160
    %4957 = vmatprep.subr.bf16.mxu0 %v4156
    %4958 = vmatpush1.bf16.msra.mxu0 %v4155
    %4959 = vmatprep.subr.bf16.mxu0 %v4151
    %4960 = vmatpush1.bf16.msra.mxu0 %v4150
    %4961 = vmatprep.subr.bf16.mxu0 %v4146
    %4962 = vmatpush1.bf16.msra.mxu0 %v4145
    %4963 = vmatprep.subr.bf16.mxu0 %v4221
    %4964 = vmatpush2.bf16.msra.mxu0 %v4220
    %4965 = vmatprep.subr.bf16.mxu0 %v4216
    %4966 = vmatpush2.bf16.msra.mxu0 %v4215
    %4967 = vmatprep.subr.bf16.mxu0 %v4211
    %4968 = vmatpush2.bf16.msra.mxu0 %v4210
    %4969 = vmatprep.subr.bf16.mxu0 %v4206
    %4970 = vmatpush2.bf16.msra.mxu0 %v4205
    %4971 = vmatprep.subr.bf16.mxu0 %v4201
    %4972 = vmatpush2.bf16.msra.mxu0 %v4200
    %4973 = vmatprep.subr.bf16.mxu0 %v4196
    %4974 = vmatpush2.bf16.msra.mxu0 %v4195
    %4975 = vmatprep.subr.bf16.mxu0 %v4191
    %4976 = vmatpush2.bf16.msra.mxu0 %v4190
    %4977 = vmatprep.subr.bf16.mxu0 %v4186
    %4978 = vmatpush2.bf16.msra.mxu0 %v4185
    %4979 = vmatprep.mubr.bf16.mxu0 %v129
    %4980 = vmatmul.mubr.bf16.gmra.mxu0 %v128
    %v4981 = vpop.f32.mrf.mxu0
    %v4982 = vadd.f32 %v4941, %v4981
    %v4983 = vpop.f32.mrf.mxu0
    %v4984 = vadd.f32 %v4943, %v4983
    %v4985 = vpop.f32.mrf.mxu0
    %v4986 = vpop.f32.mrf.mxu0
    %4987 = vdwg.mxu0
    %4988 = vmatprep.subr.bf16.mxu0 %v4261
    %4989 = vmatpush1.bf16.msra.mxu0 %v4260
    %4990 = vmatprep.subr.bf16.mxu0 %v4256
    %4991 = vmatpush1.bf16.msra.mxu0 %v4255
    %4992 = vmatprep.subr.bf16.mxu0 %v4251
    %4993 = vmatpush1.bf16.msra.mxu0 %v4250
    %4994 = vmatprep.subr.bf16.mxu0 %v4246
    %4995 = vmatpush1.bf16.msra.mxu0 %v4245
    %4996 = vmatprep.subr.bf16.mxu0 %v4241
    %4997 = vmatpush1.bf16.msra.mxu0 %v4240
    %4998 = vmatprep.subr.bf16.mxu0 %v4236
    %4999 = vmatpush1.bf16.msra.mxu0 %v4235
    %5000 = vmatprep.subr.bf16.mxu0 %v4231
    %5001 = vmatpush1.bf16.msra.mxu0 %v4230
    %5002 = vmatprep.subr.bf16.mxu0 %v4226
    %5003 = vmatpush1.bf16.msra.mxu0 %v4225
    %5004 = vmatprep.subr.bf16.mxu0 %v4301
    %5005 = vmatpush2.bf16.msra.mxu0 %v4300
    %5006 = vmatprep.subr.bf16.mxu0 %v4296
    %5007 = vmatpush2.bf16.msra.mxu0 %v4295
    %5008 = vmatprep.subr.bf16.mxu0 %v4291
    %5009 = vmatpush2.bf16.msra.mxu0 %v4290
    %5010 = vmatprep.subr.bf16.mxu0 %v4286
    %5011 = vmatpush2.bf16.msra.mxu0 %v4285
    %5012 = vmatprep.subr.bf16.mxu0 %v4281
    %5013 = vmatpush2.bf16.msra.mxu0 %v4280
    %5014 = vmatprep.subr.bf16.mxu0 %v4276
    %5015 = vmatpush2.bf16.msra.mxu0 %v4275
    %5016 = vmatprep.subr.bf16.mxu0 %v4271
    %5017 = vmatpush2.bf16.msra.mxu0 %v4270
    %5018 = vmatprep.subr.bf16.mxu0 %v4266
    %5019 = vmatpush2.bf16.msra.mxu0 %v4265
    %5020 = vmatprep.mubr.bf16.mxu0 %v131
    %5021 = vmatmul.mubr.bf16.gmra.mxu0 %v130
    %v5022 = vpop.f32.mrf.mxu0
    %v5023 = vadd.f32 %v4982, %v5022
    %v5024 = vpop.f32.mrf.mxu0
    %v5025 = vadd.f32 %v4984, %v5024
    %v5026 = vpop.f32.mrf.mxu0
    %v5027 = vpop.f32.mrf.mxu0
    %5028 = vdwg.mxu0
    %5029 = vmatprep.subr.bf16.mxu0 %v4341
    %5030 = vmatpush1.bf16.msra.mxu0 %v4340
    %5031 = vmatprep.subr.bf16.mxu0 %v4336
    %5032 = vmatpush1.bf16.msra.mxu0 %v4335
    %5033 = vmatprep.subr.bf16.mxu0 %v4331
    %5034 = vmatpush1.bf16.msra.mxu0 %v4330
    %5035 = vmatprep.subr.bf16.mxu0 %v4326
    %5036 = vmatpush1.bf16.msra.mxu0 %v4325
    %5037 = vmatprep.subr.bf16.mxu0 %v4321
    %5038 = vmatpush1.bf16.msra.mxu0 %v4320
    %5039 = vmatprep.subr.bf16.mxu0 %v4316
    %5040 = vmatpush1.bf16.msra.mxu0 %v4315
    %5041 = vmatprep.subr.bf16.mxu0 %v4311
    %5042 = vmatpush1.bf16.msra.mxu0 %v4310
    %5043 = vmatprep.subr.bf16.mxu0 %v4306
    %5044 = vmatpush1.bf16.msra.mxu0 %v4305
    %5045 = vmatprep.subr.bf16.mxu0 %v4381
    %5046 = vmatpush2.bf16.msra.mxu0 %v4380
    %5047 = vmatprep.subr.bf16.mxu0 %v4376
    %5048 = vmatpush2.bf16.msra.mxu0 %v4375
    %5049 = vmatprep.subr.bf16.mxu0 %v4371
    %5050 = vmatpush2.bf16.msra.mxu0 %v4370
    %5051 = vmatprep.subr.bf16.mxu0 %v4366
    %5052 = vmatpush2.bf16.msra.mxu0 %v4365
    %5053 = vmatprep.subr.bf16.mxu0 %v4361
    %5054 = vmatpush2.bf16.msra.mxu0 %v4360
    %5055 = vmatprep.subr.bf16.mxu0 %v4356
    %5056 = vmatpush2.bf16.msra.mxu0 %v4355
    %5057 = vmatprep.subr.bf16.mxu0 %v4351
    %5058 = vmatpush2.bf16.msra.mxu0 %v4350
    %5059 = vmatprep.subr.bf16.mxu0 %v4346
    %5060 = vmatpush2.bf16.msra.mxu0 %v4345
    %5061 = vmatprep.mubr.bf16.mxu0 %v133
    %5062 = vmatmul.mubr.bf16.gmra.mxu0 %v132
    %v5063 = vpop.f32.mrf.mxu0
    %v5064 = vadd.f32 %v5023, %v5063
    %v5065 = vpop.f32.mrf.mxu0
    %v5066 = vadd.f32 %v5025, %v5065
    %v5067 = vpop.f32.mrf.mxu0
    %v5068 = vpop.f32.mrf.mxu0
    %5069 = vdwg.mxu0
    %5070 = vmatprep.subr.bf16.mxu0 %v4421
    %5071 = vmatpush1.bf16.msra.mxu0 %v4420
    %5072 = vmatprep.subr.bf16.mxu0 %v4416
    %5073 = vmatpush1.bf16.msra.mxu0 %v4415
    %5074 = vmatprep.subr.bf16.mxu0 %v4411
    %5075 = vmatpush1.bf16.msra.mxu0 %v4410
    %5076 = vmatprep.subr.bf16.mxu0 %v4406
    %5077 = vmatpush1.bf16.msra.mxu0 %v4405
    %5078 = vmatprep.subr.bf16.mxu0 %v4401
    %5079 = vmatpush1.bf16.msra.mxu0 %v4400
    %5080 = vmatprep.subr.bf16.mxu0 %v4396
    %5081 = vmatpush1.bf16.msra.mxu0 %v4395
    %5082 = vmatprep.subr.bf16.mxu0 %v4391
    %5083 = vmatpush1.bf16.msra.mxu0 %v4390
    %5084 = vmatprep.subr.bf16.mxu0 %v4386
    %5085 = vmatpush1.bf16.msra.mxu0 %v4385
    %5086 = vmatprep.subr.bf16.mxu0 0
    %5087 = vmatpush2.bf16.msra.mxu0 0
    %5088 = vmatprep.subr.bf16.mxu0 0
    %5089 = vmatpush2.bf16.msra.mxu0 0
    %5090 = vmatprep.subr.bf16.mxu0 0
    %5091 = vmatpush2.bf16.msra.mxu0 0
    %5092 = vmatprep.subr.bf16.mxu0 0
    %5093 = vmatpush2.bf16.msra.mxu0 0
    %5094 = vmatprep.subr.bf16.mxu0 0
    %5095 = vmatpush2.bf16.msra.mxu0 0
    %5096 = vmatprep.subr.bf16.mxu0 0
    %5097 = vmatpush2.bf16.msra.mxu0 0
    %5098 = vmatprep.subr.bf16.mxu0 0
    %5099 = vmatpush2.bf16.msra.mxu0 0
    %5100 = vmatprep.subr.bf16.mxu0 0
    %5101 = vmatpush2.bf16.msra.mxu0 0
    %5102 = vmatprep.mubr.bf16.mxu0 0
    %5103 = vmatmul.mubr.bf16.gmra.mxu0 %v134
    %v5104 = vpop.f32.mrf.mxu0
    %v5105 = vadd.f32 %v5064, %v5104
    %v5106 = vpop.f32.mrf.mxu0
    %v5107 = vadd.f32 %v5066, %v5106
    %v5108 = vpop.f32.mrf.mxu0
    %v5109 = vpop.f32.mrf.mxu0
    %5110 = vdwg.mxu0
    %5111 = vmatprep.subr.bf16.mxu0 %v4023
    %5112 = vmatpush1.bf16.msra.mxu0 %v4022
    %5113 = vmatprep.subr.bf16.mxu0 %v4018
    %5114 = vmatpush1.bf16.msra.mxu0 %v4017
    %5115 = vmatprep.subr.bf16.mxu0 %v4013
    %5116 = vmatpush1.bf16.msra.mxu0 %v4012
    %5117 = vmatprep.subr.bf16.mxu0 %v4008
    %5118 = vmatpush1.bf16.msra.mxu0 %v4007
    %5119 = vmatprep.subr.bf16.mxu0 %v4003
    %5120 = vmatpush1.bf16.msra.mxu0 %v4002
    %5121 = vmatprep.subr.bf16.mxu0 %v3998
    %5122 = vmatpush1.bf16.msra.mxu0 %v3997
    %5123 = vmatprep.subr.bf16.mxu0 %v3993
    %5124 = vmatpush1.bf16.msra.mxu0 %v3992
    %5125 = vmatprep.subr.bf16.mxu0 %v3988
    %5126 = vmatpush1.bf16.msra.mxu0 %v3987
    %5127 = vmatprep.subr.bf16.mxu0 %v4063
    %5128 = vmatpush2.bf16.msra.mxu0 %v4062
    %5129 = vmatprep.subr.bf16.mxu0 %v4058
    %5130 = vmatpush2.bf16.msra.mxu0 %v4057
    %5131 = vmatprep.subr.bf16.mxu0 %v4053
    %5132 = vmatpush2.bf16.msra.mxu0 %v4052
    %5133 = vmatprep.subr.bf16.mxu0 %v4048
    %5134 = vmatpush2.bf16.msra.mxu0 %v4047
    %5135 = vmatprep.subr.bf16.mxu0 %v4043
    %5136 = vmatpush2.bf16.msra.mxu0 %v4042
    %5137 = vmatprep.subr.bf16.mxu0 %v4038
    %5138 = vmatpush2.bf16.msra.mxu0 %v4037
    %5139 = vmatprep.subr.bf16.mxu0 %v4033
    %5140 = vmatpush2.bf16.msra.mxu0 %v4032
    %5141 = vmatprep.subr.bf16.mxu0 %v4028
    %5142 = vmatpush2.bf16.msra.mxu0 %v4027
    %5143 = vmatprep.mubr.bf16.mxu0 %v125
    %5144 = vmatmul.mubr.bf16.gmra.mxu0 %v124
    %v5145 = vpop.f32.mrf.mxu0
    %v5146 = vadd.f32 %v2451, %v5145
    %v5147 = vpop.f32.mrf.mxu0
    %v5148 = vadd.f32 %v2453, %v5147
    %v5149 = vpop.f32.mrf.mxu0
    %v5150 = vpop.f32.mrf.mxu0
    %5151 = vdwg.mxu0
    %5152 = vmatprep.subr.bf16.mxu0 %v4103
    %5153 = vmatpush1.bf16.msra.mxu0 %v4102
    %5154 = vmatprep.subr.bf16.mxu0 %v4098
    %5155 = vmatpush1.bf16.msra.mxu0 %v4097
    %5156 = vmatprep.subr.bf16.mxu0 %v4093
    %5157 = vmatpush1.bf16.msra.mxu0 %v4092
    %5158 = vmatprep.subr.bf16.mxu0 %v4088
    %5159 = vmatpush1.bf16.msra.mxu0 %v4087
    %5160 = vmatprep.subr.bf16.mxu0 %v4083
    %5161 = vmatpush1.bf16.msra.mxu0 %v4082
    %5162 = vmatprep.subr.bf16.mxu0 %v4078
    %5163 = vmatpush1.bf16.msra.mxu0 %v4077
    %5164 = vmatprep.subr.bf16.mxu0 %v4073
    %5165 = vmatpush1.bf16.msra.mxu0 %v4072
    %5166 = vmatprep.subr.bf16.mxu0 %v4068
    %5167 = vmatpush1.bf16.msra.mxu0 %v4067
    %5168 = vmatprep.subr.bf16.mxu0 %v4143
    %5169 = vmatpush2.bf16.msra.mxu0 %v4142
    %5170 = vmatprep.subr.bf16.mxu0 %v4138
    %5171 = vmatpush2.bf16.msra.mxu0 %v4137
    %5172 = vmatprep.subr.bf16.mxu0 %v4133
    %5173 = vmatpush2.bf16.msra.mxu0 %v4132
    %5174 = vmatprep.subr.bf16.mxu0 %v4128
    %5175 = vmatpush2.bf16.msra.mxu0 %v4127
    %5176 = vmatprep.subr.bf16.mxu0 %v4123
    %5177 = vmatpush2.bf16.msra.mxu0 %v4122
    %5178 = vmatprep.subr.bf16.mxu0 %v4118
    %5179 = vmatpush2.bf16.msra.mxu0 %v4117
    %5180 = vmatprep.subr.bf16.mxu0 %v4113
    %5181 = vmatpush2.bf16.msra.mxu0 %v4112
    %5182 = vmatprep.subr.bf16.mxu0 %v4108
    %5183 = vmatpush2.bf16.msra.mxu0 %v4107
    %5184 = vmatprep.mubr.bf16.mxu0 %v127
    %5185 = vmatmul.mubr.bf16.gmra.mxu0 %v126
    %v5186 = vpop.f32.mrf.mxu0
    %v5187 = vadd.f32 %v5146, %v5186
    %v5188 = vpop.f32.mrf.mxu0
    %v5189 = vadd.f32 %v5148, %v5188
    %v5190 = vpop.f32.mrf.mxu0
    %v5191 = vpop.f32.mrf.mxu0
    %5192 = vdwg.mxu0
    %5193 = vmatprep.subr.bf16.mxu0 %v4183
    %5194 = vmatpush1.bf16.msra.mxu0 %v4182
    %5195 = vmatprep.subr.bf16.mxu0 %v4178
    %5196 = vmatpush1.bf16.msra.mxu0 %v4177
    %5197 = vmatprep.subr.bf16.mxu0 %v4173
    %5198 = vmatpush1.bf16.msra.mxu0 %v4172
    %5199 = vmatprep.subr.bf16.mxu0 %v4168
    %5200 = vmatpush1.bf16.msra.mxu0 %v4167
    %5201 = vmatprep.subr.bf16.mxu0 %v4163
    %5202 = vmatpush1.bf16.msra.mxu0 %v4162
    %5203 = vmatprep.subr.bf16.mxu0 %v4158
    %5204 = vmatpush1.bf16.msra.mxu0 %v4157
    %5205 = vmatprep.subr.bf16.mxu0 %v4153
    %5206 = vmatpush1.bf16.msra.mxu0 %v4152
    %5207 = vmatprep.subr.bf16.mxu0 %v4148
    %5208 = vmatpush1.bf16.msra.mxu0 %v4147
    %5209 = vmatprep.subr.bf16.mxu0 %v4223
    %5210 = vmatpush2.bf16.msra.mxu0 %v4222
    %5211 = vmatprep.subr.bf16.mxu0 %v4218
    %5212 = vmatpush2.bf16.msra.mxu0 %v4217
    %5213 = vmatprep.subr.bf16.mxu0 %v4213
    %5214 = vmatpush2.bf16.msra.mxu0 %v4212
    %5215 = vmatprep.subr.bf16.mxu0 %v4208
    %5216 = vmatpush2.bf16.msra.mxu0 %v4207
    %5217 = vmatprep.subr.bf16.mxu0 %v4203
    %5218 = vmatpush2.bf16.msra.mxu0 %v4202
    %5219 = vmatprep.subr.bf16.mxu0 %v4198
    %5220 = vmatpush2.bf16.msra.mxu0 %v4197
    %5221 = vmatprep.subr.bf16.mxu0 %v4193
    %5222 = vmatpush2.bf16.msra.mxu0 %v4192
    %5223 = vmatprep.subr.bf16.mxu0 %v4188
    %5224 = vmatpush2.bf16.msra.mxu0 %v4187
    %5225 = vmatprep.mubr.bf16.mxu0 %v129
    %5226 = vmatmul.mubr.bf16.gmra.mxu0 %v128
    %v5227 = vpop.f32.mrf.mxu0
    %v5228 = vadd.f32 %v5187, %v5227
    %v5229 = vpop.f32.mrf.mxu0
    %v5230 = vadd.f32 %v5189, %v5229
    %v5231 = vpop.f32.mrf.mxu0
    %v5232 = vpop.f32.mrf.mxu0
    %5233 = vdwg.mxu0
    %5234 = vmatprep.subr.bf16.mxu0 %v4263
    %5235 = vmatpush1.bf16.msra.mxu0 %v4262
    %5236 = vmatprep.subr.bf16.mxu0 %v4258
    %5237 = vmatpush1.bf16.msra.mxu0 %v4257
    %5238 = vmatprep.subr.bf16.mxu0 %v4253
    %5239 = vmatpush1.bf16.msra.mxu0 %v4252
    %5240 = vmatprep.subr.bf16.mxu0 %v4248
    %5241 = vmatpush1.bf16.msra.mxu0 %v4247
    %5242 = vmatprep.subr.bf16.mxu0 %v4243
    %5243 = vmatpush1.bf16.msra.mxu0 %v4242
    %5244 = vmatprep.subr.bf16.mxu0 %v4238
    %5245 = vmatpush1.bf16.msra.mxu0 %v4237
    %5246 = vmatprep.subr.bf16.mxu0 %v4233
    %5247 = vmatpush1.bf16.msra.mxu0 %v4232
    %5248 = vmatprep.subr.bf16.mxu0 %v4228
    %5249 = vmatpush1.bf16.msra.mxu0 %v4227
    %5250 = vmatprep.subr.bf16.mxu0 %v4303
    %5251 = vmatpush2.bf16.msra.mxu0 %v4302
    %5252 = vmatprep.subr.bf16.mxu0 %v4298
    %5253 = vmatpush2.bf16.msra.mxu0 %v4297
    %5254 = vmatprep.subr.bf16.mxu0 %v4293
    %5255 = vmatpush2.bf16.msra.mxu0 %v4292
    %5256 = vmatprep.subr.bf16.mxu0 %v4288
    %5257 = vmatpush2.bf16.msra.mxu0 %v4287
    %5258 = vmatprep.subr.bf16.mxu0 %v4283
    %5259 = vmatpush2.bf16.msra.mxu0 %v4282
    %5260 = vmatprep.subr.bf16.mxu0 %v4278
    %5261 = vmatpush2.bf16.msra.mxu0 %v4277
    %5262 = vmatprep.subr.bf16.mxu0 %v4273
    %5263 = vmatpush2.bf16.msra.mxu0 %v4272
    %5264 = vmatprep.subr.bf16.mxu0 %v4268
    %5265 = vmatpush2.bf16.msra.mxu0 %v4267
    %5266 = vmatprep.mubr.bf16.mxu0 %v131
    %5267 = vmatmul.mubr.bf16.gmra.mxu0 %v130
    %v5268 = vpop.f32.mrf.mxu0
    %v5269 = vadd.f32 %v5228, %v5268
    %v5270 = vpop.f32.mrf.mxu0
    %v5271 = vadd.f32 %v5230, %v5270
    %v5272 = vpop.f32.mrf.mxu0
    %v5273 = vpop.f32.mrf.mxu0
    %5274 = vdwg.mxu0
    %5275 = vmatprep.subr.bf16.mxu0 %v4343
    %5276 = vmatpush1.bf16.msra.mxu0 %v4342
    %5277 = vmatprep.subr.bf16.mxu0 %v4338
    %5278 = vmatpush1.bf16.msra.mxu0 %v4337
    %5279 = vmatprep.subr.bf16.mxu0 %v4333
    %5280 = vmatpush1.bf16.msra.mxu0 %v4332
    %5281 = vmatprep.subr.bf16.mxu0 %v4328
    %5282 = vmatpush1.bf16.msra.mxu0 %v4327
    %5283 = vmatprep.subr.bf16.mxu0 %v4323
    %5284 = vmatpush1.bf16.msra.mxu0 %v4322
    %5285 = vmatprep.subr.bf16.mxu0 %v4318
    %5286 = vmatpush1.bf16.msra.mxu0 %v4317
    %5287 = vmatprep.subr.bf16.mxu0 %v4313
    %5288 = vmatpush1.bf16.msra.mxu0 %v4312
    %5289 = vmatprep.subr.bf16.mxu0 %v4308
    %5290 = vmatpush1.bf16.msra.mxu0 %v4307
    %5291 = vmatprep.subr.bf16.mxu0 %v4383
    %5292 = vmatpush2.bf16.msra.mxu0 %v4382
    %5293 = vmatprep.subr.bf16.mxu0 %v4378
    %5294 = vmatpush2.bf16.msra.mxu0 %v4377
    %5295 = vmatprep.subr.bf16.mxu0 %v4373
    %5296 = vmatpush2.bf16.msra.mxu0 %v4372
    %5297 = vmatprep.subr.bf16.mxu0 %v4368
    %5298 = vmatpush2.bf16.msra.mxu0 %v4367
    %5299 = vmatprep.subr.bf16.mxu0 %v4363
    %5300 = vmatpush2.bf16.msra.mxu0 %v4362
    %5301 = vmatprep.subr.bf16.mxu0 %v4358
    %5302 = vmatpush2.bf16.msra.mxu0 %v4357
    %5303 = vmatprep.subr.bf16.mxu0 %v4353
    %5304 = vmatpush2.bf16.msra.mxu0 %v4352
    %5305 = vmatprep.subr.bf16.mxu0 %v4348
    %5306 = vmatpush2.bf16.msra.mxu0 %v4347
    %5307 = vmatprep.mubr.bf16.mxu0 %v133
    %5308 = vmatmul.mubr.bf16.gmra.mxu0 %v132
    %v5309 = vpop.f32.mrf.mxu0
    %v5310 = vadd.f32 %v5269, %v5309
    %v5311 = vpop.f32.mrf.mxu0
    %v5312 = vadd.f32 %v5271, %v5311
    %v5313 = vpop.f32.mrf.mxu0
    %v5314 = vpop.f32.mrf.mxu0
    %5315 = vdwg.mxu0
    %5316 = vmatprep.subr.bf16.mxu0 %v4423
    %5317 = vmatpush1.bf16.msra.mxu0 %v4422
    %5318 = vmatprep.subr.bf16.mxu0 %v4418
    %5319 = vmatpush1.bf16.msra.mxu0 %v4417
    %5320 = vmatprep.subr.bf16.mxu0 %v4413
    %5321 = vmatpush1.bf16.msra.mxu0 %v4412
    %5322 = vmatprep.subr.bf16.mxu0 %v4408
    %5323 = vmatpush1.bf16.msra.mxu0 %v4407
    %5324 = vmatprep.subr.bf16.mxu0 %v4403
    %5325 = vmatpush1.bf16.msra.mxu0 %v4402
    %5326 = vmatprep.subr.bf16.mxu0 %v4398
    %5327 = vmatpush1.bf16.msra.mxu0 %v4397
    %5328 = vmatprep.subr.bf16.mxu0 %v4393
    %5329 = vmatpush1.bf16.msra.mxu0 %v4392
    %5330 = vmatprep.subr.bf16.mxu0 %v4388
    %5331 = vmatpush1.bf16.msra.mxu0 %v4387
    %5332 = vmatprep.subr.bf16.mxu0 0
    %5333 = vmatpush2.bf16.msra.mxu0 0
    %5334 = vmatprep.subr.bf16.mxu0 0
    %5335 = vmatpush2.bf16.msra.mxu0 0
    %5336 = vmatprep.subr.bf16.mxu0 0
    %5337 = vmatpush2.bf16.msra.mxu0 0
    %5338 = vmatprep.subr.bf16.mxu0 0
    %5339 = vmatpush2.bf16.msra.mxu0 0
    %5340 = vmatprep.subr.bf16.mxu0 0
    %5341 = vmatpush2.bf16.msra.mxu0 0
    %5342 = vmatprep.subr.bf16.mxu0 0
    %5343 = vmatpush2.bf16.msra.mxu0 0
    %5344 = vmatprep.subr.bf16.mxu0 0
    %5345 = vmatpush2.bf16.msra.mxu0 0
    %5346 = vmatprep.subr.bf16.mxu0 0
    %5347 = vmatpush2.bf16.msra.mxu0 0
    %5348 = vmatprep.mubr.bf16.mxu0 0
    %5349 = vmatmul.mubr.bf16.gmra.mxu0 %v134
    %v5350 = vpop.f32.mrf.mxu0
    %v5351 = vadd.f32 %v5310, %v5350
    %v5352 = vpop.f32.mrf.mxu0
    %v5353 = vadd.f32 %v5312, %v5352
    %v5354 = vpop.f32.mrf.mxu0
    %v5355 = vpop.f32.mrf.mxu0
    %5356 = vdwg.mxu0
    %5357 = vmatprep.subr.bf16.mxu0 0
    %5358 = vmatpush1.bf16.msra.mxu0 %v4024
    %5359 = vmatprep.subr.bf16.mxu0 0
    %5360 = vmatpush1.bf16.msra.mxu0 %v4019
    %5361 = vmatprep.subr.bf16.mxu0 0
    %5362 = vmatpush1.bf16.msra.mxu0 %v4014
    %5363 = vmatprep.subr.bf16.mxu0 0
    %5364 = vmatpush1.bf16.msra.mxu0 %v4009
    %5365 = vmatprep.subr.bf16.mxu0 0
    %5366 = vmatpush1.bf16.msra.mxu0 %v4004
    %5367 = vmatprep.subr.bf16.mxu0 0
    %5368 = vmatpush1.bf16.msra.mxu0 %v3999
    %5369 = vmatprep.subr.bf16.mxu0 0
    %5370 = vmatpush1.bf16.msra.mxu0 %v3994
    %5371 = vmatprep.subr.bf16.mxu0 0
    %5372 = vmatpush1.bf16.msra.mxu0 %v3989
    %5373 = vmatprep.subr.bf16.mxu0 0
    %5374 = vmatpush2.bf16.msra.mxu0 %v4064
    %5375 = vmatprep.subr.bf16.mxu0 0
    %5376 = vmatpush2.bf16.msra.mxu0 %v4059
    %5377 = vmatprep.subr.bf16.mxu0 0
    %5378 = vmatpush2.bf16.msra.mxu0 %v4054
    %5379 = vmatprep.subr.bf16.mxu0 0
    %5380 = vmatpush2.bf16.msra.mxu0 %v4049
    %5381 = vmatprep.subr.bf16.mxu0 0
    %5382 = vmatpush2.bf16.msra.mxu0 %v4044
    %5383 = vmatprep.subr.bf16.mxu0 0
    %5384 = vmatpush2.bf16.msra.mxu0 %v4039
    %5385 = vmatprep.subr.bf16.mxu0 0
    %5386 = vmatpush2.bf16.msra.mxu0 %v4034
    %5387 = vmatprep.subr.bf16.mxu0 0
    %5388 = vmatpush2.bf16.msra.mxu0 %v4029
    %5389 = vmatprep.mubr.bf16.mxu0 %v125
    %5390 = vmatmul.mubr.bf16.gmra.mxu0 %v124
    %v5391 = vpop.f32.mrf.mxu0
    %v5392 = vadd.f32 %v2572, %v5391
    %v5393 = vpop.f32.mrf.mxu0
    %v5394 = vpop.f32.mrf.mxu0
    %v5395 = vpop.f32.mrf.mxu0
    %5396 = vdwg.mxu0
    %5397 = vmatprep.subr.bf16.mxu0 0
    %5398 = vmatpush1.bf16.msra.mxu0 %v4104
    %5399 = vmatprep.subr.bf16.mxu0 0
    %5400 = vmatpush1.bf16.msra.mxu0 %v4099
    %5401 = vmatprep.subr.bf16.mxu0 0
    %5402 = vmatpush1.bf16.msra.mxu0 %v4094
    %5403 = vmatprep.subr.bf16.mxu0 0
    %5404 = vmatpush1.bf16.msra.mxu0 %v4089
    %5405 = vmatprep.subr.bf16.mxu0 0
    %5406 = vmatpush1.bf16.msra.mxu0 %v4084
    %5407 = vmatprep.subr.bf16.mxu0 0
    %5408 = vmatpush1.bf16.msra.mxu0 %v4079
    %5409 = vmatprep.subr.bf16.mxu0 0
    %5410 = vmatpush1.bf16.msra.mxu0 %v4074
    %5411 = vmatprep.subr.bf16.mxu0 0
    %5412 = vmatpush1.bf16.msra.mxu0 %v4069
    %5413 = vmatprep.subr.bf16.mxu0 0
    %5414 = vmatpush2.bf16.msra.mxu0 %v4144
    %5415 = vmatprep.subr.bf16.mxu0 0
    %5416 = vmatpush2.bf16.msra.mxu0 %v4139
    %5417 = vmatprep.subr.bf16.mxu0 0
    %5418 = vmatpush2.bf16.msra.mxu0 %v4134
    %5419 = vmatprep.subr.bf16.mxu0 0
    %5420 = vmatpush2.bf16.msra.mxu0 %v4129
    %5421 = vmatprep.subr.bf16.mxu0 0
    %5422 = vmatpush2.bf16.msra.mxu0 %v4124
    %5423 = vmatprep.subr.bf16.mxu0 0
    %5424 = vmatpush2.bf16.msra.mxu0 %v4119
    %5425 = vmatprep.subr.bf16.mxu0 0
    %5426 = vmatpush2.bf16.msra.mxu0 %v4114
    %5427 = vmatprep.subr.bf16.mxu0 0
    %5428 = vmatpush2.bf16.msra.mxu0 %v4109
    %5429 = vmatprep.mubr.bf16.mxu0 %v127
    %5430 = vmatmul.mubr.bf16.gmra.mxu0 %v126
    %v5431 = vpop.f32.mrf.mxu0
    %v5432 = vadd.f32 %v5392, %v5431
    %v5433 = vpop.f32.mrf.mxu0
    %v5434 = vpop.f32.mrf.mxu0
    %v5435 = vpop.f32.mrf.mxu0
    %5436 = vdwg.mxu0
    %5437 = vmatprep.subr.bf16.mxu0 0
    %5438 = vmatpush1.bf16.msra.mxu0 %v4184
    %5439 = vmatprep.subr.bf16.mxu0 0
    %5440 = vmatpush1.bf16.msra.mxu0 %v4179
    %5441 = vmatprep.subr.bf16.mxu0 0
    %5442 = vmatpush1.bf16.msra.mxu0 %v4174
    %5443 = vmatprep.subr.bf16.mxu0 0
    %5444 = vmatpush1.bf16.msra.mxu0 %v4169
    %5445 = vmatprep.subr.bf16.mxu0 0
    %5446 = vmatpush1.bf16.msra.mxu0 %v4164
    %5447 = vmatprep.subr.bf16.mxu0 0
    %5448 = vmatpush1.bf16.msra.mxu0 %v4159
    %5449 = vmatprep.subr.bf16.mxu0 0
    %5450 = vmatpush1.bf16.msra.mxu0 %v4154
    %5451 = vmatprep.subr.bf16.mxu0 0
    %5452 = vmatpush1.bf16.msra.mxu0 %v4149
    %5453 = vmatprep.subr.bf16.mxu0 0
    %5454 = vmatpush2.bf16.msra.mxu0 %v4224
    %5455 = vmatprep.subr.bf16.mxu0 0
    %5456 = vmatpush2.bf16.msra.mxu0 %v4219
    %5457 = vmatprep.subr.bf16.mxu0 0
    %5458 = vmatpush2.bf16.msra.mxu0 %v4214
    %5459 = vmatprep.subr.bf16.mxu0 0
    %5460 = vmatpush2.bf16.msra.mxu0 %v4209
    %5461 = vmatprep.subr.bf16.mxu0 0
    %5462 = vmatpush2.bf16.msra.mxu0 %v4204
    %5463 = vmatprep.subr.bf16.mxu0 0
    %5464 = vmatpush2.bf16.msra.mxu0 %v4199
    %5465 = vmatprep.subr.bf16.mxu0 0
    %5466 = vmatpush2.bf16.msra.mxu0 %v4194
    %5467 = vmatprep.subr.bf16.mxu0 0
    %5468 = vmatpush2.bf16.msra.mxu0 %v4189
    %5469 = vmatprep.mubr.bf16.mxu0 %v129
    %5470 = vmatmul.mubr.bf16.gmra.mxu0 %v128
    %v5471 = vpop.f32.mrf.mxu0
    %v5472 = vadd.f32 %v5432, %v5471
    %v5473 = vpop.f32.mrf.mxu0
    %v5474 = vpop.f32.mrf.mxu0
    %v5475 = vpop.f32.mrf.mxu0
    %5476 = vdwg.mxu0
    %5477 = vmatprep.subr.bf16.mxu0 0
    %5478 = vmatpush1.bf16.msra.mxu0 %v4264
    %5479 = vmatprep.subr.bf16.mxu0 0
    %5480 = vmatpush1.bf16.msra.mxu0 %v4259
    %5481 = vmatprep.subr.bf16.mxu0 0
    %5482 = vmatpush1.bf16.msra.mxu0 %v4254
    %5483 = vmatprep.subr.bf16.mxu0 0
    %5484 = vmatpush1.bf16.msra.mxu0 %v4249
    %5485 = vmatprep.subr.bf16.mxu0 0
    %5486 = vmatpush1.bf16.msra.mxu0 %v4244
    %5487 = vmatprep.subr.bf16.mxu0 0
    %5488 = vmatpush1.bf16.msra.mxu0 %v4239
    %5489 = vmatprep.subr.bf16.mxu0 0
    %5490 = vmatpush1.bf16.msra.mxu0 %v4234
    %5491 = vmatprep.subr.bf16.mxu0 0
    %5492 = vmatpush1.bf16.msra.mxu0 %v4229
    %5493 = vmatprep.subr.bf16.mxu0 0
    %5494 = vmatpush2.bf16.msra.mxu0 %v4304
    %5495 = vmatprep.subr.bf16.mxu0 0
    %5496 = vmatpush2.bf16.msra.mxu0 %v4299
    %5497 = vmatprep.subr.bf16.mxu0 0
    %5498 = vmatpush2.bf16.msra.mxu0 %v4294
    %5499 = vmatprep.subr.bf16.mxu0 0
    %5500 = vmatpush2.bf16.msra.mxu0 %v4289
    %5501 = vmatprep.subr.bf16.mxu0 0
    %5502 = vmatpush2.bf16.msra.mxu0 %v4284
    %5503 = vmatprep.subr.bf16.mxu0 0
    %5504 = vmatpush2.bf16.msra.mxu0 %v4279
    %5505 = vmatprep.subr.bf16.mxu0 0
    %5506 = vmatpush2.bf16.msra.mxu0 %v4274
    %5507 = vmatprep.subr.bf16.mxu0 0
    %5508 = vmatpush2.bf16.msra.mxu0 %v4269
    %5509 = vmatprep.mubr.bf16.mxu0 %v131
    %5510 = vmatmul.mubr.bf16.gmra.mxu0 %v130
    %v5511 = vpop.f32.mrf.mxu0
    %v5512 = vadd.f32 %v5472, %v5511
    %v5513 = vpop.f32.mrf.mxu0
    %v5514 = vpop.f32.mrf.mxu0
    %v5515 = vpop.f32.mrf.mxu0
    %5516 = vdwg.mxu0
    %5517 = vmatprep.subr.bf16.mxu0 0
    %5518 = vmatpush1.bf16.msra.mxu0 %v4344
    %5519 = vmatprep.subr.bf16.mxu0 0
    %5520 = vmatpush1.bf16.msra.mxu0 %v4339
    %5521 = vmatprep.subr.bf16.mxu0 0
    %5522 = vmatpush1.bf16.msra.mxu0 %v4334
    %5523 = vmatprep.subr.bf16.mxu0 0
    %5524 = vmatpush1.bf16.msra.mxu0 %v4329
    %5525 = vmatprep.subr.bf16.mxu0 0
    %5526 = vmatpush1.bf16.msra.mxu0 %v4324
    %5527 = vmatprep.subr.bf16.mxu0 0
    %5528 = vmatpush1.bf16.msra.mxu0 %v4319
    %5529 = vmatprep.subr.bf16.mxu0 0
    %5530 = vmatpush1.bf16.msra.mxu0 %v4314
    %5531 = vmatprep.subr.bf16.mxu0 0
    %5532 = vmatpush1.bf16.msra.mxu0 %v4309
    %5533 = vmatprep.subr.bf16.mxu0 0
    %5534 = vmatpush2.bf16.msra.mxu0 %v4384
    %5535 = vmatprep.subr.bf16.mxu0 0
    %5536 = vmatpush2.bf16.msra.mxu0 %v4379
    %5537 = vmatprep.subr.bf16.mxu0 0
    %5538 = vmatpush2.bf16.msra.mxu0 %v4374
    %5539 = vmatprep.subr.bf16.mxu0 0
    %5540 = vmatpush2.bf16.msra.mxu0 %v4369
    %5541 = vmatprep.subr.bf16.mxu0 0
    %5542 = vmatpush2.bf16.msra.mxu0 %v4364
    %5543 = vmatprep.subr.bf16.mxu0 0
    %5544 = vmatpush2.bf16.msra.mxu0 %v4359
    %5545 = vmatprep.subr.bf16.mxu0 0
    %5546 = vmatpush2.bf16.msra.mxu0 %v4354
    %5547 = vmatprep.subr.bf16.mxu0 0
    %5548 = vmatpush2.bf16.msra.mxu0 %v4349
    %5549 = vmatprep.mubr.bf16.mxu0 %v133
    %5550 = vmatmul.mubr.bf16.gmra.mxu0 %v132
    %v5551 = vpop.f32.mrf.mxu0
    %v5552 = vadd.f32 %v5512, %v5551
    %v5553 = vpop.f32.mrf.mxu0
    %v5554 = vpop.f32.mrf.mxu0
    %v5555 = vpop.f32.mrf.mxu0
    %5556 = vdwg.mxu0
    %5557 = vmatprep.subr.bf16.mxu0 0
    %5558 = vmatpush1.bf16.msra.mxu0 %v4424
    %5559 = vmatprep.subr.bf16.mxu0 0
    %5560 = vmatpush1.bf16.msra.mxu0 %v4419
    %5561 = vmatprep.subr.bf16.mxu0 0
    %5562 = vmatpush1.bf16.msra.mxu0 %v4414
    %5563 = vmatprep.subr.bf16.mxu0 0
    %5564 = vmatpush1.bf16.msra.mxu0 %v4409
    %5565 = vmatprep.subr.bf16.mxu0 0
    %5566 = vmatpush1.bf16.msra.mxu0 %v4404
    %5567 = vmatprep.subr.bf16.mxu0 0
    %5568 = vmatpush1.bf16.msra.mxu0 %v4399
    %5569 = vmatprep.subr.bf16.mxu0 0
    %5570 = vmatpush1.bf16.msra.mxu0 %v4394
    %5571 = vmatprep.subr.bf16.mxu0 0
    %5572 = vmatpush1.bf16.msra.mxu0 %v4389
    %5573 = vmatprep.subr.bf16.mxu0 0
    %5574 = vmatpush2.bf16.msra.mxu0 0
    %5575 = vmatprep.subr.bf16.mxu0 0
    %5576 = vmatpush2.bf16.msra.mxu0 0
    %5577 = vmatprep.subr.bf16.mxu0 0
    %5578 = vmatpush2.bf16.msra.mxu0 0
    %5579 = vmatprep.subr.bf16.mxu0 0
    %5580 = vmatpush2.bf16.msra.mxu0 0
    %5581 = vmatprep.subr.bf16.mxu0 0
    %5582 = vmatpush2.bf16.msra.mxu0 0
    %5583 = vmatprep.subr.bf16.mxu0 0
    %5584 = vmatpush2.bf16.msra.mxu0 0
    %5585 = vmatprep.subr.bf16.mxu0 0
    %5586 = vmatpush2.bf16.msra.mxu0 0
    %5587 = vmatprep.subr.bf16.mxu0 0
    %5588 = vmatpush2.bf16.msra.mxu0 0
    %5589 = vmatprep.mubr.bf16.mxu0 0
    %5590 = vmatmul.mubr.bf16.gmra.mxu0 %v134
    %v5591 = vpop.f32.mrf.mxu0
    %v5592 = vadd.f32 %v5552, %v5591
    %v5593 = vpop.f32.mrf.mxu0
    %v5594 = vpop.f32.mrf.mxu0
    %v5595 = vpop.f32.mrf.mxu0
    %5596 = vdwg.mxu0
    %v5597 = vld [vmem:[#allocation9] sm:$0x1f]
    %v5599 = vlaneseq
    %v5600 = vshrl.u32 %v5599, 7
    %v5601 = vsub.s32 0, %v5600
    %v5602 = vrot.slane %v5597, %v5601
    %v5603 = vlaneseq
    %v5604 = vshrl.u32 %v5603, 7
    %v5605 = vsub.s32 1, %v5604
    %v5606 = vrot.slane %v5597, %v5605
    %v5607 = vlaneseq
    %v5608 = vshrl.u32 %v5607, 7
    %v5609 = vsub.s32 2, %v5608
    %v5610 = vrot.slane %v5597, %v5609
    %v5611 = vlaneseq
    %v5612 = vshrl.u32 %v5611, 7
    %v5613 = vsub.s32 3, %v5612
    %v5614 = vrot.slane %v5597, %v5613
    %v5615 = vlaneseq
    %v5616 = vshrl.u32 %v5615, 7
    %v5617 = vsub.s32 4, %v5616
    %v5618 = vrot.slane %v5597, %v5617
    %v5624 = vadd.f32 %v5105, %v5602
    %v5625 = vadd.f32 %v5107, %v5606
    %v5626 = vadd.f32 %v5351, %v5610
    %v5627 = vadd.f32 %v5353, %v5614
    %v5628 = vadd.f32 %v5592, %v5618
    %v5629 = vld [vmem:[#allocation12] sm:$0x1]
    %v5630 = vld [vmem:[#allocation12 + $0x1] sm:$0x1]
    %v5631 = vld [vmem:[#allocation12 + $0x2] sm:$0x1]
    %v5632 = vld [vmem:[#allocation12 + $0x3] sm:$0x1]
    %v5633 = vld [vmem:[#allocation12 + $0x4] sm:$0x1]
    %v5634 = vld [vmem:[#allocation12 + $0x5] sm:$0x1]
    %v5635 = vld [vmem:[#allocation12 + $0x6] sm:$0x1]
    %s5636 = sld [smem:[#allocation14]]
    %s5637 = sld [smem:[#allocation14 + $0x1]]
    %v5638 = vpack.c.bf16 %v5624, %v5624
    %v5639 = vpack.c.bf16 %v5625, %v5625
    %v5640 = vpack.c.bf16 %v5626, %v5626
    %v5641 = vpack.c.bf16 %v5627, %v5627
    %v5642 = vld [vmem:[#allocation11] sm:$0xf]
    %v5643 = vld [vmem:[#allocation11 + $0x4] sm:$0xf]
    %v5644 = vld [vmem:[#allocation11 + $0x8] sm:$0xf]
    %v5645 = vld [vmem:[#allocation11 + $0xc] sm:$0xf]
    %v5646 = vld [vmem:[#allocation11 + $0x10] sm:$0xf]
    %v5647 = vld [vmem:[#allocation11 + $0x14] sm:$0xf]
    %v5648 = vld [vmem:[#allocation11 + $0x18] sm:$0xf]
    %v5649 = vld [vmem:[#allocation11 + $0x1c] sm:$0xf]
    %v5650 = vld [vmem:[#allocation11 + $0x20] sm:$0xf]
    %v5651 = vld [vmem:[#allocation11 + $0x24] sm:$0xf]
    %v5652 = vld [vmem:[#allocation11 + $0x28] sm:$0xf]
    %v5653 = vld [vmem:[#allocation11 + $0x2c] sm:$0xf]
    %v5654 = vld [vmem:[#allocation11 + $0x30] sm:$0xf]
    %v5655 = vld [vmem:[#allocation11 + $0x34] sm:$0xf]
    %v5656 = vld [vmem:[#allocation11 + $0x38] sm:$0xf]
    %v5657 = vld [vmem:[#allocation11 + $0x3c] sm:$0xf]
    %v5658 = vld [vmem:[#allocation11 + $0x40] sm:$0xf]
    %v5659 = vld [vmem:[#allocation11 + $0x44] sm:$0xf]
    %v5660 = vld [vmem:[#allocation11 + $0x48] sm:$0xf]
    %v5661 = vld [vmem:[#allocation11 + $0x4c] sm:$0xf]
    %v5662 = vld [vmem:[#allocation11 + $0x50] sm:$0xf]
    %v5663 = vld [vmem:[#allocation11 + $0x54] sm:$0xf]
    %v5664 = vld [vmem:[#allocation11 + $0x58] sm:$0xf]
    %v5665 = vld [vmem:[#allocation11 + $0x5c] sm:$0xf]
    %v5666 = vld [vmem:[#allocation11 + $0x60] sm:$0xf]
    %v5667 = vld [vmem:[#allocation11 + $0x64] sm:$0xf]
    %v5668 = vld [vmem:[#allocation11 + $0x68] sm:$0xf]
    %v5669 = vld [vmem:[#allocation11 + $0x6c] sm:$0xf]
    %v5670 = vld [vmem:[#allocation11 + $0x70] sm:$0xf]
    %v5671 = vld [vmem:[#allocation11 + $0x74] sm:$0xf]
    %v5672 = vld [vmem:[#allocation11 + $0x78] sm:$0xf]
    %v5673 = vld [vmem:[#allocation11 + $0x7c] sm:$0xf]
    %v5674 = vld [vmem:[#allocation11 + $0x80] sm:$0xf]
    %v5675 = vld [vmem:[#allocation11 + $0x84] sm:$0xf]
    %v5676 = vld [vmem:[#allocation11 + $0x88] sm:$0xf]
    %v5677 = vld [vmem:[#allocation11 + $0x8c] sm:$0xf]
    %v5678 = vld [vmem:[#allocation11 + $0x90] sm:$0xf]
    %v5679 = vld [vmem:[#allocation11 + $0x94] sm:$0xf]
    %v5680 = vld [vmem:[#allocation11 + $0x98] sm:$0xf]
    %v5681 = vld [vmem:[#allocation11 + $0x9c] sm:$0xf]
    %v5682 = vld [vmem:[#allocation11 + $0xa0] sm:$0xf]
    %v5683 = vld [vmem:[#allocation11 + $0xa4] sm:$0xf]
    %v5684 = vld [vmem:[#allocation11 + $0xa8] sm:$0xf]
    %v5685 = vld [vmem:[#allocation11 + $0xac] sm:$0xf]
    %v5686 = vld [vmem:[#allocation11 + $0xb0] sm:$0xf]
    %v5687 = vld [vmem:[#allocation11 + $0xb4] sm:$0xf]
    %v5688 = vld [vmem:[#allocation11 + $0xb8] sm:$0xf]
    %v5689 = vld [vmem:[#allocation11 + $0xbc] sm:$0xf]
    %v5690 = vld [vmem:[#allocation11 + $0xc0] sm:$0xf]
    %v5691 = vld [vmem:[#allocation11 + $0xc4] sm:$0xf]
    %v5692 = vld [vmem:[#allocation11 + $0xc8] sm:$0xf]
    %v5693 = vld [vmem:[#allocation11 + $0xcc] sm:$0xf]
    %v5694 = vld [vmem:[#allocation11 + $0xd0] sm:$0xf]
    %v5695 = vld [vmem:[#allocation11 + $0xd4] sm:$0xf]
    %v5696 = vld [vmem:[#allocation11 + $0xd8] sm:$0xf]
    %v5697 = vld [vmem:[#allocation11 + $0xdc] sm:$0xf]
    %v5698 = vld [vmem:[#allocation11 + $0xe0] sm:$0xf]
    %v5699 = vld [vmem:[#allocation11 + $0xe4] sm:$0xf]
    %v5700 = vld [vmem:[#allocation11 + $0xe8] sm:$0xf]
    %v5701 = vld [vmem:[#allocation11 + $0xec] sm:$0xf]
    %v5702 = vld [vmem:[#allocation11 + $0xf0] sm:$0xf]
    %v5703 = vld [vmem:[#allocation11 + $0xf4] sm:$0xf]
    %v5704 = vld [vmem:[#allocation11 + $0xf8] sm:$0xf]
    %v5705 = vld [vmem:[#allocation11 + $0xfc] sm:$0xf]
    %v5706 = vlaneseq
    %v5707 = vshrl.u32 %v5706, 7
    %v5708 = vsub.s32 0, %v5707
    %v5709 = vrot.slane %v5629, %v5708
    %v5774 = vunpack.c.l.b16 %v5642
    %v5775 = vunpack.c.l.b16 %v5643
    %v5776 = vunpack.c.l.b16 %v5644
    %v5777 = vunpack.c.l.b16 %v5645
    %v5778 = vunpack.c.l.b16 %v5646
    %v5779 = vunpack.c.l.b16 %v5647
    %v5780 = vunpack.c.l.b16 %v5648
    %v5781 = vunpack.c.l.b16 %v5649
    %v5782 = vunpack.c.l.b16 %v5650
    %v5783 = vunpack.c.l.b16 %v5651
    %v5784 = vunpack.c.l.b16 %v5652
    %v5785 = vunpack.c.l.b16 %v5653
    %v5786 = vunpack.c.l.b16 %v5654
    %v5787 = vunpack.c.l.b16 %v5655
    %v5788 = vunpack.c.l.b16 %v5656
    %v5789 = vunpack.c.l.b16 %v5657
    %v5790 = vunpack.c.l.b16 %v5658
    %v5791 = vunpack.c.l.b16 %v5659
    %v5792 = vunpack.c.l.b16 %v5660
    %v5793 = vunpack.c.l.b16 %v5661
    %v5794 = vunpack.c.l.b16 %v5662
    %v5795 = vunpack.c.l.b16 %v5663
    %v5796 = vunpack.c.l.b16 %v5664
    %v5797 = vunpack.c.l.b16 %v5665
    %v5798 = vunpack.c.l.b16 %v5666
    %v5799 = vunpack.c.l.b16 %v5667
    %v5800 = vunpack.c.l.b16 %v5668
    %v5801 = vunpack.c.l.b16 %v5669
    %v5802 = vunpack.c.l.b16 %v5670
    %v5803 = vunpack.c.l.b16 %v5671
    %v5804 = vunpack.c.l.b16 %v5672
    %v5805 = vunpack.c.l.b16 %v5673
    %v5806 = vunpack.c.l.b16 %v5674
    %v5807 = vunpack.c.l.b16 %v5675
    %v5808 = vunpack.c.l.b16 %v5676
    %v5809 = vunpack.c.l.b16 %v5677
    %v5810 = vunpack.c.l.b16 %v5678
    %v5811 = vunpack.c.l.b16 %v5679
    %v5812 = vunpack.c.l.b16 %v5680
    %v5813 = vunpack.c.l.b16 %v5681
    %v5814 = vunpack.c.l.b16 %v5682
    %v5815 = vunpack.c.l.b16 %v5683
    %v5816 = vunpack.c.l.b16 %v5684
    %v5817 = vunpack.c.l.b16 %v5685
    %v5818 = vunpack.c.l.b16 %v5686
    %v5819 = vunpack.c.l.b16 %v5687
    %v5820 = vunpack.c.l.b16 %v5688
    %v5821 = vunpack.c.l.b16 %v5689
    %v5822 = vunpack.c.l.b16 %v5690
    %v5823 = vunpack.c.l.b16 %v5691
    %v5824 = vunpack.c.l.b16 %v5692
    %v5825 = vunpack.c.l.b16 %v5693
    %v5826 = vunpack.c.l.b16 %v5694
    %v5827 = vunpack.c.l.b16 %v5695
    %v5828 = vunpack.c.l.b16 %v5696
    %v5829 = vunpack.c.l.b16 %v5697
    %v5830 = vunpack.c.l.b16 %v5698
    %v5831 = vunpack.c.l.b16 %v5699
    %v5832 = vunpack.c.l.b16 %v5700
    %v5833 = vunpack.c.l.b16 %v5701
    %v5834 = vunpack.c.l.b16 %v5702
    %v5835 = vunpack.c.l.b16 %v5703
    %v5836 = vunpack.c.l.b16 %v5704
    %v5837 = vunpack.c.l.b16 %v5705
    %v5838 = vpack.c.b16 %v5775, %v5774
    %v5839 = vpack.c.b16 %v5777, %v5776
    %v5840 = vpack.c.b16 %v5779, %v5778
    %v5841 = vpack.c.b16 %v5781, %v5780
    %v5842 = vpack.c.b16 %v5783, %v5782
    %v5843 = vpack.c.b16 %v5785, %v5784
    %v5844 = vpack.c.b16 %v5787, %v5786
    %v5845 = vpack.c.b16 %v5789, %v5788
    %v5846 = vpack.c.b16 %v5791, %v5790
    %v5847 = vpack.c.b16 %v5793, %v5792
    %v5848 = vpack.c.b16 %v5795, %v5794
    %v5849 = vpack.c.b16 %v5797, %v5796
    %v5850 = vpack.c.b16 %v5799, %v5798
    %v5851 = vpack.c.b16 %v5801, %v5800
    %v5852 = vpack.c.b16 %v5803, %v5802
    %v5853 = vpack.c.b16 %v5805, %v5804
    %v5854 = vpack.c.b16 %v5807, %v5806
    %v5855 = vpack.c.b16 %v5809, %v5808
    %v5856 = vpack.c.b16 %v5811, %v5810
    %v5857 = vpack.c.b16 %v5813, %v5812
    %v5858 = vpack.c.b16 %v5815, %v5814
    %v5859 = vpack.c.b16 %v5817, %v5816
    %v5860 = vpack.c.b16 %v5819, %v5818
    %v5861 = vpack.c.b16 %v5821, %v5820
    %v5862 = vpack.c.b16 %v5823, %v5822
    %v5863 = vpack.c.b16 %v5825, %v5824
    %v5864 = vpack.c.b16 %v5827, %v5826
    %v5865 = vpack.c.b16 %v5829, %v5828
    %v5866 = vpack.c.b16 %v5831, %v5830
    %v5867 = vpack.c.b16 %v5833, %v5832
    %v5868 = vpack.c.b16 %v5835, %v5834
    %v5869 = vpack.c.b16 %v5837, %v5836
    %5902 = vmatprep.subr.bf16.mxu0 0
    %5903 = vmatpush1.bf16.msra.mxu0 %v5845
    %5904 = vmatprep.subr.bf16.mxu0 0
    %5905 = vmatpush1.bf16.msra.mxu0 %v5844
    %5906 = vmatprep.subr.bf16.mxu0 0
    %5907 = vmatpush1.bf16.msra.mxu0 %v5843
    %5908 = vmatprep.subr.bf16.mxu0 0
    %5909 = vmatpush1.bf16.msra.mxu0 %v5842
    %5910 = vmatprep.subr.bf16.mxu0 0
    %5911 = vmatpush1.bf16.msra.mxu0 %v5841
    %5912 = vmatprep.subr.bf16.mxu0 0
    %5913 = vmatpush1.bf16.msra.mxu0 %v5840
    %5914 = vmatprep.subr.bf16.mxu0 0
    %5915 = vmatpush1.bf16.msra.mxu0 %v5839
    %5916 = vmatprep.subr.bf16.mxu0 0
    %5917 = vmatpush1.bf16.msra.mxu0 %v5838
    %5918 = vmatprep.subr.bf16.mxu0 0
    %5919 = vmatpush2.bf16.msra.mxu0 %v5853
    %5920 = vmatprep.subr.bf16.mxu0 0
    %5921 = vmatpush2.bf16.msra.mxu0 %v5852
    %5922 = vmatprep.subr.bf16.mxu0 0
    %5923 = vmatpush2.bf16.msra.mxu0 %v5851
    %5924 = vmatprep.subr.bf16.mxu0 0
    %5925 = vmatpush2.bf16.msra.mxu0 %v5850
    %5926 = vmatprep.subr.bf16.mxu0 0
    %5927 = vmatpush2.bf16.msra.mxu0 %v5849
    %5928 = vmatprep.subr.bf16.mxu0 0
    %5929 = vmatpush2.bf16.msra.mxu0 %v5848
    %5930 = vmatprep.subr.bf16.mxu0 0
    %5931 = vmatpush2.bf16.msra.mxu0 %v5847
    %5932 = vmatprep.subr.bf16.mxu0 0
    %5933 = vmatpush2.bf16.msra.mxu0 %v5846
    %5934 = vmatprep.mubr.bf16.mxu0 %v5639
    %5935 = vmatmul.mubr.bf16.gmra.mxu0 %v5638
    %v5936 = vpop.f32.mrf.mxu0
    %v5937 = vadd.f32 %v5709, %v5936
    %v5938 = vpop.f32.mrf.mxu0
    %v5939 = vpop.f32.mrf.mxu0
    %v5940 = vpop.f32.mrf.mxu0
    %5941 = vdwg.mxu0
    %5942 = vmatprep.subr.bf16.mxu0 0
    %5943 = vmatpush1.bf16.msra.mxu0 %v5861
    %5944 = vmatprep.subr.bf16.mxu0 0
    %5945 = vmatpush1.bf16.msra.mxu0 %v5860
    %5946 = vmatprep.subr.bf16.mxu0 0
    %5947 = vmatpush1.bf16.msra.mxu0 %v5859
    %5948 = vmatprep.subr.bf16.mxu0 0
    %5949 = vmatpush1.bf16.msra.mxu0 %v5858
    %5950 = vmatprep.subr.bf16.mxu0 0
    %5951 = vmatpush1.bf16.msra.mxu0 %v5857
    %5952 = vmatprep.subr.bf16.mxu0 0
    %5953 = vmatpush1.bf16.msra.mxu0 %v5856
    %5954 = vmatprep.subr.bf16.mxu0 0
    %5955 = vmatpush1.bf16.msra.mxu0 %v5855
    %5956 = vmatprep.subr.bf16.mxu0 0
    %5957 = vmatpush1.bf16.msra.mxu0 %v5854
    %5958 = vmatprep.subr.bf16.mxu0 0
    %5959 = vmatpush2.bf16.msra.mxu0 %v5869
    %5960 = vmatprep.subr.bf16.mxu0 0
    %5961 = vmatpush2.bf16.msra.mxu0 %v5868
    %5962 = vmatprep.subr.bf16.mxu0 0
    %5963 = vmatpush2.bf16.msra.mxu0 %v5867
    %5964 = vmatprep.subr.bf16.mxu0 0
    %5965 = vmatpush2.bf16.msra.mxu0 %v5866
    %5966 = vmatprep.subr.bf16.mxu0 0
    %5967 = vmatpush2.bf16.msra.mxu0 %v5865
    %5968 = vmatprep.subr.bf16.mxu0 0
    %5969 = vmatpush2.bf16.msra.mxu0 %v5864
    %5970 = vmatprep.subr.bf16.mxu0 0
    %5971 = vmatpush2.bf16.msra.mxu0 %v5863
    %5972 = vmatprep.subr.bf16.mxu0 0
    %5973 = vmatpush2.bf16.msra.mxu0 %v5862
    %5974 = vmatprep.mubr.bf16.mxu0 %v5641
    %5975 = vmatmul.mubr.bf16.gmra.mxu0 %v5640
    %v5976 = vpop.f32.mrf.mxu0
    %v5977 = vadd.f32 %v5937, %v5976
    %v5978 = vpop.f32.mrf.mxu0
    %v5979 = vpop.f32.mrf.mxu0
    %v5980 = vpop.f32.mrf.mxu0
    %5981 = vdwg.mxu0
    %v5982 = vmul.f32 %v5977, 0.1
    %v5983 = vmax.f32 %v5977, %v5982
    %v5984 = vrot.slane %v5983, 4
    %v5985 = vadd.f32 %v5983, %v5984
    %v5986 = vrot.slane %v5985, 2
    %v5987 = vadd.f32 %v5985, %v5986
    %v5988 = vrot.slane %v5987, 1
    %v5989 = vadd.f32 %v5987, %v5988
    %v5990 = vrcp.pop 8.0
    %v5991 = vmul.f32 %v5989, %v5990
    %v5992 = vsub.f32 %v5983, %v5991
    %v5993 = vmul.f32 %v5992, %v5992
    %v5994 = vrot.slane %v5993, 4
    %v5995 = vadd.f32 %v5993, %v5994
    %v5996 = vrot.slane %v5995, 2
    %v5997 = vadd.f32 %v5995, %v5996
    %v5998 = vrot.slane %v5997, 1
    %v5999 = vadd.f32 %v5997, %v5998
    %v6000 = vmul.f32 %v5999, %v5990
    %v6001 = vadd.f32 %v6000, 1e-05
    %v6002 = vrsqrt.pop %v6001
    %v6003 = vmul.f32 %v5992, %v6002
    %v6004 = vlaneseq
    %v6005 = vshrl.u32 %v6004, 7
    %v6006 = vsub.s32 0, %v6005
    %v6007 = vrot.slane %v5630, %v6006
    %v6008 = vmul.f32 %v6003, %v6007
    %v6009 = vlaneseq
    %v6010 = vshrl.u32 %v6009, 7
    %v6011 = vsub.s32 0, %v6010
    %v6012 = vrot.slane %v5631, %v6011
    %v6013 = vadd.f32 %v6008, %v6012
    %v6014 = vrot.slane %v5628, 4
    %v6015 = vadd.f32 %v5628, %v6014
    %v6016 = vrot.slane %v6015, 2
    %v6017 = vadd.f32 %v6015, %v6016
    %v6018 = vrot.slane %v6017, 1
    %v6019 = vadd.f32 %v6017, %v6018
    %v6020 = vmul.f32 %v6019, %v5990
    %v6021 = vsub.f32 %v5628, %v6020
    %v6022 = vmul.f32 %v6021, %v6021
    %v6023 = vrot.slane %v6022, 4
    %v6024 = vadd.f32 %v6022, %v6023
    %v6025 = vrot.slane %v6024, 2
    %v6026 = vadd.f32 %v6024, %v6025
    %v6027 = vrot.slane %v6026, 1
    %v6028 = vadd.f32 %v6026, %v6027
    %v6029 = vmul.f32 %v6028, %v5990
    %v6030 = vadd.f32 %v6029, 1e-05
    %v6031 = vrsqrt.pop %v6030
    %v6032 = vmul.f32 %v6021, %v6031
    %v6033 = vlaneseq
    %v6034 = vshrl.u32 %v6033, 7
    %v6035 = vsub.s32 0, %v6034
    %v6036 = vrot.slane %v5632, %v6035
    %v6037 = vmul.f32 %v6032, %v6036
    %v6038 = vlaneseq
    %v6039 = vshrl.u32 %v6038, 7
    %v6040 = vsub.s32 0, %v6039
    %v6041 = vrot.slane %v5633, %v6040
    %v6042 = vadd.f32 %v6037, %v6041
    %v6043 = vlaneseq
    %v6044 = vshrl.u32 %v6043, 7
    %v6045 = vsub.s32 0, %v6044
    %v6046 = vrot.slane %v5634, %v6045
    %v6047 = vmul.f32 %v6013, %v6046
    %6048 = vadd.xlane.f32.xlu0 %v6047
    %v6049 = vpop.xlane.xlu0 %6048
    %v6050 = vstv %s5636
    %v6051 = vadd.f32 %v6049, %v6050
    %v6052 = vlaneseq
    %v6053 = vshrl.u32 %v6052, 7
    %v6054 = vsub.s32 0, %v6053
    %v6055 = vrot.slane %v5635, %v6054
    %v6056 = vmul.f32 %v6042, %v6055
    %6057 = vadd.xlane.f32.xlu0 %v6056
    %v6058 = vpop.xlane.xlu0 %6057
    %v6059 = vstv %s5637
    %v6060 = vadd.f32 %v6058, %v6059
    %v6061 = vtanh.pop %v6051
    %v6062 = vtanh.pop %v6060
    %v6063 = vlaneseq
    %v6064 = vand.u32 %v6063, 127
    %vm6065 = vcmp.eq.s32.totalorder %v6064, 0
    %v6066 = vsel %vm6065, %v6051, 0.0
    %vm6067 = vcmp.eq.s32.totalorder %v6064, 1
    %v6068 = vsel %vm6067, %v6060, 0.0
    %v6069 = vadd.f32 %v6066, %v6068
    %vm6070 = vcmp.eq.s32.totalorder %v6064, 2
    %v6071 = vsel %vm6070, %v6061, 0.0
    %v6072 = vadd.f32 %v6069, %v6071
    %vm6073 = vcmp.eq.s32.totalorder %v6064, 3
    %v6074 = vsel %vm6073, %v6062, 0.0
    %v6075 = vadd.f32 %v6072, %v6074
    %6076 = vst [vmem:[#allocation15] sm:$0xff] %v6075
    // Predicated region
    $region58: #{tpu_custom_call.1} parent=1 // pred_check
      _
    $region59: #{tpu_custom_call.1} parent=1 // pred_check_branch
      %6078 = sbr.rel (0) target = $region61
    $region60: #{tpu_custom_call.1} parent=1 // pred_region
      %s6080 = ssub.s32 128, 128
      %6081 = vsyncadd [#allocation4], %s6080
      %s6083 = sshll.u32 [#allocation15], 4
      %s6084 = int_to_ptr.vmem [resolvable:$true] %s6083
      %6086 = dma.vmem_to_hbm [thread:$0]  %s6084, 128, %s7, [#allocation4]
    $region61: #{tpu_custom_call.1} parent=1 // pred_fallthru
      _
    // Predicated region
    $region62: #{tpu_custom_call.1} parent=1 // pred_check
      _
    $region63: #{tpu_custom_call.1} parent=1 // pred_check_branch
      %6088 = sbr.rel (0) target = $region65
    $region64: #{tpu_custom_call.1} parent=1 // pred_region
      %6089 = dma.done [#allocation4], 128
    $region65: #{tpu_custom_call.1} parent=1 // pred_fallthru
      _
    %6090 = vsyncpa [#allocation3], 1
    %6091 = vsyncpa [#allocation7], 1
    %6092 = vsyncpa [#allocation10], 1
    %6093 = vsyncpa [#allocation13], 1
    %6094 = vsyncpa [#allocation4], 1
    %6095 = vsyncpa [#allocation5], 1

</llo_original>
